<compile_context>
chip_gen: v6e
topology: v6e:2x2x1
jax: 0.10.0
libtpu: 0.0.40
codegen_flags: <defaults>
</compile_context>

<pallas_src>
import numpy as np
import jax
import jax.numpy as jnp
from jax import lax
from jax.experimental import pallas as pl
from jax.experimental.pallas import tpu as pltpu

_BN_EPS = 1e-5
_SLOPE = 0.1


# ----------------- weight -> "row matmul" matrices (built in XLA) ------------ #

def _conv_row_mats(w_oihw, stride, pad, w_in):
    """Per-kh matrices (W_in*Cin, OW*Cout) for a conv in (H, W*C)-flat layout."""
    cout, cin, n_kh, n_kw = w_oihw.shape
    n_ow = (w_in + 2 * pad - n_kw) // stride + 1
    kw = np.arange(n_kw)[:, None, None]
    iw = np.arange(w_in)[None, :, None]
    ow = np.arange(n_ow)[None, None, :]
    sel = jnp.asarray((iw + pad - stride * ow == kw).astype(np.float32))  # (KW,W,OW)
    mats = []
    for kh in range(n_kh):
        # M[iw, ci, ow, co] = sum_kw sel[kw,iw,ow] * w[co,ci,kh,kw]
        m = jnp.einsum('kio,ack->icoa', sel, w_oihw[:, :, kh, :])
        mats.append(m.reshape(w_in * cin, n_ow * cout))
    return mats, n_ow


def _deconv_col_mats(w_iohw, stride, pad, w_in):
    """Per-ky matrices (W_in*Cin, OW*Cout) for ConvTranspose2d in flat layout."""
    cin, cout, n_kh, n_kw = w_iohw.shape
    n_ow = (w_in - 1) * stride - 2 * pad + n_kw
    kx = np.arange(n_kw)[:, None, None]
    ix = np.arange(w_in)[None, :, None]
    ox = np.arange(n_ow)[None, None, :]
    sel = jnp.asarray((ox + pad - stride * ix == kx).astype(np.float32))  # (KW,W,OW)
    mats = []
    for ky in range(n_kh):
        # D[ix, ci, ox, co] = sum_kx sel[kx,ix,ox] * w[ci,co,ky,kx]
        m = jnp.einsum('kio,cak->icoa', sel, w_iohw[:, :, ky, :])
        mats.append(m.reshape(w_in * cin, n_ow * cout))
    return mats, n_ow


# --------------------------------- kernel ------------------------------------ #

def _make_kernel(layers, n_side, b_blk, x_cols):
    """Fused whole-network kernel.  Args: x_ref, *side_refs, o_ref, *scratch."""

    def kernel(*args):
        x_ref = args[0]
        side = args[1:1 + n_side]
        o_ref = args[1 + n_side]
        scratch = args[2 + n_side:]

        for b in range(b_blk):                 # static unroll over batch block
            # Stage the (channel-flattened) input as a halo-padded full store.
            zx = jnp.zeros((1, x_cols), jnp.float32)
            scratch[0][...] = jnp.concatenate([zx, x_ref[b], zx], axis=0)

            for lyr in layers:
                if lyr['kind'] == 'conv':
                    oh, st, n_kh = lyr['OH'], lyr['stride'], lyr['KH']
                    pieces = []
                    for s_idx in lyr['srcs']:
                        src = scratch[s_idx]
                        for kh in range(n_kh):
                            if st == 1:
                                pieces.append(src[pl.ds(kh, oh), :])
                            else:
                                pieces.append(src[pl.ds(kh, oh, st), :])
                    lhs = jnp.concatenate(pieces, axis=1)
                    z = jnp.dot(lhs, side[lyr['w']][...],
                                preferred_element_type=jnp.float32)
                    z = z + side[lyr['shift']][...]
                    if lyr['act']:                                 # LeakyReLU(0.1)
                        z = jnp.maximum(z, _SLOPE * z)
                    if lyr['dst'] is None:                         # lane-dense output
                        o_ref[b] = z
                    else:
                        zr = jnp.zeros((1, z.shape[1]), jnp.float32)
                        scratch[lyr['dst']][...] = jnp.concatenate(
                            [zr, z, zr], axis=0)
                else:  # ConvTranspose2d(k=4, s=2, p=1): even/odd output-row phases
                    hin = lyr['Hin']
                    e_p, o_p = [], []
                    for s_idx in lyr['srcs']:
                        src = scratch[s_idx]
                        r0 = src[pl.ds(0, hin), :]
                        r1 = src[pl.ds(1, hin), :]
                        r2 = src[pl.ds(2, hin), :]
                        e_p += [r0, r1]
                        o_p += [r1, r2]
                    e = jnp.dot(jnp.concatenate(e_p, axis=1), side[lyr['we']][...],
                                preferred_element_type=jnp.float32)
                    o = jnp.dot(jnp.concatenate(o_p, axis=1), side[lyr['wo']][...],
                                preferred_element_type=jnp.float32)
                    cols = e.shape[1]
                    # Interleave even/odd rows in registers -> one bulk store.
                    inter = jnp.stack([e, o], axis=1).reshape(2 * hin, cols)
                    inter = inter + side[lyr['shift']][...]
                    inter = jnp.maximum(inter, _SLOPE * inter)
                    zr = jnp.zeros((1, cols), jnp.float32)
                    scratch[lyr['dst']][...] = jnp.concatenate(
                        [zr, inter, zr], axis=0)

    return kernel


# ------------------------- parameter initialization -------------------------- #

def init_params(key, in_ch, out_ch, k):
    keys = iter(jax.random.split(key, 64))

    def convp(cin, cout):  # Conv2d(bias=False) + BatchNorm2d (eval stats)
        return dict(
            w=0.1 * jax.random.normal(next(keys), (cout, cin, k, k), jnp.float32),
            gamma=1.0 + 0.1 * jax.random.normal(next(keys), (cout,), jnp.float32),
            beta=0.1 * jax.random.normal(next(keys), (cout,), jnp.float32),
            mean=0.1 * jax.random.normal(next(keys), (cout,), jnp.float32),
            var=0.5 + jnp.abs(jax.random.normal(next(keys), (cout,), jnp.float32)),
        )

    def deconvp(cin, cout):  # ConvTranspose2d(k=4, bias=True)
        return dict(
            w=0.1 * jax.random.normal(next(keys), (cin, cout, 4, 4), jnp.float32),
            b=0.1 * jax.random.normal(next(keys), (cout,), jnp.float32),
        )

    def outp(cin, cout):  # Conv2d(bias=True)
        return dict(
            w=0.1 * jax.random.normal(next(keys), (cout, cin, k, k), jnp.float32),
            b=0.1 * jax.random.normal(next(keys), (cout,), jnp.float32),
        )

    return dict(
        conv1=convp(in_ch, out_ch), conv2=convp(out_ch, out_ch),
        conv2_1=convp(out_ch, out_ch), conv3=convp(out_ch, out_ch),
        conv3_1=convp(out_ch, out_ch),
        deconv2=deconvp(out_ch, out_ch),
        deconv1=deconvp(2 * out_ch, out_ch),
        deconv0=deconvp(2 * out_ch, out_ch),
        output=outp(2 * out_ch, out_ch),
    )


# ------------------------------ U-net forward -------------------------------- #

def _pick_bblk(n):
    """Largest B_blk (<=8) dividing n that keeps grid >= 2 (v7x: 2 TCs)."""
    best = 1
    for b in range(1, min(n, 8) + 1):
        if n % b == 0 and n // b >= 2:
            best = b
    return best


def u_net_forward(params, x_nchw, kernel_size):
    pad = (kernel_size - 1) // 2
    assert pad == 1, "deconv sub-pixel decomposition assumes padding == 1"
    n, cin, h, w = x_nchw.shape
    assert h % 2 == 0 and w % 2 == 0, "U-net spatial dims must be even"
    x_flat = jnp.transpose(x_nchw, (0, 2, 3, 1)).reshape(n, h, w * cin)

    side = []

    def add_side(a):
        side.append(a)
        return len(side) - 1

    scratch_shapes = []

    def add_scratch(rows, cols):
        scratch_shapes.append(pltpu.VMEM((rows, cols), jnp.float32))
        return len(scratch_shapes) - 1

    layers = []

    xp = add_scratch(h + 2, w * cin)   # scratch 0: H-padded input

    def conv_layer(name, srcs, w_in, stride, h_in, with_bn, act):
        p = params[name]
        wt = p['w']
        if with_bn:                                     # fold BN into weights/shift
            scale = p['gamma'] / jnp.sqrt(p['var'] + _BN_EPS)
            shift = p['beta'] - p['mean'] * scale
            wt = wt * scale[:, None, None, None]
        else:
            shift = p['b']
        oh = (h_in + 2 * pad - kernel_size) // stride + 1
        blocks, ow = [], None
        for _src, csl in srcs:                          # concat folded via channel split
            ms, ow = _conv_row_mats(wt[:, csl, :, :], stride, pad, w_in)
            blocks.extend(ms)                           # order: src-major, kh-minor
        cout = wt.shape[0]
        w_idx = add_side(jnp.concatenate(blocks, axis=0))
        shift_idx = add_side(jnp.tile(shift, ow)[None, :])
        dst = add_scratch(oh + 2, ow * cout)
        layers.append(dict(kind='conv', srcs=[s for s, _ in srcs], w=w_idx,
                           shift=shift_idx, act=act, OH=oh, KH=kernel_size,
                           stride=stride, dst=dst))
        return dst, oh, ow

    def deconv_layer(name, srcs, w_in, h_in):
        p = params[name]
        wt = p['w']                                     # (Cin_total, Cout, 4, 4)
        e_blocks, o_blocks, ow = [], [], None
        for _src, csl in srcs:
            ms, ow = _deconv_col_mats(wt[csl, :, :, :], 2, pad, w_in)
            e_blocks += [ms[3], ms[1]]                  # even rows: r0@d3 + r1@d1
            o_blocks += [ms[2], ms[0]]                  # odd rows:  r1@d2 + r2@d0
        cout = wt.shape[1]
        we_idx = add_side(jnp.concatenate(e_blocks, axis=0))
        wo_idx = add_side(jnp.concatenate(o_blocks, axis=0))
        shift_idx = add_side(jnp.tile(p['b'], ow)[None, :])
        dst = add_scratch(2 * h_in + 2, ow * cout)
        layers.append(dict(kind='deconv', srcs=[s for s, _ in srcs], we=we_idx,
                           wo=wo_idx, shift=shift_idx, Hin=h_in, dst=dst))
        return dst, 2 * h_in, ow

    def out_pair_layer(name, srcs, w_in, h_in):
        """Final conv as a row-pair matmul -> lane-dense (OH/2, 2*OW*Cout) output."""
        p = params[name]
        wt, bias = p['w'], p['b']
        oh = h_in                                       # stride 1, pad 1, k 3
        ohp = oh // 2
        blocks, ow = [], None
        for _src, csl in srcs:
            ms, ow = _conv_row_mats(wt[:, csl, :, :], 1, pad, w_in)
            ktap, nn_ = ms[0].shape
            wp = jnp.zeros(((kernel_size + 1) * ktap, 2 * nn_), jnp.float32)
            for t in range(kernel_size):
                wp = wp.at[t * ktap:(t + 1) * ktap, :nn_].set(ms[t])        # even row
                wp = wp.at[(t + 1) * ktap:(t + 2) * ktap, nn_:].set(ms[t])  # odd row
            blocks.append(wp)
        cout = wt.shape[0]
        w_idx = add_side(jnp.concatenate(blocks, axis=0))
        shift_idx = add_side(jnp.tile(bias, 2 * ow)[None, :])
        layers.append(dict(kind='conv', srcs=[s for s, _ in srcs], w=w_idx,
                           shift=shift_idx, act=False, OH=ohp,
                           KH=kernel_size + 1, stride=2, dst=None))
        return ohp, 2 * ow * cout

    sl_all = slice(None)
    oc = params['conv1']['w'].shape[0]                  # output_channels

    c1p, h1, w1 = conv_layer('conv1', [(xp, sl_all)], w, 2, h, True, True)
    c2ap, h2, w2 = conv_layer('conv2', [(c1p, sl_all)], w1, 2, h1, True, True)
    c2p, _, _ = conv_layer('conv2_1', [(c2ap, sl_all)], w2, 1, h2, True, True)
    c3ap, h3, w3 = conv_layer('conv3', [(c2p, sl_all)], w2, 2, h2, True, True)
    c3p, _, _ = conv_layer('conv3_1', [(c3ap, sl_all)], w3, 1, h3, True, True)
    d2p, _, _ = deconv_layer('deconv2', [(c3p, sl_all)], w3, h3)
    d1p, _, _ = deconv_layer('deconv1',
                             [(c2p, slice(0, oc)), (d2p, slice(oc, 2 * oc))], w2, h2)
    d0p, _, _ = deconv_layer('deconv0',
                             [(c1p, slice(0, oc)), (d1p, slice(oc, 2 * oc))], w1, h1)
    ohp, out_cols = out_pair_layer('output',
                                   [(xp, slice(0, cin)),
                                    (d0p, slice(cin, cin + oc))], w, h)
    # TODO(synk): train-mode Dropout omitted (inference => identity).

    cout_f = params['output']['w'].shape[0]
    b_blk = _pick_bblk(n)
    kernel = _make_kernel(layers, len(side), b_blk, w * cin)

    in_specs = [pl.BlockSpec((b_blk, h, w * cin), lambda i: (i, 0, 0))]
    in_specs += [pl.BlockSpec(a.shape, lambda i: (0, 0)) for a in side]

    out = pl.pallas_call(
        kernel,
        out_shape=jax.ShapeDtypeStruct((n, ohp, out_cols), jnp.float32),
        grid=(n // b_blk,),
        in_specs=in_specs,
        out_specs=pl.BlockSpec((b_blk, ohp, out_cols), lambda i: (i, 0, 0)),
        scratch_shapes=scratch_shapes,
        compiler_params=pltpu.CompilerParams(
            dimension_semantics=("parallel",)),
    )(x_flat, *side)

    # (n, OH/2, 2*OW*Cout) lane-dense -> (n, OH, OW, Cout) -> NCHW (free reshape).
    out = out.reshape(n, h, w, cout_f)
    return jnp.transpose(out, (0, 3, 1, 2))


# ------------------------ pure-JAX (lax) reference --------------------------- #

def ref_forward(params, x_nchw, kernel_size):
    pad = (kernel_size - 1) // 2
    dn = ('NHWC', 'HWIO', 'NHWC')
    x = jnp.transpose(x_nchw, (0, 2, 3, 1))

    def conv_block(name, inp, stride):
        p = params[name]
        wt = jnp.transpose(p['w'], (2, 3, 1, 0))
        y = lax.conv_general_dilated(inp, wt, (stride, stride),
                                     ((pad, pad), (pad, pad)),
                                     dimension_numbers=dn)
        scale = p['gamma'] / jnp.sqrt(p['var'] + _BN_EPS)
        shift = p['beta'] - p['mean'] * scale
        y = y * scale + shift
        return jnp.where(y >= 0, y, 0.1 * y)

    def deconv_block(name, inp):
        p = params[name]
        wt = jnp.transpose(p['w'][:, :, ::-1, ::-1], (2, 3, 0, 1))
        pp = 4 - 1 - pad
        y = lax.conv_general_dilated(inp, wt, (1, 1), ((pp, pp), (pp, pp)),
                                     lhs_dilation=(2, 2), dimension_numbers=dn)
        y = y + p['b']
        return jnp.where(y >= 0, y, 0.1 * y)

    def out_block(inp):
        p = params['output']
        wt = jnp.transpose(p['w'], (2, 3, 1, 0))
        y = lax.conv_general_dilated(inp, wt, (1, 1), ((pad, pad), (pad, pad)),
                                     dimension_numbers=dn)
        return y + p['b']

    c1 = conv_block('conv1', x, 2)
    c2 = conv_block('conv2_1', conv_block('conv2', c1, 2), 1)
    c3 = conv_block('conv3_1', conv_block('conv3', c2, 2), 1)
    d2 = deconv_block('deconv2', c3)
    d1 = deconv_block('deconv1', jnp.concatenate([c2, d2], -1))
    d0 = deconv_block('deconv0', jnp.concatenate([c1, d1], -1))
    out = out_block(jnp.concatenate([x, d0], -1))
    return jnp.transpose(out, (0, 3, 1, 2))


# ----------------------------------- main ------------------------------------ #

if __name__ == "__main__":
    # U_net(input_channels=4, output_channels=4, kernel_size=3, dropout_rate=0.0)
    in_ch, out_ch, ksize = 4, 4, 3
    key = jax.random.PRNGKey(0)
    k_par, k_x = jax.random.split(key)
    params = init_params(k_par, in_ch, out_ch, ksize)

    x = jax.random.normal(k_x, (2, in_ch, 16, 16), jnp.float32)  # NCHW like PyTorch

    fwd = jax.jit(u_net_forward, static_argnums=(2,))
    out = jax.block_until_ready(fwd(params, x, ksize))
    assert out.shape == (2, out_ch, 16, 16), out.shape

    ref = jax.block_until_ready(ref_forward(params, x, ksize))
    max_err = float(jnp.max(jnp.abs(out - ref)))
    assert max_err < 5e-4, max_err

    print("KERNEL_OK")
</pallas_src>

<mosaic_0001>
module attributes {stable_mosaic.version = 11 : i64} {
  func.func @kernel(%arg0: i32, %arg1: memref<1x16x64xf32, #tpu.memory_space<vmem>>, %arg2: memref<192x32xf32, #tpu.memory_space<vmem>>, %arg3: memref<1x32xf32, #tpu.memory_space<vmem>>, %arg4: memref<96x16xf32, #tpu.memory_space<vmem>>, %arg5: memref<1x16xf32, #tpu.memory_space<vmem>>, %arg6: memref<48x16xf32, #tpu.memory_space<vmem>>, %arg7: memref<1x16xf32, #tpu.memory_space<vmem>>, %arg8: memref<48x8xf32, #tpu.memory_space<vmem>>, %arg9: memref<1x8xf32, #tpu.memory_space<vmem>>, %arg10: memref<24x8xf32, #tpu.memory_space<vmem>>, %arg11: memref<1x8xf32, #tpu.memory_space<vmem>>, %arg12: memref<16x16xf32, #tpu.memory_space<vmem>>, %arg13: memref<16x16xf32, #tpu.memory_space<vmem>>, %arg14: memref<1x16xf32, #tpu.memory_space<vmem>>, %arg15: memref<64x32xf32, #tpu.memory_space<vmem>>, %arg16: memref<64x32xf32, #tpu.memory_space<vmem>>, %arg17: memref<1x32xf32, #tpu.memory_space<vmem>>, %arg18: memref<128x64xf32, #tpu.memory_space<vmem>>, %arg19: memref<128x64xf32, #tpu.memory_space<vmem>>, %arg20: memref<1x64xf32, #tpu.memory_space<vmem>>, %arg21: memref<512x128xf32, #tpu.memory_space<vmem>>, %arg22: memref<1x128xf32, #tpu.memory_space<vmem>>, %arg23: memref<1x8x128xf32, #tpu.memory_space<vmem>>, %arg24: memref<18x64xf32, #tpu.memory_space<vmem>>, %arg25: memref<10x32xf32, #tpu.memory_space<vmem>>, %arg26: memref<6x16xf32, #tpu.memory_space<vmem>>, %arg27: memref<6x16xf32, #tpu.memory_space<vmem>>, %arg28: memref<4x8xf32, #tpu.memory_space<vmem>>, %arg29: memref<4x8xf32, #tpu.memory_space<vmem>>, %arg30: memref<6x16xf32, #tpu.memory_space<vmem>>, %arg31: memref<10x32xf32, #tpu.memory_space<vmem>>, %arg32: memref<18x64xf32, #tpu.memory_space<vmem>>) attributes {dimension_semantics = [#tpu.dimension_semantics<parallel>], iteration_bounds = array<i64: 2>, scalar_prefetch = 0 : i64, scratch_operands = 9 : i64, tpu.core_type = #tpu.core_type<tc>, window_params = [{transform_indices = @transform_0, window_bounds = array<i64: 1, 16, 64>}, {pipeline_mode = #tpu.pipeline_mode<synchronous>, transform_indices = @transform_1, window_bounds = array<i64: 192, 32>}, {pipeline_mode = #tpu.pipeline_mode<synchronous>, transform_indices = @transform_2, window_bounds = array<i64: 1, 32>}, {pipeline_mode = #tpu.pipeline_mode<synchronous>, transform_indices = @transform_3, window_bounds = array<i64: 96, 16>}, {pipeline_mode = #tpu.pipeline_mode<synchronous>, transform_indices = @transform_4, window_bounds = array<i64: 1, 16>}, {pipeline_mode = #tpu.pipeline_mode<synchronous>, transform_indices = @transform_5, window_bounds = array<i64: 48, 16>}, {pipeline_mode = #tpu.pipeline_mode<synchronous>, transform_indices = @transform_6, window_bounds = array<i64: 1, 16>}, {pipeline_mode = #tpu.pipeline_mode<synchronous>, transform_indices = @transform_7, window_bounds = array<i64: 48, 8>}, {pipeline_mode = #tpu.pipeline_mode<synchronous>, transform_indices = @transform_8, window_bounds = array<i64: 1, 8>}, {pipeline_mode = #tpu.pipeline_mode<synchronous>, transform_indices = @transform_9, window_bounds = array<i64: 24, 8>}, {pipeline_mode = #tpu.pipeline_mode<synchronous>, transform_indices = @transform_10, window_bounds = array<i64: 1, 8>}, {pipeline_mode = #tpu.pipeline_mode<synchronous>, transform_indices = @transform_11, window_bounds = array<i64: 16, 16>}, {pipeline_mode = #tpu.pipeline_mode<synchronous>, transform_indices = @transform_12, window_bounds = array<i64: 16, 16>}, {pipeline_mode = #tpu.pipeline_mode<synchronous>, transform_indices = @transform_13, window_bounds = array<i64: 1, 16>}, {pipeline_mode = #tpu.pipeline_mode<synchronous>, transform_indices = @transform_14, window_bounds = array<i64: 64, 32>}, {pipeline_mode = #tpu.pipeline_mode<synchronous>, transform_indices = @transform_15, window_bounds = array<i64: 64, 32>}, {pipeline_mode = #tpu.pipeline_mode<synchronous>, transform_indices = @transform_16, window_bounds = array<i64: 1, 32>}, {pipeline_mode = #tpu.pipeline_mode<synchronous>, transform_indices = @transform_17, window_bounds = array<i64: 128, 64>}, {pipeline_mode = #tpu.pipeline_mode<synchronous>, transform_indices = @transform_18, window_bounds = array<i64: 128, 64>}, {pipeline_mode = #tpu.pipeline_mode<synchronous>, transform_indices = @transform_19, window_bounds = array<i64: 1, 64>}, {pipeline_mode = #tpu.pipeline_mode<synchronous>, transform_indices = @transform_20, window_bounds = array<i64: 512, 128>}, {pipeline_mode = #tpu.pipeline_mode<synchronous>, transform_indices = @transform_21, window_bounds = array<i64: 1, 128>}, {transform_indices = @transform_22, window_bounds = array<i64: 1, 8, 128>}]} {
    %cst = arith.constant 0.000000e+00 : f32
    %0 = vector.broadcast %cst : f32 to vector<1x64xf32>
    %c0 = arith.constant 0 : index
    %c0_0 = arith.constant 0 : index
    %c0_1 = arith.constant 0 : index
    %1 = vector.load %arg1[%c0, %c0_0, %c0_1] : memref<1x16x64xf32, #tpu.memory_space<vmem>>, vector<1x16x64xf32>
    %2 = vector.shape_cast %1 : vector<1x16x64xf32> to vector<16x64xf32>
    %3 = tpu.concatenate %0, %2, %0 in 0 : vector<1x64xf32>, vector<16x64xf32>, vector<1x64xf32> -> vector<18x64xf32>
    %c0_2 = arith.constant 0 : index
    %c0_3 = arith.constant 0 : index
    %4 = vector.load %arg24[%c0_2, %c0_3] : memref<18x64xf32, #tpu.memory_space<vmem>>, vector<18x64xf32>
    tpu.vector_store %arg24[%c0_2, %c0_3], %3 {strides = array<i32>} : memref<18x64xf32, #tpu.memory_space<vmem>>, vector<18x64xf32>,
    %c0_4 = arith.constant 0 : index
    %c0_5 = arith.constant 0 : index
    %5 = tpu.strided_load %arg24[%c0_4, %c0_5] {strides = array<i32: 2, 1>} : memref<18x64xf32, #tpu.memory_space<vmem>>, vector<8x64xf32>
    %c1 = arith.constant 1 : index
    %c0_6 = arith.constant 0 : index
    %6 = tpu.strided_load %arg24[%c1, %c0_6] {strides = array<i32: 2, 1>} : memref<18x64xf32, #tpu.memory_space<vmem>>, vector<8x64xf32>
    %c2 = arith.constant 2 : index
    %c0_7 = arith.constant 0 : index
    %7 = tpu.strided_load %arg24[%c2, %c0_7] {strides = array<i32: 2, 1>} : memref<18x64xf32, #tpu.memory_space<vmem>>, vector<8x64xf32>
    %8 = tpu.concatenate %5, %6, %7 in 1 : vector<8x64xf32>, vector<8x64xf32>, vector<8x64xf32> -> vector<8x192xf32>
    %c0_8 = arith.constant 0 : index
    %c0_9 = arith.constant 0 : index
    %9 = vector.load %arg2[%c0_8, %c0_9] : memref<192x32xf32, #tpu.memory_space<vmem>>, vector<192x32xf32>
    %cst_10 = arith.constant dense<0.000000e+00> : vector<8x32xf32>
    %10 = tpu.matmul %8, %9, %cst_10 {dimension_numbers = #tpu.dot_dimension_numbers<[1], [0], [0], [1], [0, 0, 1, 1], [], []>} : vector<8x192xf32>, vector<192x32xf32>, vector<8x32xf32> -> vector<8x32xf32>
    %c0_11 = arith.constant 0 : index
    %c0_12 = arith.constant 0 : index
    %11 = vector.load %arg3[%c0_11, %c0_12] : memref<1x32xf32, #tpu.memory_space<vmem>>, vector<1x32xf32>
    %12 = vector.broadcast %11 : vector<1x32xf32> to vector<8x32xf32>
    %13 = arith.addf %10, %12 : vector<8x32xf32>
    %cst_13 = arith.constant 1.000000e-01 : f32
    %14 = vector.broadcast %cst_13 : f32 to vector<8x32xf32>
    %15 = arith.mulf %14, %13 : vector<8x32xf32>
    %16 = arith.maximumf %13, %15 : vector<8x32xf32>
    %cst_14 = arith.constant 0.000000e+00 : f32
    %17 = vector.broadcast %cst_14 : f32 to vector<1x32xf32>
    %18 = tpu.concatenate %17, %16, %17 in 0 : vector<1x32xf32>, vector<8x32xf32>, vector<1x32xf32> -> vector<10x32xf32>
    %c0_15 = arith.constant 0 : index
    %c0_16 = arith.constant 0 : index
    %19 = vector.load %arg25[%c0_15, %c0_16] : memref<10x32xf32, #tpu.memory_space<vmem>>, vector<10x32xf32>
    tpu.vector_store %arg25[%c0_15, %c0_16], %18 {strides = array<i32>} : memref<10x32xf32, #tpu.memory_space<vmem>>, vector<10x32xf32>,
    %c0_17 = arith.constant 0 : index
    %c0_18 = arith.constant 0 : index
    %20 = tpu.strided_load %arg25[%c0_17, %c0_18] {strides = array<i32: 2, 1>} : memref<10x32xf32, #tpu.memory_space<vmem>>, vector<4x32xf32>
    %c1_19 = arith.constant 1 : index
    %c0_20 = arith.constant 0 : index
    %21 = tpu.strided_load %arg25[%c1_19, %c0_20] {strides = array<i32: 2, 1>} : memref<10x32xf32, #tpu.memory_space<vmem>>, vector<4x32xf32>
    %c2_21 = arith.constant 2 : index
    %c0_22 = arith.constant 0 : index
    %22 = tpu.strided_load %arg25[%c2_21, %c0_22] {strides = array<i32: 2, 1>} : memref<10x32xf32, #tpu.memory_space<vmem>>, vector<4x32xf32>
    %23 = tpu.concatenate %20, %21, %22 in 1 : vector<4x32xf32>, vector<4x32xf32>, vector<4x32xf32> -> vector<4x96xf32>
    %c0_23 = arith.constant 0 : index
    %c0_24 = arith.constant 0 : index
    %24 = vector.load %arg4[%c0_23, %c0_24] : memref<96x16xf32, #tpu.memory_space<vmem>>, vector<96x16xf32>
    %cst_25 = arith.constant dense<0.000000e+00> : vector<4x16xf32>
    %25 = tpu.matmul %23, %24, %cst_25 {dimension_numbers = #tpu.dot_dimension_numbers<[1], [0], [0], [1], [0, 0, 1, 1], [], []>} : vector<4x96xf32>, vector<96x16xf32>, vector<4x16xf32> -> vector<4x16xf32>
    %c0_26 = arith.constant 0 : index
    %c0_27 = arith.constant 0 : index
    %26 = vector.load %arg5[%c0_26, %c0_27] : memref<1x16xf32, #tpu.memory_space<vmem>>, vector<1x16xf32>
    %27 = vector.broadcast %26 : vector<1x16xf32> to vector<4x16xf32>
    %28 = arith.addf %25, %27 : vector<4x16xf32>
    %cst_28 = arith.constant 1.000000e-01 : f32
    %29 = vector.broadcast %cst_28 : f32 to vector<4x16xf32>
    %30 = arith.mulf %29, %28 : vector<4x16xf32>
    %31 = arith.maximumf %28, %30 : vector<4x16xf32>
    %cst_29 = arith.constant 0.000000e+00 : f32
    %32 = vector.broadcast %cst_29 : f32 to vector<1x16xf32>
    %33 = tpu.concatenate %32, %31, %32 in 0 : vector<1x16xf32>, vector<4x16xf32>, vector<1x16xf32> -> vector<6x16xf32>
    %c0_30 = arith.constant 0 : index
    %c0_31 = arith.constant 0 : index
    %34 = vector.load %arg26[%c0_30, %c0_31] : memref<6x16xf32, #tpu.memory_space<vmem>>, vector<6x16xf32>
    tpu.vector_store %arg26[%c0_30, %c0_31], %33 {strides = array<i32>} : memref<6x16xf32, #tpu.memory_space<vmem>>, vector<6x16xf32>,
    %c0_32 = arith.constant 0 : index
    %c0_33 = arith.constant 0 : index
    %35 = vector.load %arg26[%c0_32, %c0_33] : memref<6x16xf32, #tpu.memory_space<vmem>>, vector<4x16xf32>
    %c1_34 = arith.constant 1 : index
    %c0_35 = arith.constant 0 : index
    %36 = vector.load %arg26[%c1_34, %c0_35] : memref<6x16xf32, #tpu.memory_space<vmem>>, vector<4x16xf32>
    %c2_36 = arith.constant 2 : index
    %c0_37 = arith.constant 0 : index
    %37 = vector.load %arg26[%c2_36, %c0_37] : memref<6x16xf32, #tpu.memory_space<vmem>>, vector<4x16xf32>
    %38 = tpu.concatenate %35, %36, %37 in 1 : vector<4x16xf32>, vector<4x16xf32>, vector<4x16xf32> -> vector<4x48xf32>
    %c0_38 = arith.constant 0 : index
    %c0_39 = arith.constant 0 : index
    %39 = vector.load %arg6[%c0_38, %c0_39] : memref<48x16xf32, #tpu.memory_space<vmem>>, vector<48x16xf32>
    %cst_40 = arith.constant dense<0.000000e+00> : vector<4x16xf32>
    %40 = tpu.matmul %38, %39, %cst_40 {dimension_numbers = #tpu.dot_dimension_numbers<[1], [0], [0], [1], [0, 0, 1, 1], [], []>} : vector<4x48xf32>, vector<48x16xf32>, vector<4x16xf32> -> vector<4x16xf32>
    %c0_41 = arith.constant 0 : index
    %c0_42 = arith.constant 0 : index
    %41 = vector.load %arg7[%c0_41, %c0_42] : memref<1x16xf32, #tpu.memory_space<vmem>>, vector<1x16xf32>
    %42 = vector.broadcast %41 : vector<1x16xf32> to vector<4x16xf32>
    %43 = arith.addf %40, %42 : vector<4x16xf32>
    %cst_43 = arith.constant 1.000000e-01 : f32
    %44 = vector.broadcast %cst_43 : f32 to vector<4x16xf32>
    %45 = arith.mulf %44, %43 : vector<4x16xf32>
    %46 = arith.maximumf %43, %45 : vector<4x16xf32>
    %cst_44 = arith.constant 0.000000e+00 : f32
    %47 = vector.broadcast %cst_44 : f32 to vector<1x16xf32>
    %48 = tpu.concatenate %47, %46, %47 in 0 : vector<1x16xf32>, vector<4x16xf32>, vector<1x16xf32> -> vector<6x16xf32>
    %c0_45 = arith.constant 0 : index
    %c0_46 = arith.constant 0 : index
    %49 = vector.load %arg27[%c0_45, %c0_46] : memref<6x16xf32, #tpu.memory_space<vmem>>, vector<6x16xf32>
    tpu.vector_store %arg27[%c0_45, %c0_46], %48 {strides = array<i32>} : memref<6x16xf32, #tpu.memory_space<vmem>>, vector<6x16xf32>,
    %c0_47 = arith.constant 0 : index
    %c0_48 = arith.constant 0 : index
    %50 = tpu.strided_load %arg27[%c0_47, %c0_48] {strides = array<i32: 2, 1>} : memref<6x16xf32, #tpu.memory_space<vmem>>, vector<2x16xf32>
    %c1_49 = arith.constant 1 : index
    %c0_50 = arith.constant 0 : index
    %51 = tpu.strided_load %arg27[%c1_49, %c0_50] {strides = array<i32: 2, 1>} : memref<6x16xf32, #tpu.memory_space<vmem>>, vector<2x16xf32>
    %c2_51 = arith.constant 2 : index
    %c0_52 = arith.constant 0 : index
    %52 = tpu.strided_load %arg27[%c2_51, %c0_52] {strides = array<i32: 2, 1>} : memref<6x16xf32, #tpu.memory_space<vmem>>, vector<2x16xf32>
    %53 = tpu.concatenate %50, %51, %52 in 1 : vector<2x16xf32>, vector<2x16xf32>, vector<2x16xf32> -> vector<2x48xf32>
    %c0_53 = arith.constant 0 : index
    %c0_54 = arith.constant 0 : index
    %54 = vector.load %arg8[%c0_53, %c0_54] : memref<48x8xf32, #tpu.memory_space<vmem>>, vector<48x8xf32>
    %cst_55 = arith.constant dense<0.000000e+00> : vector<2x8xf32>
    %55 = tpu.matmul %53, %54, %cst_55 {dimension_numbers = #tpu.dot_dimension_numbers<[1], [0], [0], [1], [0, 0, 1, 1], [], []>} : vector<2x48xf32>, vector<48x8xf32>, vector<2x8xf32> -> vector<2x8xf32>
    %c0_56 = arith.constant 0 : index
    %c0_57 = arith.constant 0 : index
    %56 = vector.load %arg9[%c0_56, %c0_57] : memref<1x8xf32, #tpu.memory_space<vmem>>, vector<1x8xf32>
    %57 = vector.broadcast %56 : vector<1x8xf32> to vector<2x8xf32>
    %58 = arith.addf %55, %57 : vector<2x8xf32>
    %cst_58 = arith.constant 1.000000e-01 : f32
    %59 = vector.broadcast %cst_58 : f32 to vector<2x8xf32>
    %60 = arith.mulf %59, %58 : vector<2x8xf32>
    %61 = arith.maximumf %58, %60 : vector<2x8xf32>
    %cst_59 = arith.constant 0.000000e+00 : f32
    %62 = vector.broadcast %cst_59 : f32 to vector<1x8xf32>
    %63 = tpu.concatenate %62, %61, %62 in 0 : vector<1x8xf32>, vector<2x8xf32>, vector<1x8xf32> -> vector<4x8xf32>
    %c0_60 = arith.constant 0 : index
    %c0_61 = arith.constant 0 : index
    %64 = vector.load %arg28[%c0_60, %c0_61] : memref<4x8xf32, #tpu.memory_space<vmem>>, vector<4x8xf32>
    tpu.vector_store %arg28[%c0_60, %c0_61], %63 {strides = array<i32>} : memref<4x8xf32, #tpu.memory_space<vmem>>, vector<4x8xf32>,
    %c0_62 = arith.constant 0 : index
    %c0_63 = arith.constant 0 : index
    %65 = vector.load %arg28[%c0_62, %c0_63] : memref<4x8xf32, #tpu.memory_space<vmem>>, vector<2x8xf32>
    %c1_64 = arith.constant 1 : index
    %c0_65 = arith.constant 0 : index
    %66 = vector.load %arg28[%c1_64, %c0_65] : memref<4x8xf32, #tpu.memory_space<vmem>>, vector<2x8xf32>
    %c2_66 = arith.constant 2 : index
    %c0_67 = arith.constant 0 : index
    %67 = vector.load %arg28[%c2_66, %c0_67] : memref<4x8xf32, #tpu.memory_space<vmem>>, vector<2x8xf32>
    %68 = tpu.concatenate %65, %66, %67 in 1 : vector<2x8xf32>, vector<2x8xf32>, vector<2x8xf32> -> vector<2x24xf32>
    %c0_68 = arith.constant 0 : index
    %c0_69 = arith.constant 0 : index
    %69 = vector.load %arg10[%c0_68, %c0_69] : memref<24x8xf32, #tpu.memory_space<vmem>>, vector<24x8xf32>
    %cst_70 = arith.constant dense<0.000000e+00> : vector<2x8xf32>
    %70 = tpu.matmul %68, %69, %cst_70 {dimension_numbers = #tpu.dot_dimension_numbers<[1], [0], [0], [1], [0, 0, 1, 1], [], []>} : vector<2x24xf32>, vector<24x8xf32>, vector<2x8xf32> -> vector<2x8xf32>
    %c0_71 = arith.constant 0 : index
    %c0_72 = arith.constant 0 : index
    %71 = vector.load %arg11[%c0_71, %c0_72] : memref<1x8xf32, #tpu.memory_space<vmem>>, vector<1x8xf32>
    %72 = vector.broadcast %71 : vector<1x8xf32> to vector<2x8xf32>
    %73 = arith.addf %70, %72 : vector<2x8xf32>
    %cst_73 = arith.constant 1.000000e-01 : f32
    %74 = vector.broadcast %cst_73 : f32 to vector<2x8xf32>
    %75 = arith.mulf %74, %73 : vector<2x8xf32>
    %76 = arith.maximumf %73, %75 : vector<2x8xf32>
    %cst_74 = arith.constant 0.000000e+00 : f32
    %77 = vector.broadcast %cst_74 : f32 to vector<1x8xf32>
    %78 = tpu.concatenate %77, %76, %77 in 0 : vector<1x8xf32>, vector<2x8xf32>, vector<1x8xf32> -> vector<4x8xf32>
    %c0_75 = arith.constant 0 : index
    %c0_76 = arith.constant 0 : index
    %79 = vector.load %arg29[%c0_75, %c0_76] : memref<4x8xf32, #tpu.memory_space<vmem>>, vector<4x8xf32>
    tpu.vector_store %arg29[%c0_75, %c0_76], %78 {strides = array<i32>} : memref<4x8xf32, #tpu.memory_space<vmem>>, vector<4x8xf32>,
    %c0_77 = arith.constant 0 : index
    %c0_78 = arith.constant 0 : index
    %80 = vector.load %arg29[%c0_77, %c0_78] : memref<4x8xf32, #tpu.memory_space<vmem>>, vector<2x8xf32>
    %c1_79 = arith.constant 1 : index
    %c0_80 = arith.constant 0 : index
    %81 = vector.load %arg29[%c1_79, %c0_80] : memref<4x8xf32, #tpu.memory_space<vmem>>, vector<2x8xf32>
    %c2_81 = arith.constant 2 : index
    %c0_82 = arith.constant 0 : index
    %82 = vector.load %arg29[%c2_81, %c0_82] : memref<4x8xf32, #tpu.memory_space<vmem>>, vector<2x8xf32>
    %83 = tpu.concatenate %80, %81 in 1 : vector<2x8xf32>, vector<2x8xf32> -> vector<2x16xf32>
    %c0_83 = arith.constant 0 : index
    %c0_84 = arith.constant 0 : index
    %84 = vector.load %arg12[%c0_83, %c0_84] : memref<16x16xf32, #tpu.memory_space<vmem>>, vector<16x16xf32>
    %cst_85 = arith.constant dense<0.000000e+00> : vector<2x16xf32>
    %85 = tpu.matmul %83, %84, %cst_85 {dimension_numbers = #tpu.dot_dimension_numbers<[1], [0], [0], [1], [0, 0, 1, 1], [], []>} : vector<2x16xf32>, vector<16x16xf32>, vector<2x16xf32> -> vector<2x16xf32>
    %86 = tpu.concatenate %81, %82 in 1 : vector<2x8xf32>, vector<2x8xf32> -> vector<2x16xf32>
    %c0_86 = arith.constant 0 : index
    %c0_87 = arith.constant 0 : index
    %87 = vector.load %arg13[%c0_86, %c0_87] : memref<16x16xf32, #tpu.memory_space<vmem>>, vector<16x16xf32>
    %cst_88 = arith.constant dense<0.000000e+00> : vector<2x16xf32>
    %88 = tpu.matmul %86, %87, %cst_88 {dimension_numbers = #tpu.dot_dimension_numbers<[1], [0], [0], [1], [0, 0, 1, 1], [], []>} : vector<2x16xf32>, vector<16x16xf32>, vector<2x16xf32> -> vector<2x16xf32>
    %89 = vector.shape_cast %85 : vector<2x16xf32> to vector<2x1x16xf32>
    %90 = vector.shape_cast %88 : vector<2x16xf32> to vector<2x1x16xf32>
    %91 = tpu.concatenate %89, %90 in 1 : vector<2x1x16xf32>, vector<2x1x16xf32> -> vector<2x2x16xf32>
    %92 = vector.shape_cast %91 : vector<2x2x16xf32> to vector<4x16xf32>
    %c0_89 = arith.constant 0 : index
    %c0_90 = arith.constant 0 : index
    %93 = vector.load %arg14[%c0_89, %c0_90] : memref<1x16xf32, #tpu.memory_space<vmem>>, vector<1x16xf32>
    %94 = vector.broadcast %93 : vector<1x16xf32> to vector<4x16xf32>
    %95 = arith.addf %92, %94 : vector<4x16xf32>
    %cst_91 = arith.constant 1.000000e-01 : f32
    %96 = vector.broadcast %cst_91 : f32 to vector<4x16xf32>
    %97 = arith.mulf %96, %95 : vector<4x16xf32>
    %98 = arith.maximumf %95, %97 : vector<4x16xf32>
    %cst_92 = arith.constant 0.000000e+00 : f32
    %99 = vector.broadcast %cst_92 : f32 to vector<1x16xf32>
    %100 = tpu.concatenate %99, %98, %99 in 0 : vector<1x16xf32>, vector<4x16xf32>, vector<1x16xf32> -> vector<6x16xf32>
    %c0_93 = arith.constant 0 : index
    %c0_94 = arith.constant 0 : index
    %101 = vector.load %arg30[%c0_93, %c0_94] : memref<6x16xf32, #tpu.memory_space<vmem>>, vector<6x16xf32>
    tpu.vector_store %arg30[%c0_93, %c0_94], %100 {strides = array<i32>} : memref<6x16xf32, #tpu.memory_space<vmem>>, vector<6x16xf32>,
    %c0_95 = arith.constant 0 : index
    %c0_96 = arith.constant 0 : index
    %102 = vector.load %arg27[%c0_95, %c0_96] : memref<6x16xf32, #tpu.memory_space<vmem>>, vector<4x16xf32>
    %c1_97 = arith.constant 1 : index
    %c0_98 = arith.constant 0 : index
    %103 = vector.load %arg27[%c1_97, %c0_98] : memref<6x16xf32, #tpu.memory_space<vmem>>, vector<4x16xf32>
    %c2_99 = arith.constant 2 : index
    %c0_100 = arith.constant 0 : index
    %104 = vector.load %arg27[%c2_99, %c0_100] : memref<6x16xf32, #tpu.memory_space<vmem>>, vector<4x16xf32>
    %c0_101 = arith.constant 0 : index
    %c0_102 = arith.constant 0 : index
    %105 = vector.load %arg30[%c0_101, %c0_102] : memref<6x16xf32, #tpu.memory_space<vmem>>, vector<4x16xf32>
    %c1_103 = arith.constant 1 : index
    %c0_104 = arith.constant 0 : index
    %106 = vector.load %arg30[%c1_103, %c0_104] : memref<6x16xf32, #tpu.memory_space<vmem>>, vector<4x16xf32>
    %c2_105 = arith.constant 2 : index
    %c0_106 = arith.constant 0 : index
    %107 = vector.load %arg30[%c2_105, %c0_106] : memref<6x16xf32, #tpu.memory_space<vmem>>, vector<4x16xf32>
    %108 = tpu.concatenate %102, %103, %105, %106 in 1 : vector<4x16xf32>, vector<4x16xf32>, vector<4x16xf32>, vector<4x16xf32> -> vector<4x64xf32>
    %c0_107 = arith.constant 0 : index
    %c0_108 = arith.constant 0 : index
    %109 = vector.load %arg15[%c0_107, %c0_108] : memref<64x32xf32, #tpu.memory_space<vmem>>, vector<64x32xf32>
    %cst_109 = arith.constant dense<0.000000e+00> : vector<4x32xf32>
    %110 = tpu.matmul %108, %109, %cst_109 {dimension_numbers = #tpu.dot_dimension_numbers<[1], [0], [0], [1], [0, 0, 1, 1], [], []>} : vector<4x64xf32>, vector<64x32xf32>, vector<4x32xf32> -> vector<4x32xf32>
    %111 = tpu.concatenate %103, %104, %106, %107 in 1 : vector<4x16xf32>, vector<4x16xf32>, vector<4x16xf32>, vector<4x16xf32> -> vector<4x64xf32>
    %c0_110 = arith.constant 0 : index
    %c0_111 = arith.constant 0 : index
    %112 = vector.load %arg16[%c0_110, %c0_111] : memref<64x32xf32, #tpu.memory_space<vmem>>, vector<64x32xf32>
    %cst_112 = arith.constant dense<0.000000e+00> : vector<4x32xf32>
    %113 = tpu.matmul %111, %112, %cst_112 {dimension_numbers = #tpu.dot_dimension_numbers<[1], [0], [0], [1], [0, 0, 1, 1], [], []>} : vector<4x64xf32>, vector<64x32xf32>, vector<4x32xf32> -> vector<4x32xf32>
    %114 = vector.shape_cast %110 : vector<4x32xf32> to vector<4x1x32xf32>
    %115 = vector.shape_cast %113 : vector<4x32xf32> to vector<4x1x32xf32>
    %116 = tpu.concatenate %114, %115 in 1 : vector<4x1x32xf32>, vector<4x1x32xf32> -> vector<4x2x32xf32>
    %117 = vector.shape_cast %116 : vector<4x2x32xf32> to vector<8x32xf32>
    %c0_113 = arith.constant 0 : index
    %c0_114 = arith.constant 0 : index
    %118 = vector.load %arg17[%c0_113, %c0_114] : memref<1x32xf32, #tpu.memory_space<vmem>>, vector<1x32xf32>
    %119 = vector.broadcast %118 : vector<1x32xf32> to vector<8x32xf32>
    %120 = arith.addf %117, %119 : vector<8x32xf32>
    %cst_115 = arith.constant 1.000000e-01 : f32
    %121 = vector.broadcast %cst_115 : f32 to vector<8x32xf32>
    %122 = arith.mulf %121, %120 : vector<8x32xf32>
    %123 = arith.maximumf %120, %122 : vector<8x32xf32>
    %cst_116 = arith.constant 0.000000e+00 : f32
    %124 = vector.broadcast %cst_116 : f32 to vector<1x32xf32>
    %125 = tpu.concatenate %124, %123, %124 in 0 : vector<1x32xf32>, vector<8x32xf32>, vector<1x32xf32> -> vector<10x32xf32>
    %c0_117 = arith.constant 0 : index
    %c0_118 = arith.constant 0 : index
    %126 = vector.load %arg31[%c0_117, %c0_118] : memref<10x32xf32, #tpu.memory_space<vmem>>, vector<10x32xf32>
    tpu.vector_store %arg31[%c0_117, %c0_118], %125 {strides = array<i32>} : memref<10x32xf32, #tpu.memory_space<vmem>>, vector<10x32xf32>,
    %c0_119 = arith.constant 0 : index
    %c0_120 = arith.constant 0 : index
    %127 = vector.load %arg25[%c0_119, %c0_120] : memref<10x32xf32, #tpu.memory_space<vmem>>, vector<8x32xf32>
    %c1_121 = arith.constant 1 : index
    %c0_122 = arith.constant 0 : index
    %128 = vector.load %arg25[%c1_121, %c0_122] : memref<10x32xf32, #tpu.memory_space<vmem>>, vector<8x32xf32>
    %c2_123 = arith.constant 2 : index
    %c0_124 = arith.constant 0 : index
    %129 = vector.load %arg25[%c2_123, %c0_124] : memref<10x32xf32, #tpu.memory_space<vmem>>, vector<8x32xf32>
    %c0_125 = arith.constant 0 : index
    %c0_126 = arith.constant 0 : index
    %130 = vector.load %arg31[%c0_125, %c0_126] : memref<10x32xf32, #tpu.memory_space<vmem>>, vector<8x32xf32>
    %c1_127 = arith.constant 1 : index
    %c0_128 = arith.constant 0 : index
    %131 = vector.load %arg31[%c1_127, %c0_128] : memref<10x32xf32, #tpu.memory_space<vmem>>, vector<8x32xf32>
    %c2_129 = arith.constant 2 : index
    %c0_130 = arith.constant 0 : index
    %132 = vector.load %arg31[%c2_129, %c0_130] : memref<10x32xf32, #tpu.memory_space<vmem>>, vector<8x32xf32>
    %133 = tpu.concatenate %127, %128, %130, %131 in 1 : vector<8x32xf32>, vector<8x32xf32>, vector<8x32xf32>, vector<8x32xf32> -> vector<8x128xf32>
    %c0_131 = arith.constant 0 : index
    %c0_132 = arith.constant 0 : index
    %134 = vector.load %arg18[%c0_131, %c0_132] : memref<128x64xf32, #tpu.memory_space<vmem>>, vector<128x64xf32>
    %cst_133 = arith.constant dense<0.000000e+00> : vector<8x64xf32>
    %135 = tpu.matmul %133, %134, %cst_133 {dimension_numbers = #tpu.dot_dimension_numbers<[1], [0], [0], [1], [0, 0, 1, 1], [], []>} : vector<8x128xf32>, vector<128x64xf32>, vector<8x64xf32> -> vector<8x64xf32>
    %136 = tpu.concatenate %128, %129, %131, %132 in 1 : vector<8x32xf32>, vector<8x32xf32>, vector<8x32xf32>, vector<8x32xf32> -> vector<8x128xf32>
    %c0_134 = arith.constant 0 : index
    %c0_135 = arith.constant 0 : index
    %137 = vector.load %arg19[%c0_134, %c0_135] : memref<128x64xf32, #tpu.memory_space<vmem>>, vector<128x64xf32>
    %cst_136 = arith.constant dense<0.000000e+00> : vector<8x64xf32>
    %138 = tpu.matmul %136, %137, %cst_136 {dimension_numbers = #tpu.dot_dimension_numbers<[1], [0], [0], [1], [0, 0, 1, 1], [], []>} : vector<8x128xf32>, vector<128x64xf32>, vector<8x64xf32> -> vector<8x64xf32>
    %139 = vector.shape_cast %135 : vector<8x64xf32> to vector<8x1x64xf32>
    %140 = vector.shape_cast %138 : vector<8x64xf32> to vector<8x1x64xf32>
    %141 = tpu.concatenate %139, %140 in 1 : vector<8x1x64xf32>, vector<8x1x64xf32> -> vector<8x2x64xf32>
    %142 = vector.shape_cast %141 : vector<8x2x64xf32> to vector<16x64xf32>
    %c0_137 = arith.constant 0 : index
    %c0_138 = arith.constant 0 : index
    %143 = vector.load %arg20[%c0_137, %c0_138] : memref<1x64xf32, #tpu.memory_space<vmem>>, vector<1x64xf32>
    %144 = vector.broadcast %143 : vector<1x64xf32> to vector<16x64xf32>
    %145 = arith.addf %142, %144 : vector<16x64xf32>
    %cst_139 = arith.constant 1.000000e-01 : f32
    %146 = vector.broadcast %cst_139 : f32 to vector<16x64xf32>
    %147 = arith.mulf %146, %145 : vector<16x64xf32>
    %148 = arith.maximumf %145, %147 : vector<16x64xf32>
    %cst_140 = arith.constant 0.000000e+00 : f32
    %149 = vector.broadcast %cst_140 : f32 to vector<1x64xf32>
    %150 = tpu.concatenate %149, %148, %149 in 0 : vector<1x64xf32>, vector<16x64xf32>, vector<1x64xf32> -> vector<18x64xf32>
    %c0_141 = arith.constant 0 : index
    %c0_142 = arith.constant 0 : index
    %151 = vector.load %arg32[%c0_141, %c0_142] : memref<18x64xf32, #tpu.memory_space<vmem>>, vector<18x64xf32>
    tpu.vector_store %arg32[%c0_141, %c0_142], %150 {strides = array<i32>} : memref<18x64xf32, #tpu.memory_space<vmem>>, vector<18x64xf32>,
    %c0_143 = arith.constant 0 : index
    %c0_144 = arith.constant 0 : index
    %152 = tpu.strided_load %arg24[%c0_143, %c0_144] {strides = array<i32: 2, 1>} : memref<18x64xf32, #tpu.memory_space<vmem>>, vector<8x64xf32>
    %c1_145 = arith.constant 1 : index
    %c0_146 = arith.constant 0 : index
    %153 = tpu.strided_load %arg24[%c1_145, %c0_146] {strides = array<i32: 2, 1>} : memref<18x64xf32, #tpu.memory_space<vmem>>, vector<8x64xf32>
    %c2_147 = arith.constant 2 : index
    %c0_148 = arith.constant 0 : index
    %154 = tpu.strided_load %arg24[%c2_147, %c0_148] {strides = array<i32: 2, 1>} : memref<18x64xf32, #tpu.memory_space<vmem>>, vector<8x64xf32>
    %c3 = arith.constant 3 : index
    %c0_149 = arith.constant 0 : index
    %155 = tpu.strided_load %arg24[%c3, %c0_149] {strides = array<i32: 2, 1>} : memref<18x64xf32, #tpu.memory_space<vmem>>, vector<8x64xf32>
    %c0_150 = arith.constant 0 : index
    %c0_151 = arith.constant 0 : index
    %156 = tpu.strided_load %arg32[%c0_150, %c0_151] {strides = array<i32: 2, 1>} : memref<18x64xf32, #tpu.memory_space<vmem>>, vector<8x64xf32>
    %c1_152 = arith.constant 1 : index
    %c0_153 = arith.constant 0 : index
    %157 = tpu.strided_load %arg32[%c1_152, %c0_153] {strides = array<i32: 2, 1>} : memref<18x64xf32, #tpu.memory_space<vmem>>, vector<8x64xf32>
    %c2_154 = arith.constant 2 : index
    %c0_155 = arith.constant 0 : index
    %158 = tpu.strided_load %arg32[%c2_154, %c0_155] {strides = array<i32: 2, 1>} : memref<18x64xf32, #tpu.memory_space<vmem>>, vector<8x64xf32>
    %c3_156 = arith.constant 3 : index
    %c0_157 = arith.constant 0 : index
    %159 = tpu.strided_load %arg32[%c3_156, %c0_157] {strides = array<i32: 2, 1>} : memref<18x64xf32, #tpu.memory_space<vmem>>, vector<8x64xf32>
    %160 = tpu.concatenate %152, %153, %154, %155, %156, %157, %158, %159 in 1 : vector<8x64xf32>, vector<8x64xf32>, vector<8x64xf32>, vector<8x64xf32>, vector<8x64xf32>, vector<8x64xf32>, vector<8x64xf32>, vector<8x64xf32> -> vector<8x512xf32>
    %c0_158 = arith.constant 0 : index
    %c0_159 = arith.constant 0 : index
    %161 = vector.load %arg21[%c0_158, %c0_159] : memref<512x128xf32, #tpu.memory_space<vmem>>, vector<512x128xf32>
    %cst_160 = arith.constant dense<0.000000e+00> : vector<8x128xf32>
    %162 = tpu.matmul %160, %161, %cst_160 {dimension_numbers = #tpu.dot_dimension_numbers<[1], [0], [0], [1], [0, 0, 1, 1], [], []>} : vector<8x512xf32>, vector<512x128xf32>, vector<8x128xf32> -> vector<8x128xf32>
    %c0_161 = arith.constant 0 : index
    %c0_162 = arith.constant 0 : index
    %163 = vector.load %arg22[%c0_161, %c0_162] : memref<1x128xf32, #tpu.memory_space<vmem>>, vector<1x128xf32>
    %164 = vector.broadcast %163 : vector<1x128xf32> to vector<8x128xf32>
    %165 = arith.addf %162, %164 : vector<8x128xf32>
    %c0_163 = arith.constant 0 : index
    %c0_164 = arith.constant 0 : index
    %c0_165 = arith.constant 0 : index
    %166 = vector.load %arg23[%c0_163, %c0_164, %c0_165] : memref<1x8x128xf32, #tpu.memory_space<vmem>>, vector<1x8x128xf32>
    %167 = vector.shape_cast %166 : vector<1x8x128xf32> to vector<8x128xf32>
    %168 = vector.shape_cast %165 : vector<8x128xf32> to vector<1x8x128xf32>
    tpu.vector_store %arg23[%c0_163, %c0_164, %c0_165], %168 {strides = array<i32>} : memref<1x8x128xf32, #tpu.memory_space<vmem>>, vector<1x8x128xf32>,
    return
  }
  func.func @transform_0(%arg0: i32) -> (i32, i32, i32) {
    %c0_i32 = arith.constant 0 : i32
    %c0_i32_0 = arith.constant 0 : i32
    %c0_i32_1 = arith.constant 0 : i32
    return %arg0, %c0_i32, %c0_i32_0 : i32, i32, i32
  }
  func.func @transform_1(%arg0: i32) -> (i32, i32) {
    %c0_i32 = arith.constant 0 : i32
    %c0_i32_0 = arith.constant 0 : i32
    %c0_i32_1 = arith.constant 0 : i32
    return %c0_i32, %c0_i32_0 : i32, i32
  }
  func.func @transform_2(%arg0: i32) -> (i32, i32) {
    %c0_i32 = arith.constant 0 : i32
    %c0_i32_0 = arith.constant 0 : i32
    %c0_i32_1 = arith.constant 0 : i32
    return %c0_i32, %c0_i32_0 : i32, i32
  }
  func.func @transform_3(%arg0: i32) -> (i32, i32) {
    %c0_i32 = arith.constant 0 : i32
    %c0_i32_0 = arith.constant 0 : i32
    %c0_i32_1 = arith.constant 0 : i32
    return %c0_i32, %c0_i32_0 : i32, i32
  }
  func.func @transform_4(%arg0: i32) -> (i32, i32) {
    %c0_i32 = arith.constant 0 : i32
    %c0_i32_0 = arith.constant 0 : i32
    %c0_i32_1 = arith.constant 0 : i32
    return %c0_i32, %c0_i32_0 : i32, i32
  }
  func.func @transform_5(%arg0: i32) -> (i32, i32) {
    %c0_i32 = arith.constant 0 : i32
    %c0_i32_0 = arith.constant 0 : i32
    %c0_i32_1 = arith.constant 0 : i32
    return %c0_i32, %c0_i32_0 : i32, i32
  }
  func.func @transform_6(%arg0: i32) -> (i32, i32) {
    %c0_i32 = arith.constant 0 : i32
    %c0_i32_0 = arith.constant 0 : i32
    %c0_i32_1 = arith.constant 0 : i32
    return %c0_i32, %c0_i32_0 : i32, i32
  }
  func.func @transform_7(%arg0: i32) -> (i32, i32) {
    %c0_i32 = arith.constant 0 : i32
    %c0_i32_0 = arith.constant 0 : i32
    %c0_i32_1 = arith.constant 0 : i32
    return %c0_i32, %c0_i32_0 : i32, i32
  }
  func.func @transform_8(%arg0: i32) -> (i32, i32) {
    %c0_i32 = arith.constant 0 : i32
    %c0_i32_0 = arith.constant 0 : i32
    %c0_i32_1 = arith.constant 0 : i32
    return %c0_i32, %c0_i32_0 : i32, i32
  }
  func.func @transform_9(%arg0: i32) -> (i32, i32) {
    %c0_i32 = arith.constant 0 : i32
    %c0_i32_0 = arith.constant 0 : i32
    %c0_i32_1 = arith.constant 0 : i32
    return %c0_i32, %c0_i32_0 : i32, i32
  }
  func.func @transform_10(%arg0: i32) -> (i32, i32) {
    %c0_i32 = arith.constant 0 : i32
    %c0_i32_0 = arith.constant 0 : i32
    %c0_i32_1 = arith.constant 0 : i32
    return %c0_i32, %c0_i32_0 : i32, i32
  }
  func.func @transform_11(%arg0: i32) -> (i32, i32) {
    %c0_i32 = arith.constant 0 : i32
    %c0_i32_0 = arith.constant 0 : i32
    %c0_i32_1 = arith.constant 0 : i32
    return %c0_i32, %c0_i32_0 : i32, i32
  }
  func.func @transform_12(%arg0: i32) -> (i32, i32) {
    %c0_i32 = arith.constant 0 : i32
    %c0_i32_0 = arith.constant 0 : i32
    %c0_i32_1 = arith.constant 0 : i32
    return %c0_i32, %c0_i32_0 : i32, i32
  }
  func.func @transform_13(%arg0: i32) -> (i32, i32) {
    %c0_i32 = arith.constant 0 : i32
    %c0_i32_0 = arith.constant 0 : i32
    %c0_i32_1 = arith.constant 0 : i32
    return %c0_i32, %c0_i32_0 : i32, i32
  }
  func.func @transform_14(%arg0: i32) -> (i32, i32) {
    %c0_i32 = arith.constant 0 : i32
    %c0_i32_0 = arith.constant 0 : i32
    %c0_i32_1 = arith.constant 0 : i32
    return %c0_i32, %c0_i32_0 : i32, i32
  }
  func.func @transform_15(%arg0: i32) -> (i32, i32) {
    %c0_i32 = arith.constant 0 : i32
    %c0_i32_0 = arith.constant 0 : i32
    %c0_i32_1 = arith.constant 0 : i32
    return %c0_i32, %c0_i32_0 : i32, i32
  }
  func.func @transform_16(%arg0: i32) -> (i32, i32) {
    %c0_i32 = arith.constant 0 : i32
    %c0_i32_0 = arith.constant 0 : i32
    %c0_i32_1 = arith.constant 0 : i32
    return %c0_i32, %c0_i32_0 : i32, i32
  }
  func.func @transform_17(%arg0: i32) -> (i32, i32) {
    %c0_i32 = arith.constant 0 : i32
    %c0_i32_0 = arith.constant 0 : i32
    %c0_i32_1 = arith.constant 0 : i32
    return %c0_i32, %c0_i32_0 : i32, i32
  }
  func.func @transform_18(%arg0: i32) -> (i32, i32) {
    %c0_i32 = arith.constant 0 : i32
    %c0_i32_0 = arith.constant 0 : i32
    %c0_i32_1 = arith.constant 0 : i32
    return %c0_i32, %c0_i32_0 : i32, i32
  }
  func.func @transform_19(%arg0: i32) -> (i32, i32) {
    %c0_i32 = arith.constant 0 : i32
    %c0_i32_0 = arith.constant 0 : i32
    %c0_i32_1 = arith.constant 0 : i32
    return %c0_i32, %c0_i32_0 : i32, i32
  }
  func.func @transform_20(%arg0: i32) -> (i32, i32) {
    %c0_i32 = arith.constant 0 : i32
    %c0_i32_0 = arith.constant 0 : i32
    %c0_i32_1 = arith.constant 0 : i32
    return %c0_i32, %c0_i32_0 : i32, i32
  }
  func.func @transform_21(%arg0: i32) -> (i32, i32) {
    %c0_i32 = arith.constant 0 : i32
    %c0_i32_0 = arith.constant 0 : i32
    %c0_i32_1 = arith.constant 0 : i32
    return %c0_i32, %c0_i32_0 : i32, i32
  }
  func.func @transform_22(%arg0: i32) -> (i32, i32, i32) {
    %c0_i32 = arith.constant 0 : i32
    %c0_i32_0 = arith.constant 0 : i32
    %c0_i32_1 = arith.constant 0 : i32
    return %arg0, %c0_i32, %c0_i32_0 : i32, i32, i32
  }
}

</mosaic_0001>

<llo_original>
// kernel: tile.48
$region0: #{tile.48}
  #allocation0 [shape = 's32[1]{0}', space=sflag, size = 0x4, scoped, tag = 'scoped memory for tile.48']
  %s0 = inlined_call_operand.vmem [shape: f32[4], index: 0, kind: input, shape index: {}]
  %s1 = inlined_call_operand.vmem [shape: f32[8,4], index: 1, kind: output, shape index: {}]
  // Predicated region
  $region2: #{tile.48} parent=0 // pred_check
    _
  $region3: #{tile.48} parent=0 // pred_check_branch
    %3 = sbr.rel (0) target = $region5
  $region4: #{tile.48} parent=0 // pred_region
    _
  $region5: #{tile.48} parent=0 // pred_fallthru
    _
  %v4 = vld [vmem:[%s0] ss:$0 sm:$0xff]
  %5 = vst [vmem:[%s1] sm:$0xff] %v4

// kernel: tile.49
$region0: #{tile.49}
  %s0 = inlined_call_operand.vmem [shape: f32[8,4], index: 0, kind: input, shape index: {}]
  %s1 = inlined_call_operand.vmem [shape: f32[1,32], index: 1, kind: output, shape index: {}]
  $region1: #{tile.49} parent=0
    #allocation0 [shape = 'u8[4096]{0}', space=vmem, size = 0x1000, scoped, tag = 'scoped mem for output reshape']
    %v2 = vld [vmem:[%s0] sm:$0x1]
    %vm3 = vcmask 31744
    %4 = vst.msk [vmem:[#allocation0] sm:$0x1] %vm3, %v2
    %s5 = scalar_lea.vmem %s0, 7
    %v6 = vld [vmem:[%s5] sm:$0x1]
    %7 = vrot.lane.b32.xlu0 %v6, 28
    %v8 = vpop.permute.xlu0 %7
    %vm9 = vcmask 261344
    %10 = vst.msk [vmem:[#allocation0] sm:$0x1] %vm9, %v8
    %s11 = scalar_lea.vmem %s0, 6
    %v12 = vld [vmem:[%s11] sm:$0x1]
    %13 = vrot.lane.b32.xlu0 %v12, 24
    %v14 = vpop.permute.xlu0 %13
    %vm15 = vcmask 228544
    %16 = vst.msk [vmem:[#allocation0] sm:$0x1] %vm15, %v14
    %s17 = scalar_lea.vmem %s0, 5
    %v18 = vld [vmem:[%s17] sm:$0x1]
    %19 = vrot.lane.b32.xlu0 %v18, 20
    %v20 = vpop.permute.xlu0 %19
    %vm21 = vcmask 195744
    %22 = vst.msk [vmem:[#allocation0] sm:$0x1] %vm21, %v20
    %s23 = scalar_lea.vmem %s0, 4
    %v24 = vld [vmem:[%s23] sm:$0x1]
    %25 = vrot.lane.b32.xlu0 %v24, 16
    %v26 = vpop.permute.xlu0 %25
    %vm27 = vcmask 162944
    %28 = vst.msk [vmem:[#allocation0] sm:$0x1] %vm27, %v26
    %s29 = scalar_lea.vmem %s0, 3
    %v30 = vld [vmem:[%s29] sm:$0x1]
    %31 = vrot.lane.b32.xlu0 %v30, 12
    %v32 = vpop.permute.xlu0 %31
    %vm33 = vcmask 130144
    %34 = vst.msk [vmem:[#allocation0] sm:$0x1] %vm33, %v32
    %s35 = scalar_lea.vmem %s0, 2
    %v36 = vld [vmem:[%s35] sm:$0x1]
    %37 = vrot.lane.b32.xlu0 %v36, 8
    %v38 = vpop.permute.xlu0 %37
    %vm39 = vcmask 97344
    %40 = vst.msk [vmem:[#allocation0] sm:$0x1] %vm39, %v38
    %s41 = scalar_lea.vmem %s0, 1
    %v42 = vld [vmem:[%s41] sm:$0x1]
    %43 = vrot.lane.b32.xlu0 %v42, 4
    %v44 = vpop.permute.xlu0 %43
    %vm45 = vcmask 64544
    %46 = vst.msk [vmem:[#allocation0] sm:$0x1] %vm45, %v44
    %s48 = sshll.u32 1, 1
    %s49 = ssub.s32 %s48, 1
    %v51 = vld [vmem:[#allocation0] sm:%s49]
    %s52 = sshll.u32 1, 1
    %s53 = ssub.s32 %s52, 1
    %54 = vst [vmem:[%s1] sm:%s53] %v51

// kernel: tile.53
$region0: #{tile.53}
  #allocation0 [shape = 's32[1]{0}', space=sflag, size = 0x4, scoped, tag = 'scoped memory for tile.53']
  %s0 = inlined_call_operand.vmem [shape: f32[4], index: 0, kind: input, shape index: {}]
  %s1 = inlined_call_operand.vmem [shape: f32[4,4], index: 1, kind: output, shape index: {}]
  // Predicated region
  $region2: #{tile.53} parent=0 // pred_check
    _
  $region3: #{tile.53} parent=0 // pred_check_branch
    %3 = sbr.rel (0) target = $region5
  $region4: #{tile.53} parent=0 // pred_region
    _
  $region5: #{tile.53} parent=0 // pred_fallthru
    _
  %v4 = vld [vmem:[%s0] ss:$0 sm:$0xff]
  %5 = vst [vmem:[%s1] sm:$0xf] %v4

// kernel: tile.54
$region0: #{tile.54}
  %s0 = inlined_call_operand.vmem [shape: f32[4,4], index: 0, kind: input, shape index: {}]
  %s1 = inlined_call_operand.vmem [shape: f32[1,16], index: 1, kind: output, shape index: {}]
  $region1: #{tile.54} parent=0
    #allocation0 [shape = 'u8[4096]{0}', space=vmem, size = 0x1000, scoped, tag = 'scoped mem for output reshape']
    #allocation1 [shape = 'u8[4096]{0}', space=vmem, size = 0x1000, scoped, tag = 'scoped mem for input reshape']
    %s3 = sshll.u32 1, 4
    %s4 = ssub.s32 %s3, 1
    %v5 = vld [vmem:[%s0] sm:%s4]
    %6 = vst [vmem:[#allocation1] sm:%s4] %v5
    %v7 = vld [vmem:[#allocation1] sm:$0x1]
    %vm8 = vcmask 31744
    %9 = vst.msk [vmem:[#allocation0] sm:$0x1] %vm8, %v7
    %s10 = scalar_lea.vmem [#allocation1], 3
    %v11 = vld [vmem:[%s10] sm:$0x1]
    %12 = vrot.lane.b32.xlu0 %v11, 12
    %v13 = vpop.permute.xlu0 %12
    %vm14 = vcmask 130144
    %15 = vst.msk [vmem:[#allocation0] sm:$0x1] %vm14, %v13
    %s16 = scalar_lea.vmem [#allocation1], 2
    %v17 = vld [vmem:[%s16] sm:$0x1]
    %18 = vrot.lane.b32.xlu0 %v17, 8
    %v19 = vpop.permute.xlu0 %18
    %vm20 = vcmask 97344
    %21 = vst.msk [vmem:[#allocation0] sm:$0x1] %vm20, %v19
    %s22 = scalar_lea.vmem [#allocation1], 1
    %v23 = vld [vmem:[%s22] sm:$0x1]
    %24 = vrot.lane.b32.xlu0 %v23, 4
    %v25 = vpop.permute.xlu0 %24
    %vm26 = vcmask 64544
    %27 = vst.msk [vmem:[#allocation0] sm:$0x1] %vm26, %v25
    %s29 = sshll.u32 1, 1
    %s30 = ssub.s32 %s29, 1
    %v32 = vld [vmem:[#allocation0] sm:%s30]
    %s33 = sshll.u32 1, 1
    %s34 = ssub.s32 %s33, 1
    %35 = vst [vmem:[%s1] sm:%s34] %v32

// kernel: tile.63
$region0: #{tile.63}
  #allocation0 [shape = 's32[1]{0}', space=sflag, size = 0x4, scoped, tag = 'scoped memory for tile.63']
  %s0 = inlined_call_operand.vmem [shape: f32[4], index: 0, kind: input, shape index: {}]
  %s1 = inlined_call_operand.vmem [shape: f32[2,4], index: 1, kind: output, shape index: {}]
  // Predicated region
  $region2: #{tile.63} parent=0 // pred_check
    _
  $region3: #{tile.63} parent=0 // pred_check_branch
    %3 = sbr.rel (0) target = $region5
  $region4: #{tile.63} parent=0 // pred_region
    _
  $region5: #{tile.63} parent=0 // pred_fallthru
    _
  %v4 = vld [vmem:[%s0] ss:$0 sm:$0xff]
  %5 = vst [vmem:[%s1] sm:$0x3] %v4

// kernel: tile.64
$region0: #{tile.64}
  %s0 = inlined_call_operand.vmem [shape: f32[2,4], index: 0, kind: input, shape index: {}]
  %s1 = inlined_call_operand.vmem [shape: f32[1,8], index: 1, kind: output, shape index: {}]
  $region1: #{tile.64} parent=0
    #allocation0 [shape = 'u8[4096]{0}', space=vmem, size = 0x1000, scoped, tag = 'scoped mem for output reshape']
    #allocation1 [shape = 'u8[4096]{0}', space=vmem, size = 0x1000, scoped, tag = 'scoped mem for input reshape']
    %s3 = sshll.u32 1, 2
    %s4 = ssub.s32 %s3, 1
    %v5 = vld [vmem:[%s0] sm:%s4]
    %6 = vst [vmem:[#allocation1] sm:%s4] %v5
    %v7 = vld [vmem:[#allocation1] sm:$0x1]
    %vm8 = vcmask 31744
    %9 = vst.msk [vmem:[#allocation0] sm:$0x1] %vm8, %v7
    %s10 = scalar_lea.vmem [#allocation1], 1
    %v11 = vld [vmem:[%s10] sm:$0x1]
    %12 = vrot.lane.b32.xlu0 %v11, 4
    %v13 = vpop.permute.xlu0 %12
    %vm14 = vcmask 64544
    %15 = vst.msk [vmem:[#allocation0] sm:$0x1] %vm14, %v13
    %s17 = sshll.u32 1, 1
    %s18 = ssub.s32 %s17, 1
    %v20 = vld [vmem:[#allocation0] sm:%s18]
    %s21 = sshll.u32 1, 1
    %s22 = ssub.s32 %s21, 1
    %23 = vst [vmem:[%s1] sm:%s22] %v20

// kernel: tile.88
$region0: #{tile.88}
  #allocation0 [shape = 's32[1]{0}', space=sflag, size = 0x4, scoped, tag = 'scoped memory for tile.88']
  %s0 = inlined_call_operand.vmem [shape: f32[4], index: 0, kind: input, shape index: {}]
  %s1 = inlined_call_operand.vmem [shape: f32[32,4], index: 1, kind: output, shape index: {}]
  // Predicated region
  $region2: #{tile.88} parent=0 // pred_check
    _
  $region3: #{tile.88} parent=0 // pred_check_branch
    %3 = sbr.rel (0) target = $region5
  $region4: #{tile.88} parent=0 // pred_region
    _
  $region5: #{tile.88} parent=0 // pred_fallthru
    _
  %v4 = vld [vmem:[%s0] ss:$0 sm:$0xff]
  %5 = vst [vmem:[%s1] sm:$0xff] %v4
  %s6 = scalar_lea.vmem %s1, 8
  %7 = vst [vmem:[%s6] sm:$0xff] %v4
  %s8 = scalar_lea.vmem %s1, 16
  %9 = vst [vmem:[%s8] sm:$0xff] %v4
  %s10 = scalar_lea.vmem %s1, 24
  %11 = vst [vmem:[%s10] sm:$0xff] %v4

// kernel: tile.89
$region0: #{tile.89}
  %s0 = inlined_call_operand.vmem [shape: f32[32,4], index: 0, kind: input, shape index: {}]
  %s1 = inlined_call_operand.vmem [shape: f32[1,128], index: 1, kind: output, shape index: {}]
  $region1: #{tile.89} parent=0
    #allocation0 [shape = 'u8[4096]{0}', space=vmem, size = 0x1000, scoped, tag = 'scoped mem for output reshape']
    %v2 = vld [vmem:[%s0] sm:$0x1]
    %vm3 = vcmask 31744
    %4 = vst.msk [vmem:[#allocation0] sm:$0x1] %vm3, %v2
    %s5 = scalar_lea.vmem %s0, 31
    %v6 = vld [vmem:[%s5] sm:$0x1]
    %7 = vrot.lane.b32.xlu0 %v6, 124
    %v8 = vpop.permute.xlu0 %7
    %vm9 = vcmask 1048544
    %10 = vst.msk [vmem:[#allocation0] sm:$0x1] %vm9, %v8
    %s11 = scalar_lea.vmem %s0, 30
    %v12 = vld [vmem:[%s11] sm:$0x1]
    %13 = vrot.lane.b32.xlu0 %v12, 120
    %v14 = vpop.permute.xlu0 %13
    %vm15 = vcmask 1015744
    %16 = vst.msk [vmem:[#allocation0] sm:$0x1] %vm15, %v14
    %s17 = scalar_lea.vmem %s0, 29
    %v18 = vld [vmem:[%s17] sm:$0x1]
    %19 = vrot.lane.b32.xlu0 %v18, 116
    %v20 = vpop.permute.xlu0 %19
    %vm21 = vcmask 982944
    %22 = vst.msk [vmem:[#allocation0] sm:$0x1] %vm21, %v20
    %s23 = scalar_lea.vmem %s0, 28
    %v24 = vld [vmem:[%s23] sm:$0x1]
    %25 = vrot.lane.b32.xlu0 %v24, 112
    %v26 = vpop.permute.xlu0 %25
    %vm27 = vcmask 950144
    %28 = vst.msk [vmem:[#allocation0] sm:$0x1] %vm27, %v26
    %s29 = scalar_lea.vmem %s0, 27
    %v30 = vld [vmem:[%s29] sm:$0x1]
    %31 = vrot.lane.b32.xlu0 %v30, 108
    %v32 = vpop.permute.xlu0 %31
    %vm33 = vcmask 917344
    %34 = vst.msk [vmem:[#allocation0] sm:$0x1] %vm33, %v32
    %s35 = scalar_lea.vmem %s0, 26
    %v36 = vld [vmem:[%s35] sm:$0x1]
    %37 = vrot.lane.b32.xlu0 %v36, 104
    %v38 = vpop.permute.xlu0 %37
    %vm39 = vcmask 884544
    %40 = vst.msk [vmem:[#allocation0] sm:$0x1] %vm39, %v38
    %s41 = scalar_lea.vmem %s0, 25
    %v42 = vld [vmem:[%s41] sm:$0x1]
    %43 = vrot.lane.b32.xlu0 %v42, 100
    %v44 = vpop.permute.xlu0 %43
    %vm45 = vcmask 851744
    %46 = vst.msk [vmem:[#allocation0] sm:$0x1] %vm45, %v44
    %s47 = scalar_lea.vmem %s0, 24
    %v48 = vld [vmem:[%s47] sm:$0x1]
    %49 = vrot.lane.b32.xlu0 %v48, 96
    %v50 = vpop.permute.xlu0 %49
    %vm51 = vcmask 818944
    %52 = vst.msk [vmem:[#allocation0] sm:$0x1] %vm51, %v50
    %s53 = scalar_lea.vmem %s0, 23
    %v54 = vld [vmem:[%s53] sm:$0x1]
    %55 = vrot.lane.b32.xlu0 %v54, 92
    %v56 = vpop.permute.xlu0 %55
    %vm57 = vcmask 786144
    %58 = vst.msk [vmem:[#allocation0] sm:$0x1] %vm57, %v56
    %s59 = scalar_lea.vmem %s0, 22
    %v60 = vld [vmem:[%s59] sm:$0x1]
    %61 = vrot.lane.b32.xlu0 %v60, 88
    %v62 = vpop.permute.xlu0 %61
    %vm63 = vcmask 753344
    %64 = vst.msk [vmem:[#allocation0] sm:$0x1] %vm63, %v62
    %s65 = scalar_lea.vmem %s0, 21
    %v66 = vld [vmem:[%s65] sm:$0x1]
    %67 = vrot.lane.b32.xlu0 %v66, 84
    %v68 = vpop.permute.xlu0 %67
    %vm69 = vcmask 720544
    %70 = vst.msk [vmem:[#allocation0] sm:$0x1] %vm69, %v68
    %s71 = scalar_lea.vmem %s0, 20
    %v72 = vld [vmem:[%s71] sm:$0x1]
    %73 = vrot.lane.b32.xlu0 %v72, 80
    %v74 = vpop.permute.xlu0 %73
    %vm75 = vcmask 687744
    %76 = vst.msk [vmem:[#allocation0] sm:$0x1] %vm75, %v74
    %s77 = scalar_lea.vmem %s0, 19
    %v78 = vld [vmem:[%s77] sm:$0x1]
    %79 = vrot.lane.b32.xlu0 %v78, 76
    %v80 = vpop.permute.xlu0 %79
    %vm81 = vcmask 654944
    %82 = vst.msk [vmem:[#allocation0] sm:$0x1] %vm81, %v80
    %s83 = scalar_lea.vmem %s0, 18
    %v84 = vld [vmem:[%s83] sm:$0x1]
    %85 = vrot.lane.b32.xlu0 %v84, 72
    %v86 = vpop.permute.xlu0 %85
    %vm87 = vcmask 622144
    %88 = vst.msk [vmem:[#allocation0] sm:$0x1] %vm87, %v86
    %s89 = scalar_lea.vmem %s0, 17
    %v90 = vld [vmem:[%s89] sm:$0x1]
    %91 = vrot.lane.b32.xlu0 %v90, 68
    %v92 = vpop.permute.xlu0 %91
    %vm93 = vcmask 589344
    %94 = vst.msk [vmem:[#allocation0] sm:$0x1] %vm93, %v92
    %s95 = scalar_lea.vmem %s0, 16
    %v96 = vld [vmem:[%s95] sm:$0x1]
    %97 = vrot.lane.b32.xlu0 %v96, 64
    %v98 = vpop.permute.xlu0 %97
    %vm99 = vcmask 556544
    %100 = vst.msk [vmem:[#allocation0] sm:$0x1] %vm99, %v98
    %s101 = scalar_lea.vmem %s0, 15
    %v102 = vld [vmem:[%s101] sm:$0x1]
    %103 = vrot.lane.b32.xlu0 %v102, 60
    %v104 = vpop.permute.xlu0 %103
    %vm105 = vcmask 523744
    %106 = vst.msk [vmem:[#allocation0] sm:$0x1] %vm105, %v104
    %s107 = scalar_lea.vmem %s0, 14
    %v108 = vld [vmem:[%s107] sm:$0x1]
    %109 = vrot.lane.b32.xlu0 %v108, 56
    %v110 = vpop.permute.xlu0 %109
    %vm111 = vcmask 490944
    %112 = vst.msk [vmem:[#allocation0] sm:$0x1] %vm111, %v110
    %s113 = scalar_lea.vmem %s0, 13
    %v114 = vld [vmem:[%s113] sm:$0x1]
    %115 = vrot.lane.b32.xlu0 %v114, 52
    %v116 = vpop.permute.xlu0 %115
    %vm117 = vcmask 458144
    %118 = vst.msk [vmem:[#allocation0] sm:$0x1] %vm117, %v116
    %s119 = scalar_lea.vmem %s0, 12
    %v120 = vld [vmem:[%s119] sm:$0x1]
    %121 = vrot.lane.b32.xlu0 %v120, 48
    %v122 = vpop.permute.xlu0 %121
    %vm123 = vcmask 425344
    %124 = vst.msk [vmem:[#allocation0] sm:$0x1] %vm123, %v122
    %s125 = scalar_lea.vmem %s0, 11
    %v126 = vld [vmem:[%s125] sm:$0x1]
    %127 = vrot.lane.b32.xlu0 %v126, 44
    %v128 = vpop.permute.xlu0 %127
    %vm129 = vcmask 392544
    %130 = vst.msk [vmem:[#allocation0] sm:$0x1] %vm129, %v128
    %s131 = scalar_lea.vmem %s0, 10
    %v132 = vld [vmem:[%s131] sm:$0x1]
    %133 = vrot.lane.b32.xlu0 %v132, 40
    %v134 = vpop.permute.xlu0 %133
    %vm135 = vcmask 359744
    %136 = vst.msk [vmem:[#allocation0] sm:$0x1] %vm135, %v134
    %s137 = scalar_lea.vmem %s0, 9
    %v138 = vld [vmem:[%s137] sm:$0x1]
    %139 = vrot.lane.b32.xlu0 %v138, 36
    %v140 = vpop.permute.xlu0 %139
    %vm141 = vcmask 326944
    %142 = vst.msk [vmem:[#allocation0] sm:$0x1] %vm141, %v140
    %s143 = scalar_lea.vmem %s0, 8
    %v144 = vld [vmem:[%s143] sm:$0x1]
    %145 = vrot.lane.b32.xlu0 %v144, 32
    %v146 = vpop.permute.xlu0 %145
    %vm147 = vcmask 294144
    %148 = vst.msk [vmem:[#allocation0] sm:$0x1] %vm147, %v146
    %s149 = scalar_lea.vmem %s0, 7
    %v150 = vld [vmem:[%s149] sm:$0x1]
    %151 = vrot.lane.b32.xlu0 %v150, 28
    %v152 = vpop.permute.xlu0 %151
    %vm153 = vcmask 261344
    %154 = vst.msk [vmem:[#allocation0] sm:$0x1] %vm153, %v152
    %s155 = scalar_lea.vmem %s0, 6
    %v156 = vld [vmem:[%s155] sm:$0x1]
    %157 = vrot.lane.b32.xlu0 %v156, 24
    %v158 = vpop.permute.xlu0 %157
    %vm159 = vcmask 228544
    %160 = vst.msk [vmem:[#allocation0] sm:$0x1] %vm159, %v158
    %s161 = scalar_lea.vmem %s0, 5
    %v162 = vld [vmem:[%s161] sm:$0x1]
    %163 = vrot.lane.b32.xlu0 %v162, 20
    %v164 = vpop.permute.xlu0 %163
    %vm165 = vcmask 195744
    %166 = vst.msk [vmem:[#allocation0] sm:$0x1] %vm165, %v164
    %s167 = scalar_lea.vmem %s0, 4
    %v168 = vld [vmem:[%s167] sm:$0x1]
    %169 = vrot.lane.b32.xlu0 %v168, 16
    %v170 = vpop.permute.xlu0 %169
    %vm171 = vcmask 162944
    %172 = vst.msk [vmem:[#allocation0] sm:$0x1] %vm171, %v170
    %s173 = scalar_lea.vmem %s0, 3
    %v174 = vld [vmem:[%s173] sm:$0x1]
    %175 = vrot.lane.b32.xlu0 %v174, 12
    %v176 = vpop.permute.xlu0 %175
    %vm177 = vcmask 130144
    %178 = vst.msk [vmem:[#allocation0] sm:$0x1] %vm177, %v176
    %s179 = scalar_lea.vmem %s0, 2
    %v180 = vld [vmem:[%s179] sm:$0x1]
    %181 = vrot.lane.b32.xlu0 %v180, 8
    %v182 = vpop.permute.xlu0 %181
    %vm183 = vcmask 97344
    %184 = vst.msk [vmem:[#allocation0] sm:$0x1] %vm183, %v182
    %s185 = scalar_lea.vmem %s0, 1
    %v186 = vld [vmem:[%s185] sm:$0x1]
    %187 = vrot.lane.b32.xlu0 %v186, 4
    %v188 = vpop.permute.xlu0 %187
    %vm189 = vcmask 64544
    %190 = vst.msk [vmem:[#allocation0] sm:$0x1] %vm189, %v188
    %s192 = sshll.u32 1, 1
    %s193 = ssub.s32 %s192, 1
    %v195 = vld [vmem:[#allocation0] sm:%s193]
    %s196 = sshll.u32 1, 1
    %s197 = ssub.s32 %s196, 1
    %198 = vst [vmem:[%s1] sm:%s197] %v195

// kernel: tile.83
$region0: #{tile.83}
  #allocation0 [shape = 's32[1]{0}', space=sflag, size = 0x4, scoped, tag = 'scoped memory for tile.83']
  %s0 = inlined_call_operand.vmem [shape: f32[4], index: 0, kind: input, shape index: {}]
  %s1 = inlined_call_operand.vmem [shape: f32[16,4], index: 1, kind: output, shape index: {}]
  // Predicated region
  $region2: #{tile.83} parent=0 // pred_check
    _
  $region3: #{tile.83} parent=0 // pred_check_branch
    %3 = sbr.rel (0) target = $region5
  $region4: #{tile.83} parent=0 // pred_region
    _
  $region5: #{tile.83} parent=0 // pred_fallthru
    _
  %v4 = vld [vmem:[%s0] ss:$0 sm:$0xff]
  %5 = vst [vmem:[%s1] sm:$0xff] %v4
  %s6 = scalar_lea.vmem %s1, 8
  %7 = vst [vmem:[%s6] sm:$0xff] %v4

// kernel: tile.84
$region0: #{tile.84}
  %s0 = inlined_call_operand.vmem [shape: f32[16,4], index: 0, kind: input, shape index: {}]
  %s1 = inlined_call_operand.vmem [shape: f32[1,64], index: 1, kind: output, shape index: {}]
  $region1: #{tile.84} parent=0
    #allocation0 [shape = 'u8[4096]{0}', space=vmem, size = 0x1000, scoped, tag = 'scoped mem for output reshape']
    %v2 = vld [vmem:[%s0] sm:$0x1]
    %vm3 = vcmask 31744
    %4 = vst.msk [vmem:[#allocation0] sm:$0x1] %vm3, %v2
    %s5 = scalar_lea.vmem %s0, 15
    %v6 = vld [vmem:[%s5] sm:$0x1]
    %7 = vrot.lane.b32.xlu0 %v6, 60
    %v8 = vpop.permute.xlu0 %7
    %vm9 = vcmask 523744
    %10 = vst.msk [vmem:[#allocation0] sm:$0x1] %vm9, %v8
    %s11 = scalar_lea.vmem %s0, 14
    %v12 = vld [vmem:[%s11] sm:$0x1]
    %13 = vrot.lane.b32.xlu0 %v12, 56
    %v14 = vpop.permute.xlu0 %13
    %vm15 = vcmask 490944
    %16 = vst.msk [vmem:[#allocation0] sm:$0x1] %vm15, %v14
    %s17 = scalar_lea.vmem %s0, 13
    %v18 = vld [vmem:[%s17] sm:$0x1]
    %19 = vrot.lane.b32.xlu0 %v18, 52
    %v20 = vpop.permute.xlu0 %19
    %vm21 = vcmask 458144
    %22 = vst.msk [vmem:[#allocation0] sm:$0x1] %vm21, %v20
    %s23 = scalar_lea.vmem %s0, 12
    %v24 = vld [vmem:[%s23] sm:$0x1]
    %25 = vrot.lane.b32.xlu0 %v24, 48
    %v26 = vpop.permute.xlu0 %25
    %vm27 = vcmask 425344
    %28 = vst.msk [vmem:[#allocation0] sm:$0x1] %vm27, %v26
    %s29 = scalar_lea.vmem %s0, 11
    %v30 = vld [vmem:[%s29] sm:$0x1]
    %31 = vrot.lane.b32.xlu0 %v30, 44
    %v32 = vpop.permute.xlu0 %31
    %vm33 = vcmask 392544
    %34 = vst.msk [vmem:[#allocation0] sm:$0x1] %vm33, %v32
    %s35 = scalar_lea.vmem %s0, 10
    %v36 = vld [vmem:[%s35] sm:$0x1]
    %37 = vrot.lane.b32.xlu0 %v36, 40
    %v38 = vpop.permute.xlu0 %37
    %vm39 = vcmask 359744
    %40 = vst.msk [vmem:[#allocation0] sm:$0x1] %vm39, %v38
    %s41 = scalar_lea.vmem %s0, 9
    %v42 = vld [vmem:[%s41] sm:$0x1]
    %43 = vrot.lane.b32.xlu0 %v42, 36
    %v44 = vpop.permute.xlu0 %43
    %vm45 = vcmask 326944
    %46 = vst.msk [vmem:[#allocation0] sm:$0x1] %vm45, %v44
    %s47 = scalar_lea.vmem %s0, 8
    %v48 = vld [vmem:[%s47] sm:$0x1]
    %49 = vrot.lane.b32.xlu0 %v48, 32
    %v50 = vpop.permute.xlu0 %49
    %vm51 = vcmask 294144
    %52 = vst.msk [vmem:[#allocation0] sm:$0x1] %vm51, %v50
    %s53 = scalar_lea.vmem %s0, 7
    %v54 = vld [vmem:[%s53] sm:$0x1]
    %55 = vrot.lane.b32.xlu0 %v54, 28
    %v56 = vpop.permute.xlu0 %55
    %vm57 = vcmask 261344
    %58 = vst.msk [vmem:[#allocation0] sm:$0x1] %vm57, %v56
    %s59 = scalar_lea.vmem %s0, 6
    %v60 = vld [vmem:[%s59] sm:$0x1]
    %61 = vrot.lane.b32.xlu0 %v60, 24
    %v62 = vpop.permute.xlu0 %61
    %vm63 = vcmask 228544
    %64 = vst.msk [vmem:[#allocation0] sm:$0x1] %vm63, %v62
    %s65 = scalar_lea.vmem %s0, 5
    %v66 = vld [vmem:[%s65] sm:$0x1]
    %67 = vrot.lane.b32.xlu0 %v66, 20
    %v68 = vpop.permute.xlu0 %67
    %vm69 = vcmask 195744
    %70 = vst.msk [vmem:[#allocation0] sm:$0x1] %vm69, %v68
    %s71 = scalar_lea.vmem %s0, 4
    %v72 = vld [vmem:[%s71] sm:$0x1]
    %73 = vrot.lane.b32.xlu0 %v72, 16
    %v74 = vpop.permute.xlu0 %73
    %vm75 = vcmask 162944
    %76 = vst.msk [vmem:[#allocation0] sm:$0x1] %vm75, %v74
    %s77 = scalar_lea.vmem %s0, 3
    %v78 = vld [vmem:[%s77] sm:$0x1]
    %79 = vrot.lane.b32.xlu0 %v78, 12
    %v80 = vpop.permute.xlu0 %79
    %vm81 = vcmask 130144
    %82 = vst.msk [vmem:[#allocation0] sm:$0x1] %vm81, %v80
    %s83 = scalar_lea.vmem %s0, 2
    %v84 = vld [vmem:[%s83] sm:$0x1]
    %85 = vrot.lane.b32.xlu0 %v84, 8
    %v86 = vpop.permute.xlu0 %85
    %vm87 = vcmask 97344
    %88 = vst.msk [vmem:[#allocation0] sm:$0x1] %vm87, %v86
    %s89 = scalar_lea.vmem %s0, 1
    %v90 = vld [vmem:[%s89] sm:$0x1]
    %91 = vrot.lane.b32.xlu0 %v90, 4
    %v92 = vpop.permute.xlu0 %91
    %vm93 = vcmask 64544
    %94 = vst.msk [vmem:[#allocation0] sm:$0x1] %vm93, %v92
    %s96 = sshll.u32 1, 1
    %s97 = ssub.s32 %s96, 1
    %v99 = vld [vmem:[#allocation0] sm:%s97]
    %s100 = sshll.u32 1, 1
    %s101 = ssub.s32 %s100, 1
    %102 = vst [vmem:[%s1] sm:%s101] %v99

// kernel: u_net_forward.1
$region0: #{u_net_forward.1}
  #allocation0 [shape = 'u32[]', space=smem, size = 0x4, offset = 0x4, fixed_abs, tag = 'smem constant byte address 0x4 - core index']
  #allocation1 [shape = 'u32[144,128]{1,0:T(1,128)}', space=vmem, size = 0x12000, scoped, tag = 'internal scratch']
  #allocation2 [shape = 'f32[18,64]{1,0:T(8,128)}', space=vmem, size = 0x3000, scoped, tag = 'scratch operand']
  #allocation3 [shape = 'f32[10,32]{1,0:T(8,128)}', space=vmem, size = 0x2000, scoped, tag = 'scratch operand']
  #allocation4 [shape = 'f32[6,16]{1,0:T(8,128)}', space=vmem, size = 0x1000, scoped, tag = 'scratch operand']
  #allocation5 [shape = 'f32[6,16]{1,0:T(8,128)}', space=vmem, size = 0x1000, scoped, tag = 'scratch operand']
  #allocation6 [shape = 'f32[4,8]{1,0:T(4,128)}', space=vmem, size = 0x800, scoped, tag = 'scratch operand']
  #allocation7 [shape = 'f32[4,8]{1,0:T(4,128)}', space=vmem, size = 0x800, scoped, tag = 'scratch operand']
  #allocation8 [shape = 'f32[6,16]{1,0:T(8,128)}', space=vmem, size = 0x1000, scoped, tag = 'scratch operand']
  #allocation9 [shape = 'f32[10,32]{1,0:T(8,128)}', space=vmem, size = 0x2000, scoped, tag = 'scratch operand']
  #allocation10 [shape = 'f32[18,64]{1,0:T(8,128)}', space=vmem, size = 0x3000, scoped, tag = 'scratch operand']
  %s0 = inlined_call_operand.vmem [shape: f32[2,16,64], index: 0, kind: input, shape index: {}]
  %s1 = inlined_call_operand.vmem [shape: f32[192,32], index: 1, kind: input, shape index: {}]
  %s2 = inlined_call_operand.vmem [shape: f32[1,32], index: 2, kind: input, shape index: {}]
  %s3 = inlined_call_operand.vmem [shape: f32[96,16], index: 3, kind: input, shape index: {}]
  %s4 = inlined_call_operand.vmem [shape: f32[1,16], index: 4, kind: input, shape index: {}]
  %s5 = inlined_call_operand.vmem [shape: f32[48,16], index: 5, kind: input, shape index: {}]
  %s6 = inlined_call_operand.vmem [shape: f32[1,16], index: 6, kind: input, shape index: {}]
  %s7 = inlined_call_operand.vmem [shape: f32[48,8], index: 7, kind: input, shape index: {}]
  %s8 = inlined_call_operand.vmem [shape: f32[1,8], index: 8, kind: input, shape index: {}]
  %s9 = inlined_call_operand.vmem [shape: f32[24,8], index: 9, kind: input, shape index: {}]
  %s10 = inlined_call_operand.vmem [shape: f32[1,8], index: 10, kind: input, shape index: {}]
  %s11 = inlined_call_operand.vmem [shape: f32[16,16], index: 11, kind: input, shape index: {}]
  %s12 = inlined_call_operand.vmem [shape: f32[16,16], index: 12, kind: input, shape index: {}]
  %s13 = inlined_call_operand.vmem [shape: f32[1,16], index: 13, kind: input, shape index: {}]
  %s14 = inlined_call_operand.vmem [shape: f32[64,32], index: 14, kind: input, shape index: {}]
  %s15 = inlined_call_operand.vmem [shape: f32[64,32], index: 15, kind: input, shape index: {}]
  %s16 = inlined_call_operand.vmem [shape: f32[1,32], index: 16, kind: input, shape index: {}]
  %s17 = inlined_call_operand.vmem [shape: f32[128,64], index: 17, kind: input, shape index: {}]
  %s18 = inlined_call_operand.vmem [shape: f32[128,64], index: 18, kind: input, shape index: {}]
  %s19 = inlined_call_operand.vmem [shape: f32[1,64], index: 19, kind: input, shape index: {}]
  %s20 = inlined_call_operand.vmem [shape: f32[512,128], index: 20, kind: input, shape index: {}]
  %s21 = inlined_call_operand.vmem [shape: f32[1,128], index: 21, kind: input, shape index: {}]
  %s22 = inlined_call_operand.vmem [shape: f32[2,8,128], index: 22, kind: output, shape index: {}]
  %s23 = sld [smem:[#allocation0]]
  $region121: #{u_net_forward.1} parent=0
    _
  %s25 = ssub.s32 1, %s23
  %s26 = scalar_select 0, %s25, %s23
  loop: start=0, step=1, limit=4
  $region2: #{u_net_forward.1} parent=0 // loop_pre_header
    _
  $region3: #{u_net_forward.1} parent=0 // loop_header
    %s28 = sphi 0, %s32
    %p29 = scmp.ge.s32.totalorder %s28, 4
    %s38 = sphi 0, %s40
    %s41 = sphi 0, %s38
    %s42 = sphi 0, %s41
    %s58 = sphi 0, %s42
    %s62 = sphi 0, %s62
    %s64 = sphi 0, %s62
    %s65 = sphi 0, %s64
    %s79 = sphi 0, %s65
    %s83 = sphi 0, %s83
    %s85 = sphi 0, %s83
    %s86 = sphi 0, %s85
    %s100 = sphi 0, %s86
    %s104 = sphi 0, %s104
    %s106 = sphi 0, %s104
    %s107 = sphi 0, %s106
    %s121 = sphi 0, %s107
    %s125 = sphi 0, %s125
    %s127 = sphi 0, %s125
    %s128 = sphi 0, %s127
    %s142 = sphi 0, %s128
    %s146 = sphi 0, %s146
    %s148 = sphi 0, %s146
    %s149 = sphi 0, %s148
    %s163 = sphi 0, %s149
    %s167 = sphi 0, %s167
    %s169 = sphi 0, %s167
    %s170 = sphi 0, %s169
    %s184 = sphi 0, %s170
    %s188 = sphi 0, %s188
    %s190 = sphi 0, %s188
    %s191 = sphi 0, %s190
    %s205 = sphi 0, %s191
    %s209 = sphi 0, %s209
    %s211 = sphi 0, %s209
    %s212 = sphi 0, %s211
    %s226 = sphi 0, %s212
    %s230 = sphi 0, %s230
    %s232 = sphi 0, %s230
    %s233 = sphi 0, %s232
    %s247 = sphi 0, %s233
    %s251 = sphi 0, %s251
    %s253 = sphi 0, %s251
    %s254 = sphi 0, %s253
    %s268 = sphi 0, %s254
    %s272 = sphi 0, %s272
    %s274 = sphi 0, %s272
    %s275 = sphi 0, %s274
    %s289 = sphi 0, %s275
    %s293 = sphi 0, %s293
    %s295 = sphi 0, %s293
    %s296 = sphi 0, %s295
    %s310 = sphi 0, %s296
    %s314 = sphi 0, %s314
    %s316 = sphi 0, %s314
    %s317 = sphi 0, %s316
    %s331 = sphi 0, %s317
    %s335 = sphi 0, %s335
    %s337 = sphi 0, %s335
    %s338 = sphi 0, %s337
    %s352 = sphi 0, %s338
    %s356 = sphi 0, %s356
    %s358 = sphi 0, %s356
    %s359 = sphi 0, %s358
    %s373 = sphi 0, %s359
    %s377 = sphi 0, %s377
    %s379 = sphi 0, %s377
    %s380 = sphi 0, %s379
    %s394 = sphi 0, %s380
    %s398 = sphi 0, %s398
    %s400 = sphi 0, %s398
    %s401 = sphi 0, %s400
    %s415 = sphi 0, %s401
    %s419 = sphi 0, %s419
    %s421 = sphi 0, %s419
    %s422 = sphi 0, %s421
    %s436 = sphi 0, %s422
    %s440 = sphi 0, %s440
    %s442 = sphi 0, %s440
    %s443 = sphi 0, %s442
    %s457 = sphi 0, %s443
    %s461 = sphi 0, %s461
    %s463 = sphi 0, %s461
    %s464 = sphi 0, %s463
    %s478 = sphi 0, %s464
    %s482 = sphi 0, %s482
    %s484 = sphi 0, %s482
    %s485 = sphi 0, %s484
    %s499 = sphi 0, %s485
    %s505 = sphi 0, %s507
    %s508 = sphi 0, %s505
    %s509 = sphi 0, %s508
    %s525 = sphi 0, %s509
  $region4: #{u_net_forward.1} parent=0 // loop_header_branch
    %31 = sbr.rel (%p29) target = $region8
  $region5: #{u_net_forward.1} parent=0 // loop_body
    %s33 = ssub.s32 %s28, 1
    %s34 = ssub.s32 %s28, 2
    %s35 = sadd.s32 %s28, 1
    %s36 = ssub.s32 %s28, %s35
    %p37 = scmp.eq.s32.totalorder %s36, 0
    %s39 = sadd.s32 %s38, 1
    %s40 = scalar_select %p37, %s38, %s39
    %p43 = pneg %p37
    %p44 = scmp.eq.s32.totalorder %s28, 1
    %p45 = por %p43, %p44
    %p46 = scmp.ne.s32.totalorder %s38, %s41
    %p47 = scmp.eq.s32.totalorder %s28, 0
    %p48 = por %p46, %p47
    %p49 = scmp.ne.s32.totalorder %s38, %s41
    %p50 = scmp.eq.s32.totalorder %s33, 1
    %p51 = por %p49, %p50
    %p52 = scmp.ne.s32.totalorder %s41, %s42
    %p53 = scmp.eq.s32.totalorder %s33, 0
    %p54 = por %p52, %p53
    %p55 = scmp.ne.s32.totalorder %s41, %s42
    %p56 = scmp.eq.s32.totalorder %s34, 1
    %p57 = por %p55, %p56
    %p59 = scmp.ne.s32.totalorder %s42, %s58
    %p60 = scmp.eq.s32.totalorder %s34, 0
    %p61 = por %p59, %p60
    %s63 = sadd.s32 %s62, 1
    %p66 = scmp.eq.s32.totalorder %s28, 1
    %p67 = scmp.ne.s32.totalorder %s62, %s64
    %p68 = scmp.eq.s32.totalorder %s28, 0
    %p69 = por %p67, %p68
    %p70 = scmp.ne.s32.totalorder %s62, %s64
    %p71 = scmp.eq.s32.totalorder %s33, 1
    %p72 = por %p70, %p71
    %p73 = scmp.ne.s32.totalorder %s64, %s65
    %p74 = scmp.eq.s32.totalorder %s33, 0
    %p75 = por %p73, %p74
    %p76 = scmp.ne.s32.totalorder %s64, %s65
    %p77 = scmp.eq.s32.totalorder %s34, 1
    %p78 = por %p76, %p77
    %p80 = scmp.ne.s32.totalorder %s65, %s79
    %p81 = scmp.eq.s32.totalorder %s34, 0
    %p82 = por %p80, %p81
    %s84 = sadd.s32 %s83, 1
    %p87 = scmp.eq.s32.totalorder %s28, 1
    %p88 = scmp.ne.s32.totalorder %s83, %s85
    %p89 = scmp.eq.s32.totalorder %s28, 0
    %p90 = por %p88, %p89
    %p91 = scmp.ne.s32.totalorder %s83, %s85
    %p92 = scmp.eq.s32.totalorder %s33, 1
    %p93 = por %p91, %p92
    %p94 = scmp.ne.s32.totalorder %s85, %s86
    %p95 = scmp.eq.s32.totalorder %s33, 0
    %p96 = por %p94, %p95
    %p97 = scmp.ne.s32.totalorder %s85, %s86
    %p98 = scmp.eq.s32.totalorder %s34, 1
    %p99 = por %p97, %p98
    %p101 = scmp.ne.s32.totalorder %s86, %s100
    %p102 = scmp.eq.s32.totalorder %s34, 0
    %p103 = por %p101, %p102
    %s105 = sadd.s32 %s104, 1
    %p108 = scmp.eq.s32.totalorder %s28, 1
    %p109 = scmp.ne.s32.totalorder %s104, %s106
    %p110 = scmp.eq.s32.totalorder %s28, 0
    %p111 = por %p109, %p110
    %p112 = scmp.ne.s32.totalorder %s104, %s106
    %p113 = scmp.eq.s32.totalorder %s33, 1
    %p114 = por %p112, %p113
    %p115 = scmp.ne.s32.totalorder %s106, %s107
    %p116 = scmp.eq.s32.totalorder %s33, 0
    %p117 = por %p115, %p116
    %p118 = scmp.ne.s32.totalorder %s106, %s107
    %p119 = scmp.eq.s32.totalorder %s34, 1
    %p120 = por %p118, %p119
    %p122 = scmp.ne.s32.totalorder %s107, %s121
    %p123 = scmp.eq.s32.totalorder %s34, 0
    %p124 = por %p122, %p123
    %s126 = sadd.s32 %s125, 1
    %p129 = scmp.eq.s32.totalorder %s28, 1
    %p130 = scmp.ne.s32.totalorder %s125, %s127
    %p131 = scmp.eq.s32.totalorder %s28, 0
    %p132 = por %p130, %p131
    %p133 = scmp.ne.s32.totalorder %s125, %s127
    %p134 = scmp.eq.s32.totalorder %s33, 1
    %p135 = por %p133, %p134
    %p136 = scmp.ne.s32.totalorder %s127, %s128
    %p137 = scmp.eq.s32.totalorder %s33, 0
    %p138 = por %p136, %p137
    %p139 = scmp.ne.s32.totalorder %s127, %s128
    %p140 = scmp.eq.s32.totalorder %s34, 1
    %p141 = por %p139, %p140
    %p143 = scmp.ne.s32.totalorder %s128, %s142
    %p144 = scmp.eq.s32.totalorder %s34, 0
    %p145 = por %p143, %p144
    %s147 = sadd.s32 %s146, 1
    %p150 = scmp.eq.s32.totalorder %s28, 1
    %p151 = scmp.ne.s32.totalorder %s146, %s148
    %p152 = scmp.eq.s32.totalorder %s28, 0
    %p153 = por %p151, %p152
    %p154 = scmp.ne.s32.totalorder %s146, %s148
    %p155 = scmp.eq.s32.totalorder %s33, 1
    %p156 = por %p154, %p155
    %p157 = scmp.ne.s32.totalorder %s148, %s149
    %p158 = scmp.eq.s32.totalorder %s33, 0
    %p159 = por %p157, %p158
    %p160 = scmp.ne.s32.totalorder %s148, %s149
    %p161 = scmp.eq.s32.totalorder %s34, 1
    %p162 = por %p160, %p161
    %p164 = scmp.ne.s32.totalorder %s149, %s163
    %p165 = scmp.eq.s32.totalorder %s34, 0
    %p166 = por %p164, %p165
    %s168 = sadd.s32 %s167, 1
    %p171 = scmp.eq.s32.totalorder %s28, 1
    %p172 = scmp.ne.s32.totalorder %s167, %s169
    %p173 = scmp.eq.s32.totalorder %s28, 0
    %p174 = por %p172, %p173
    %p175 = scmp.ne.s32.totalorder %s167, %s169
    %p176 = scmp.eq.s32.totalorder %s33, 1
    %p177 = por %p175, %p176
    %p178 = scmp.ne.s32.totalorder %s169, %s170
    %p179 = scmp.eq.s32.totalorder %s33, 0
    %p180 = por %p178, %p179
    %p181 = scmp.ne.s32.totalorder %s169, %s170
    %p182 = scmp.eq.s32.totalorder %s34, 1
    %p183 = por %p181, %p182
    %p185 = scmp.ne.s32.totalorder %s170, %s184
    %p186 = scmp.eq.s32.totalorder %s34, 0
    %p187 = por %p185, %p186
    %s189 = sadd.s32 %s188, 1
    %p192 = scmp.eq.s32.totalorder %s28, 1
    %p193 = scmp.ne.s32.totalorder %s188, %s190
    %p194 = scmp.eq.s32.totalorder %s28, 0
    %p195 = por %p193, %p194
    %p196 = scmp.ne.s32.totalorder %s188, %s190
    %p197 = scmp.eq.s32.totalorder %s33, 1
    %p198 = por %p196, %p197
    %p199 = scmp.ne.s32.totalorder %s190, %s191
    %p200 = scmp.eq.s32.totalorder %s33, 0
    %p201 = por %p199, %p200
    %p202 = scmp.ne.s32.totalorder %s190, %s191
    %p203 = scmp.eq.s32.totalorder %s34, 1
    %p204 = por %p202, %p203
    %p206 = scmp.ne.s32.totalorder %s191, %s205
    %p207 = scmp.eq.s32.totalorder %s34, 0
    %p208 = por %p206, %p207
    %s210 = sadd.s32 %s209, 1
    %p213 = scmp.eq.s32.totalorder %s28, 1
    %p214 = scmp.ne.s32.totalorder %s209, %s211
    %p215 = scmp.eq.s32.totalorder %s28, 0
    %p216 = por %p214, %p215
    %p217 = scmp.ne.s32.totalorder %s209, %s211
    %p218 = scmp.eq.s32.totalorder %s33, 1
    %p219 = por %p217, %p218
    %p220 = scmp.ne.s32.totalorder %s211, %s212
    %p221 = scmp.eq.s32.totalorder %s33, 0
    %p222 = por %p220, %p221
    %p223 = scmp.ne.s32.totalorder %s211, %s212
    %p224 = scmp.eq.s32.totalorder %s34, 1
    %p225 = por %p223, %p224
    %p227 = scmp.ne.s32.totalorder %s212, %s226
    %p228 = scmp.eq.s32.totalorder %s34, 0
    %p229 = por %p227, %p228
    %s231 = sadd.s32 %s230, 1
    %p234 = scmp.eq.s32.totalorder %s28, 1
    %p235 = scmp.ne.s32.totalorder %s230, %s232
    %p236 = scmp.eq.s32.totalorder %s28, 0
    %p237 = por %p235, %p236
    %p238 = scmp.ne.s32.totalorder %s230, %s232
    %p239 = scmp.eq.s32.totalorder %s33, 1
    %p240 = por %p238, %p239
    %p241 = scmp.ne.s32.totalorder %s232, %s233
    %p242 = scmp.eq.s32.totalorder %s33, 0
    %p243 = por %p241, %p242
    %p244 = scmp.ne.s32.totalorder %s232, %s233
    %p245 = scmp.eq.s32.totalorder %s34, 1
    %p246 = por %p244, %p245
    %p248 = scmp.ne.s32.totalorder %s233, %s247
    %p249 = scmp.eq.s32.totalorder %s34, 0
    %p250 = por %p248, %p249
    %s252 = sadd.s32 %s251, 1
    %p255 = scmp.eq.s32.totalorder %s28, 1
    %p256 = scmp.ne.s32.totalorder %s251, %s253
    %p257 = scmp.eq.s32.totalorder %s28, 0
    %p258 = por %p256, %p257
    %p259 = scmp.ne.s32.totalorder %s251, %s253
    %p260 = scmp.eq.s32.totalorder %s33, 1
    %p261 = por %p259, %p260
    %p262 = scmp.ne.s32.totalorder %s253, %s254
    %p263 = scmp.eq.s32.totalorder %s33, 0
    %p264 = por %p262, %p263
    %p265 = scmp.ne.s32.totalorder %s253, %s254
    %p266 = scmp.eq.s32.totalorder %s34, 1
    %p267 = por %p265, %p266
    %p269 = scmp.ne.s32.totalorder %s254, %s268
    %p270 = scmp.eq.s32.totalorder %s34, 0
    %p271 = por %p269, %p270
    %s273 = sadd.s32 %s272, 1
    %p276 = scmp.eq.s32.totalorder %s28, 1
    %p277 = scmp.ne.s32.totalorder %s272, %s274
    %p278 = scmp.eq.s32.totalorder %s28, 0
    %p279 = por %p277, %p278
    %p280 = scmp.ne.s32.totalorder %s272, %s274
    %p281 = scmp.eq.s32.totalorder %s33, 1
    %p282 = por %p280, %p281
    %p283 = scmp.ne.s32.totalorder %s274, %s275
    %p284 = scmp.eq.s32.totalorder %s33, 0
    %p285 = por %p283, %p284
    %p286 = scmp.ne.s32.totalorder %s274, %s275
    %p287 = scmp.eq.s32.totalorder %s34, 1
    %p288 = por %p286, %p287
    %p290 = scmp.ne.s32.totalorder %s275, %s289
    %p291 = scmp.eq.s32.totalorder %s34, 0
    %p292 = por %p290, %p291
    %s294 = sadd.s32 %s293, 1
    %p297 = scmp.eq.s32.totalorder %s28, 1
    %p298 = scmp.ne.s32.totalorder %s293, %s295
    %p299 = scmp.eq.s32.totalorder %s28, 0
    %p300 = por %p298, %p299
    %p301 = scmp.ne.s32.totalorder %s293, %s295
    %p302 = scmp.eq.s32.totalorder %s33, 1
    %p303 = por %p301, %p302
    %p304 = scmp.ne.s32.totalorder %s295, %s296
    %p305 = scmp.eq.s32.totalorder %s33, 0
    %p306 = por %p304, %p305
    %p307 = scmp.ne.s32.totalorder %s295, %s296
    %p308 = scmp.eq.s32.totalorder %s34, 1
    %p309 = por %p307, %p308
    %p311 = scmp.ne.s32.totalorder %s296, %s310
    %p312 = scmp.eq.s32.totalorder %s34, 0
    %p313 = por %p311, %p312
    %s315 = sadd.s32 %s314, 1
    %p318 = scmp.eq.s32.totalorder %s28, 1
    %p319 = scmp.ne.s32.totalorder %s314, %s316
    %p320 = scmp.eq.s32.totalorder %s28, 0
    %p321 = por %p319, %p320
    %p322 = scmp.ne.s32.totalorder %s314, %s316
    %p323 = scmp.eq.s32.totalorder %s33, 1
    %p324 = por %p322, %p323
    %p325 = scmp.ne.s32.totalorder %s316, %s317
    %p326 = scmp.eq.s32.totalorder %s33, 0
    %p327 = por %p325, %p326
    %p328 = scmp.ne.s32.totalorder %s316, %s317
    %p329 = scmp.eq.s32.totalorder %s34, 1
    %p330 = por %p328, %p329
    %p332 = scmp.ne.s32.totalorder %s317, %s331
    %p333 = scmp.eq.s32.totalorder %s34, 0
    %p334 = por %p332, %p333
    %s336 = sadd.s32 %s335, 1
    %p339 = scmp.eq.s32.totalorder %s28, 1
    %p340 = scmp.ne.s32.totalorder %s335, %s337
    %p341 = scmp.eq.s32.totalorder %s28, 0
    %p342 = por %p340, %p341
    %p343 = scmp.ne.s32.totalorder %s335, %s337
    %p344 = scmp.eq.s32.totalorder %s33, 1
    %p345 = por %p343, %p344
    %p346 = scmp.ne.s32.totalorder %s337, %s338
    %p347 = scmp.eq.s32.totalorder %s33, 0
    %p348 = por %p346, %p347
    %p349 = scmp.ne.s32.totalorder %s337, %s338
    %p350 = scmp.eq.s32.totalorder %s34, 1
    %p351 = por %p349, %p350
    %p353 = scmp.ne.s32.totalorder %s338, %s352
    %p354 = scmp.eq.s32.totalorder %s34, 0
    %p355 = por %p353, %p354
    %s357 = sadd.s32 %s356, 1
    %p360 = scmp.eq.s32.totalorder %s28, 1
    %p361 = scmp.ne.s32.totalorder %s356, %s358
    %p362 = scmp.eq.s32.totalorder %s28, 0
    %p363 = por %p361, %p362
    %p364 = scmp.ne.s32.totalorder %s356, %s358
    %p365 = scmp.eq.s32.totalorder %s33, 1
    %p366 = por %p364, %p365
    %p367 = scmp.ne.s32.totalorder %s358, %s359
    %p368 = scmp.eq.s32.totalorder %s33, 0
    %p369 = por %p367, %p368
    %p370 = scmp.ne.s32.totalorder %s358, %s359
    %p371 = scmp.eq.s32.totalorder %s34, 1
    %p372 = por %p370, %p371
    %p374 = scmp.ne.s32.totalorder %s359, %s373
    %p375 = scmp.eq.s32.totalorder %s34, 0
    %p376 = por %p374, %p375
    %s378 = sadd.s32 %s377, 1
    %p381 = scmp.eq.s32.totalorder %s28, 1
    %p382 = scmp.ne.s32.totalorder %s377, %s379
    %p383 = scmp.eq.s32.totalorder %s28, 0
    %p384 = por %p382, %p383
    %p385 = scmp.ne.s32.totalorder %s377, %s379
    %p386 = scmp.eq.s32.totalorder %s33, 1
    %p387 = por %p385, %p386
    %p388 = scmp.ne.s32.totalorder %s379, %s380
    %p389 = scmp.eq.s32.totalorder %s33, 0
    %p390 = por %p388, %p389
    %p391 = scmp.ne.s32.totalorder %s379, %s380
    %p392 = scmp.eq.s32.totalorder %s34, 1
    %p393 = por %p391, %p392
    %p395 = scmp.ne.s32.totalorder %s380, %s394
    %p396 = scmp.eq.s32.totalorder %s34, 0
    %p397 = por %p395, %p396
    %s399 = sadd.s32 %s398, 1
    %p402 = scmp.eq.s32.totalorder %s28, 1
    %p403 = scmp.ne.s32.totalorder %s398, %s400
    %p404 = scmp.eq.s32.totalorder %s28, 0
    %p405 = por %p403, %p404
    %p406 = scmp.ne.s32.totalorder %s398, %s400
    %p407 = scmp.eq.s32.totalorder %s33, 1
    %p408 = por %p406, %p407
    %p409 = scmp.ne.s32.totalorder %s400, %s401
    %p410 = scmp.eq.s32.totalorder %s33, 0
    %p411 = por %p409, %p410
    %p412 = scmp.ne.s32.totalorder %s400, %s401
    %p413 = scmp.eq.s32.totalorder %s34, 1
    %p414 = por %p412, %p413
    %p416 = scmp.ne.s32.totalorder %s401, %s415
    %p417 = scmp.eq.s32.totalorder %s34, 0
    %p418 = por %p416, %p417
    %s420 = sadd.s32 %s419, 1
    %p423 = scmp.eq.s32.totalorder %s28, 1
    %p424 = scmp.ne.s32.totalorder %s419, %s421
    %p425 = scmp.eq.s32.totalorder %s28, 0
    %p426 = por %p424, %p425
    %p427 = scmp.ne.s32.totalorder %s419, %s421
    %p428 = scmp.eq.s32.totalorder %s33, 1
    %p429 = por %p427, %p428
    %p430 = scmp.ne.s32.totalorder %s421, %s422
    %p431 = scmp.eq.s32.totalorder %s33, 0
    %p432 = por %p430, %p431
    %p433 = scmp.ne.s32.totalorder %s421, %s422
    %p434 = scmp.eq.s32.totalorder %s34, 1
    %p435 = por %p433, %p434
    %p437 = scmp.ne.s32.totalorder %s422, %s436
    %p438 = scmp.eq.s32.totalorder %s34, 0
    %p439 = por %p437, %p438
    %s441 = sadd.s32 %s440, 1
    %p444 = scmp.eq.s32.totalorder %s28, 1
    %p445 = scmp.ne.s32.totalorder %s440, %s442
    %p446 = scmp.eq.s32.totalorder %s28, 0
    %p447 = por %p445, %p446
    %p448 = scmp.ne.s32.totalorder %s440, %s442
    %p449 = scmp.eq.s32.totalorder %s33, 1
    %p450 = por %p448, %p449
    %p451 = scmp.ne.s32.totalorder %s442, %s443
    %p452 = scmp.eq.s32.totalorder %s33, 0
    %p453 = por %p451, %p452
    %p454 = scmp.ne.s32.totalorder %s442, %s443
    %p455 = scmp.eq.s32.totalorder %s34, 1
    %p456 = por %p454, %p455
    %p458 = scmp.ne.s32.totalorder %s443, %s457
    %p459 = scmp.eq.s32.totalorder %s34, 0
    %p460 = por %p458, %p459
    %s462 = sadd.s32 %s461, 1
    %p465 = scmp.eq.s32.totalorder %s28, 1
    %p466 = scmp.ne.s32.totalorder %s461, %s463
    %p467 = scmp.eq.s32.totalorder %s28, 0
    %p468 = por %p466, %p467
    %p469 = scmp.ne.s32.totalorder %s461, %s463
    %p470 = scmp.eq.s32.totalorder %s33, 1
    %p471 = por %p469, %p470
    %p472 = scmp.ne.s32.totalorder %s463, %s464
    %p473 = scmp.eq.s32.totalorder %s33, 0
    %p474 = por %p472, %p473
    %p475 = scmp.ne.s32.totalorder %s463, %s464
    %p476 = scmp.eq.s32.totalorder %s34, 1
    %p477 = por %p475, %p476
    %p479 = scmp.ne.s32.totalorder %s464, %s478
    %p480 = scmp.eq.s32.totalorder %s34, 0
    %p481 = por %p479, %p480
    %s483 = sadd.s32 %s482, 1
    %p486 = scmp.eq.s32.totalorder %s28, 1
    %p487 = scmp.ne.s32.totalorder %s482, %s484
    %p488 = scmp.eq.s32.totalorder %s28, 0
    %p489 = por %p487, %p488
    %p490 = scmp.ne.s32.totalorder %s482, %s484
    %p491 = scmp.eq.s32.totalorder %s33, 1
    %p492 = por %p490, %p491
    %p493 = scmp.ne.s32.totalorder %s484, %s485
    %p494 = scmp.eq.s32.totalorder %s33, 0
    %p495 = por %p493, %p494
    %p496 = scmp.ne.s32.totalorder %s484, %s485
    %p497 = scmp.eq.s32.totalorder %s34, 1
    %p498 = por %p496, %p497
    %p500 = scmp.ne.s32.totalorder %s485, %s499
    %p501 = scmp.eq.s32.totalorder %s34, 0
    %p502 = por %p500, %p501
    %s503 = ssub.s32 %s28, %s35
    %p504 = scmp.eq.s32.totalorder %s503, 0
    %s506 = sadd.s32 %s505, 1
    %s507 = scalar_select %p504, %s505, %s506
    %p510 = pneg %p504
    %p511 = scmp.eq.s32.totalorder %s28, 1
    %p512 = por %p510, %p511
    %p513 = scmp.ne.s32.totalorder %s505, %s508
    %p514 = scmp.eq.s32.totalorder %s28, 0
    %p515 = por %p513, %p514
    %p516 = scmp.ne.s32.totalorder %s505, %s508
    %p517 = scmp.eq.s32.totalorder %s33, 1
    %p518 = por %p516, %p517
    %p519 = scmp.ne.s32.totalorder %s508, %s509
    %p520 = scmp.eq.s32.totalorder %s33, 0
    %p521 = por %p519, %p520
    %p522 = scmp.ne.s32.totalorder %s508, %s509
    %p523 = scmp.eq.s32.totalorder %s34, 1
    %p524 = por %p522, %p523
    %p526 = scmp.ne.s32.totalorder %s509, %s525
    %p527 = scmp.eq.s32.totalorder %s34, 0
    %p528 = por %p526, %p527
    %p529 = scmp.le.s32.totalorder 1, %s28
    %p530 = scmp.lt.s32.totalorder %s28, 3
    %p531 = pnand %p529, %p530
    %p532 = pneg %p531
    // Predicated region
    $region9: #{u_net_forward.1} parent=5 // pred_check
      _
    $region10: #{u_net_forward.1} parent=5 // pred_check_branch
      %534 = sbr.rel (%p531) target = $region12
    $region11: #{u_net_forward.1} parent=5 // pred_region
      %s535 = ssub.s32 %s28, 1
      // Predicated region
      $region13: #{u_net_forward.1} parent=11 // pred_check
        %p536 = pneg %p75
      $region14: #{u_net_forward.1} parent=11 // pred_check_branch
        %538 = sbr.rel (%p536) target = $region16
      $region15: #{u_net_forward.1} parent=11 // pred_region
        _
      $region16: #{u_net_forward.1} parent=11 // pred_fallthru
        _
      // Predicated region
      $region17: #{u_net_forward.1} parent=11 // pred_check
        %p539 = pneg %p96
      $region18: #{u_net_forward.1} parent=11 // pred_check_branch
        %541 = sbr.rel (%p539) target = $region20
      $region19: #{u_net_forward.1} parent=11 // pred_region
        _
      $region20: #{u_net_forward.1} parent=11 // pred_fallthru
        _
      // Predicated region
      $region21: #{u_net_forward.1} parent=11 // pred_check
        %p542 = pneg %p117
      $region22: #{u_net_forward.1} parent=11 // pred_check_branch
        %544 = sbr.rel (%p542) target = $region24
      $region23: #{u_net_forward.1} parent=11 // pred_region
        _
      $region24: #{u_net_forward.1} parent=11 // pred_fallthru
        _
      // Predicated region
      $region25: #{u_net_forward.1} parent=11 // pred_check
        %p545 = pneg %p138
      $region26: #{u_net_forward.1} parent=11 // pred_check_branch
        %547 = sbr.rel (%p545) target = $region28
      $region27: #{u_net_forward.1} parent=11 // pred_region
        _
      $region28: #{u_net_forward.1} parent=11 // pred_fallthru
        _
      // Predicated region
      $region29: #{u_net_forward.1} parent=11 // pred_check
        %p548 = pneg %p159
      $region30: #{u_net_forward.1} parent=11 // pred_check_branch
        %550 = sbr.rel (%p548) target = $region32
      $region31: #{u_net_forward.1} parent=11 // pred_region
        _
      $region32: #{u_net_forward.1} parent=11 // pred_fallthru
        _
      // Predicated region
      $region33: #{u_net_forward.1} parent=11 // pred_check
        %p551 = pneg %p180
      $region34: #{u_net_forward.1} parent=11 // pred_check_branch
        %553 = sbr.rel (%p551) target = $region36
      $region35: #{u_net_forward.1} parent=11 // pred_region
        _
      $region36: #{u_net_forward.1} parent=11 // pred_fallthru
        _
      // Predicated region
      $region37: #{u_net_forward.1} parent=11 // pred_check
        %p554 = pneg %p201
      $region38: #{u_net_forward.1} parent=11 // pred_check_branch
        %556 = sbr.rel (%p554) target = $region40
      $region39: #{u_net_forward.1} parent=11 // pred_region
        _
      $region40: #{u_net_forward.1} parent=11 // pred_fallthru
        _
      // Predicated region
      $region41: #{u_net_forward.1} parent=11 // pred_check
        %p557 = pneg %p222
      $region42: #{u_net_forward.1} parent=11 // pred_check_branch
        %559 = sbr.rel (%p557) target = $region44
      $region43: #{u_net_forward.1} parent=11 // pred_region
        _
      $region44: #{u_net_forward.1} parent=11 // pred_fallthru
        _
      // Predicated region
      $region45: #{u_net_forward.1} parent=11 // pred_check
        %p560 = pneg %p243
      $region46: #{u_net_forward.1} parent=11 // pred_check_branch
        %562 = sbr.rel (%p560) target = $region48
      $region47: #{u_net_forward.1} parent=11 // pred_region
        _
      $region48: #{u_net_forward.1} parent=11 // pred_fallthru
        _
      // Predicated region
      $region49: #{u_net_forward.1} parent=11 // pred_check
        %p563 = pneg %p264
      $region50: #{u_net_forward.1} parent=11 // pred_check_branch
        %565 = sbr.rel (%p563) target = $region52
      $region51: #{u_net_forward.1} parent=11 // pred_region
        _
      $region52: #{u_net_forward.1} parent=11 // pred_fallthru
        _
      // Predicated region
      $region53: #{u_net_forward.1} parent=11 // pred_check
        %p566 = pneg %p285
      $region54: #{u_net_forward.1} parent=11 // pred_check_branch
        %568 = sbr.rel (%p566) target = $region56
      $region55: #{u_net_forward.1} parent=11 // pred_region
        _
      $region56: #{u_net_forward.1} parent=11 // pred_fallthru
        _
      // Predicated region
      $region57: #{u_net_forward.1} parent=11 // pred_check
        %p569 = pneg %p306
      $region58: #{u_net_forward.1} parent=11 // pred_check_branch
        %571 = sbr.rel (%p569) target = $region60
      $region59: #{u_net_forward.1} parent=11 // pred_region
        _
      $region60: #{u_net_forward.1} parent=11 // pred_fallthru
        _
      // Predicated region
      $region61: #{u_net_forward.1} parent=11 // pred_check
        %p572 = pneg %p327
      $region62: #{u_net_forward.1} parent=11 // pred_check_branch
        %574 = sbr.rel (%p572) target = $region64
      $region63: #{u_net_forward.1} parent=11 // pred_region
        _
      $region64: #{u_net_forward.1} parent=11 // pred_fallthru
        _
      // Predicated region
      $region65: #{u_net_forward.1} parent=11 // pred_check
        %p575 = pneg %p348
      $region66: #{u_net_forward.1} parent=11 // pred_check_branch
        %577 = sbr.rel (%p575) target = $region68
      $region67: #{u_net_forward.1} parent=11 // pred_region
        _
      $region68: #{u_net_forward.1} parent=11 // pred_fallthru
        _
      // Predicated region
      $region69: #{u_net_forward.1} parent=11 // pred_check
        %p578 = pneg %p369
      $region70: #{u_net_forward.1} parent=11 // pred_check_branch
        %580 = sbr.rel (%p578) target = $region72
      $region71: #{u_net_forward.1} parent=11 // pred_region
        _
      $region72: #{u_net_forward.1} parent=11 // pred_fallthru
        _
      // Predicated region
      $region73: #{u_net_forward.1} parent=11 // pred_check
        %p581 = pneg %p390
      $region74: #{u_net_forward.1} parent=11 // pred_check_branch
        %583 = sbr.rel (%p581) target = $region76
      $region75: #{u_net_forward.1} parent=11 // pred_region
        _
      $region76: #{u_net_forward.1} parent=11 // pred_fallthru
        _
      // Predicated region
      $region77: #{u_net_forward.1} parent=11 // pred_check
        %p584 = pneg %p411
      $region78: #{u_net_forward.1} parent=11 // pred_check_branch
        %586 = sbr.rel (%p584) target = $region80
      $region79: #{u_net_forward.1} parent=11 // pred_region
        _
      $region80: #{u_net_forward.1} parent=11 // pred_fallthru
        _
      // Predicated region
      $region81: #{u_net_forward.1} parent=11 // pred_check
        %p587 = pneg %p432
      $region82: #{u_net_forward.1} parent=11 // pred_check_branch
        %589 = sbr.rel (%p587) target = $region84
      $region83: #{u_net_forward.1} parent=11 // pred_region
        _
      $region84: #{u_net_forward.1} parent=11 // pred_fallthru
        _
      // Predicated region
      $region85: #{u_net_forward.1} parent=11 // pred_check
        %p590 = pneg %p453
      $region86: #{u_net_forward.1} parent=11 // pred_check_branch
        %592 = sbr.rel (%p590) target = $region88
      $region87: #{u_net_forward.1} parent=11 // pred_region
        _
      $region88: #{u_net_forward.1} parent=11 // pred_fallthru
        _
      // Predicated region
      $region89: #{u_net_forward.1} parent=11 // pred_check
        %p593 = pneg %p474
      $region90: #{u_net_forward.1} parent=11 // pred_check_branch
        %595 = sbr.rel (%p593) target = $region92
      $region91: #{u_net_forward.1} parent=11 // pred_region
        _
      $region92: #{u_net_forward.1} parent=11 // pred_fallthru
        _
      // Predicated region
      $region93: #{u_net_forward.1} parent=11 // pred_check
        %p596 = pneg %p495
      $region94: #{u_net_forward.1} parent=11 // pred_check_branch
        %598 = sbr.rel (%p596) target = $region96
      $region95: #{u_net_forward.1} parent=11 // pred_region
        _
      $region96: #{u_net_forward.1} parent=11 // pred_fallthru
        _
    $region12: #{u_net_forward.1} parent=5 // pred_fallthru
      _
    %p599 = scmp.lt.s32.totalorder %s28, 2
    // Predicated region
    $region97: #{u_net_forward.1} parent=5 // pred_check
      %p600 = pneg %p599
    $region98: #{u_net_forward.1} parent=5 // pred_check_branch
      %602 = sbr.rel (%p600) target = $region100
    $region99: #{u_net_forward.1} parent=5 // pred_region
      // Predicated region
      $region101: #{u_net_forward.1} parent=99 // pred_check
        %p603 = pneg %p48
      $region102: #{u_net_forward.1} parent=99 // pred_check_branch
        %605 = sbr.rel (%p603) target = $region104
      $region103: #{u_net_forward.1} parent=99 // pred_region
        %p606 = scmp.lt.s32.totalorder %s28, 1
        %s607 = scalar_select %p606, %s28, 1
        %s608 = smul.addr %s607, 2
        %s609 = smul.addr %s608, 8
        %s610 = scalar_lea.vmem %s0, %s609
      $region104: #{u_net_forward.1} parent=99 // pred_fallthru
        _
    $region100: #{u_net_forward.1} parent=5 // pred_fallthru
      _
    %p611 = scmp.le.s32.totalorder 1, %s28
    %p612 = scmp.lt.s32.totalorder %s28, 3
    %p613 = pnand %p611, %p612
    %p614 = pneg %p613
    // Predicated region
    $region105: #{u_net_forward.1} parent=5 // pred_check
      _
    $region106: #{u_net_forward.1} parent=5 // pred_check_branch
      %616 = sbr.rel (%p613) target = $region108
    $region107: #{u_net_forward.1} parent=5 // pred_region
      %s617 = ssub.s32 %s28, 1
      %p618 = scmp.lt.s32.totalorder %s33, 1
      %s619 = scalar_select %p618, %s33, 1
      %s620 = smul.addr %s619, 2
      %s621 = smul.addr %s620, 8
      %s622 = scalar_lea.vmem %s0, %s621
      %p623 = pneg %p54
      %p624 = pneg %p51
      %p625 = pneg %p75
      %p626 = pneg %p72
      %p627 = pneg %p96
      %p628 = pneg %p93
      %p629 = pneg %p117
      %p630 = pneg %p114
      %p631 = pneg %p138
      %p632 = pneg %p135
      %p633 = pneg %p159
      %p634 = pneg %p156
      %p635 = pneg %p180
      %p636 = pneg %p177
      %p637 = pneg %p201
      %p638 = pneg %p198
      %p639 = pneg %p222
      %p640 = pneg %p219
      %p641 = pneg %p243
      %p642 = pneg %p240
      %p643 = pneg %p264
      %p644 = pneg %p261
      %p645 = pneg %p285
      %p646 = pneg %p282
      %p647 = pneg %p306
      %p648 = pneg %p303
      %p649 = pneg %p327
      %p650 = pneg %p324
      %p651 = pneg %p348
      %p652 = pneg %p345
      %p653 = pneg %p369
      %p654 = pneg %p366
      %p655 = pneg %p390
      %p656 = pneg %p387
      %p657 = pneg %p411
      %p658 = pneg %p408
      %p659 = pneg %p432
      %p660 = pneg %p429
      %p661 = pneg %p453
      %p662 = pneg %p450
      %p663 = pneg %p474
      %p664 = pneg %p471
      %p665 = pneg %p495
      %p666 = pneg %p492
      %p667 = pneg %p521
      %p668 = pneg %p518
      %p669 = scmp.lt.s32.totalorder %s33, 1
      %s670 = scalar_select %p669, %s33, 1
      %s671 = smul.addr %s670, 8
      %s672 = scalar_lea.vmem %s22, %s671
      %p673 = scmp.lt.s32.totalorder %s33, 1
      %s674 = scalar_select %p673, %s33, 1
      %s675 = smul.addr %s674, 2
      %s676 = smul.addr %s675, 8
      %s677 = scalar_lea.vmem %s0, %s676
      %p678 = scmp.lt.s32.totalorder %s33, 1
      %s679 = scalar_select %p678, %s33, 1
      %s680 = smul.addr %s679, 8
      %s681 = scalar_lea.vmem %s22, %s680
      %v682 = vld [vmem:[%s677] sm:$0xff]
      %v683 = vld [vmem:[%s677 + $0x8] sm:$0xff]
      %vm686 = vcmask 1040384
      %v687 = vrot.slane %v682, 7
      %v688 = vrot.slane %v683, 7
      %v689 = vsel %vm686, %v687, %v688
      %v693 = vsel %vm686, 0.0, %v687
      %v694 = vsel %vm686, %v688, 0.0
      %vm695 = vcmask 523264
      %696 = vst.msk [vmem:[#allocation2] sm:$0xff] %vm695, %v693
      %697 = vst.msk [vmem:[#allocation2 + $0x8] sm:$0xff] %vm695, %v689
      %vm698 = vcmask 517120
      %699 = vst.msk [vmem:[#allocation2 + $0x10] sm:$0x3] %vm698, %v694
      %v700 = vld [vmem:[#allocation2] ss:$2 sm:$0xff]
      %s701 = scalar_lea.vmem [#allocation2], 1
      %v702 = vld [vmem:[%s701] ss:$2 sm:$0xff]
      %s703 = scalar_lea.vmem [#allocation2], 2
      %v704 = vld [vmem:[%s703] ss:$2 sm:$0xff]
      %706 = vrot.lane.b32.xlu0 %v702, 64
      %v707 = vpop.permute.xlu0 %706
      %v709 = vsel %vm695, %v700, %v707
      %v710 = vld [vmem:[%s1] sm:$0xff]
      %v711 = vld [vmem:[%s1 + $0x8] sm:$0xff]
      %v712 = vld [vmem:[%s1 + $0x10] sm:$0xff]
      %v713 = vld [vmem:[%s1 + $0x18] sm:$0xff]
      %v714 = vld [vmem:[%s1 + $0x20] sm:$0xff]
      %v715 = vld [vmem:[%s1 + $0x28] sm:$0xff]
      %v716 = vld [vmem:[%s1 + $0x30] sm:$0xff]
      %v717 = vld [vmem:[%s1 + $0x38] sm:$0xff]
      %v718 = vld [vmem:[%s1 + $0x40] sm:$0xff]
      %v719 = vld [vmem:[%s1 + $0x48] sm:$0xff]
      %v720 = vld [vmem:[%s1 + $0x50] sm:$0xff]
      %v721 = vld [vmem:[%s1 + $0x58] sm:$0xff]
      %v722 = vld [vmem:[%s1 + $0x60] sm:$0xff]
      %v723 = vld [vmem:[%s1 + $0x68] sm:$0xff]
      %v724 = vld [vmem:[%s1 + $0x70] sm:$0xff]
      %v725 = vld [vmem:[%s1 + $0x78] sm:$0xff]
      %v726 = vld [vmem:[%s1 + $0x80] sm:$0xff]
      %v727 = vld [vmem:[%s1 + $0x88] sm:$0xff]
      %v728 = vld [vmem:[%s1 + $0x90] sm:$0xff]
      %v729 = vld [vmem:[%s1 + $0x98] sm:$0xff]
      %v730 = vld [vmem:[%s1 + $0xa0] sm:$0xff]
      %v731 = vld [vmem:[%s1 + $0xa8] sm:$0xff]
      %v732 = vld [vmem:[%s1 + $0xb0] sm:$0xff]
      %v733 = vld [vmem:[%s1 + $0xb8] sm:$0xff]
      %v734 = vld [vmem:[%s2] sm:$0x1]
      %v736 = vlaneseq
      %v737 = vshrl.u32 %v736, 7
      %v738 = vsub.s32 0, %v737
      %v739 = vrot.slane %v734, %v738
      %v742 = vsel %vm695, %v704, 0
      %744 = vmatprep.subr.mxu0 0.0
      %745 = vmatpush1.msra.mxu0 %v725
      %746 = vmatprep.subr.mxu0 0.0
      %747 = vmatpush1.msra.mxu0 %v724
      %748 = vmatprep.subr.mxu0 0.0
      %749 = vmatpush1.msra.mxu0 %v723
      %750 = vmatprep.subr.mxu0 0.0
      %751 = vmatpush1.msra.mxu0 %v722
      %752 = vmatprep.subr.mxu0 0.0
      %753 = vmatpush1.msra.mxu0 %v721
      %754 = vmatprep.subr.mxu0 0.0
      %755 = vmatpush1.msra.mxu0 %v720
      %756 = vmatprep.subr.mxu0 0.0
      %757 = vmatpush1.msra.mxu0 %v719
      %758 = vmatprep.subr.mxu0 0.0
      %759 = vmatpush1.msra.mxu0 %v718
      %760 = vmatprep.subr.mxu0 0.0
      %761 = vmatpush1.msra.mxu0 %v717
      %762 = vmatprep.subr.mxu0 0.0
      %763 = vmatpush1.msra.mxu0 %v716
      %764 = vmatprep.subr.mxu0 0.0
      %765 = vmatpush1.msra.mxu0 %v715
      %766 = vmatprep.subr.mxu0 0.0
      %767 = vmatpush1.msra.mxu0 %v714
      %768 = vmatprep.subr.mxu0 0.0
      %769 = vmatpush1.msra.mxu0 %v713
      %770 = vmatprep.subr.mxu0 0.0
      %771 = vmatpush1.msra.mxu0 %v712
      %772 = vmatprep.subr.mxu0 0.0
      %773 = vmatpush1.msra.mxu0 %v711
      %774 = vmatprep.subr.mxu0 0.0
      %775 = vmatpush1.msra.mxu0 %v710
      %776 = vmatprep.subr.mxu0 0.0
      %777 = vmatpush2.msra.mxu0 0.0
      %778 = vmatprep.subr.mxu0 0.0
      %779 = vmatpush2.msra.mxu0 0.0
      %780 = vmatprep.subr.mxu0 0.0
      %781 = vmatpush2.msra.mxu0 0.0
      %782 = vmatprep.subr.mxu0 0.0
      %783 = vmatpush2.msra.mxu0 0.0
      %784 = vmatprep.subr.mxu0 0.0
      %785 = vmatpush2.msra.mxu0 0.0
      %786 = vmatprep.subr.mxu0 0.0
      %787 = vmatpush2.msra.mxu0 0.0
      %788 = vmatprep.subr.mxu0 0.0
      %789 = vmatpush2.msra.mxu0 0.0
      %790 = vmatprep.subr.mxu0 0.0
      %791 = vmatpush2.msra.mxu0 0.0
      %792 = vmatprep.subr.mxu0 0.0
      %793 = vmatpush2.msra.mxu0 %v733
      %794 = vmatprep.subr.mxu0 0.0
      %795 = vmatpush2.msra.mxu0 %v732
      %796 = vmatprep.subr.mxu0 0.0
      %797 = vmatpush2.msra.mxu0 %v731
      %798 = vmatprep.subr.mxu0 0.0
      %799 = vmatpush2.msra.mxu0 %v730
      %800 = vmatprep.subr.mxu0 0.0
      %801 = vmatpush2.msra.mxu0 %v729
      %802 = vmatprep.subr.mxu0 0.0
      %803 = vmatpush2.msra.mxu0 %v728
      %804 = vmatprep.subr.mxu0 0.0
      %805 = vmatpush2.msra.mxu0 %v727
      %806 = vmatprep.subr.mxu0 0.0
      %807 = vmatpush2.msra.mxu0 %v726
      %808 = vmatprep.mubr.f32.mxu0 %v742
      %809 = vmatmul.mubr.f32.gmra.mxu0 %v709
      %v810 = vpop.f32.mrf.mxu0
      %v811 = vadd.f32 %v739, %v810
      %v812 = vpop.f32.mrf.mxu0
      %813 = vdwg.mxu0
      %v814 = vmul.f32 %v811, 0.1
      %v815 = vmax.f32 %v811, %v814
      %v817 = vrot.slane %v815, 7
      %v819 = vsel %vm686, 0.0, %v817
      %v820 = vsel %vm686, %v817, 0.0
      %vm821 = vcmask 261120
      %822 = vst.msk [vmem:[#allocation3] sm:$0xff] %vm821, %v819
      %vm823 = vcmask 254976
      %824 = vst.msk [vmem:[#allocation3 + $0x8] sm:$0x3] %vm823, %v820
      %v825 = vld [vmem:[#allocation3] ss:$2 sm:$0xf]
      %s826 = scalar_lea.vmem [#allocation3], 1
      %v827 = vld [vmem:[%s826] ss:$2 sm:$0xf]
      %s828 = scalar_lea.vmem [#allocation3], 2
      %v829 = vld [vmem:[%s828] ss:$2 sm:$0xf]
      %831 = vrot.lane.b32.xlu0 %v827, 32
      %v832 = vpop.permute.xlu0 %831
      %835 = vrot.lane.b32.xlu0 %v829, 64
      %v836 = vpop.permute.xlu0 %835
      %v838 = vsel %vm821, %v825, %v832
      %v839 = vsel %vm695, %v838, %v836
      %v840 = vld [vmem:[%s3] sm:$0xff]
      %v841 = vld [vmem:[%s3 + $0x8] sm:$0xff]
      %v842 = vld [vmem:[%s3 + $0x10] sm:$0xff]
      %v843 = vld [vmem:[%s3 + $0x18] sm:$0xff]
      %v844 = vld [vmem:[%s3 + $0x20] sm:$0xff]
      %v845 = vld [vmem:[%s3 + $0x28] sm:$0xff]
      %v846 = vld [vmem:[%s3 + $0x30] sm:$0xff]
      %v847 = vld [vmem:[%s3 + $0x38] sm:$0xff]
      %v848 = vld [vmem:[%s3 + $0x40] sm:$0xff]
      %v849 = vld [vmem:[%s3 + $0x48] sm:$0xff]
      %v850 = vld [vmem:[%s3 + $0x50] sm:$0xff]
      %v851 = vld [vmem:[%s3 + $0x58] sm:$0xff]
      %v852 = vld [vmem:[%s4] sm:$0x1]
      %v854 = vlaneseq
      %v855 = vshrl.u32 %v854, 7
      %v856 = vsub.s32 0, %v855
      %v857 = vrot.slane %v852, %v856
      %vm859 = vcmask 785408
      %v861 = vsel %vm859, %v839, 0
      %863 = vmatprep.subr.mxu0 0.0
      %864 = vmatpush1.msra.mxu0 0.0
      %865 = vmatprep.subr.mxu0 0.0
      %866 = vmatpush1.msra.mxu0 0.0
      %867 = vmatprep.subr.mxu0 0.0
      %868 = vmatpush1.msra.mxu0 0.0
      %869 = vmatprep.subr.mxu0 0.0
      %870 = vmatpush1.msra.mxu0 0.0
      %871 = vmatprep.subr.mxu0 0.0
      %872 = vmatpush1.msra.mxu0 %v851
      %873 = vmatprep.subr.mxu0 0.0
      %874 = vmatpush1.msra.mxu0 %v850
      %875 = vmatprep.subr.mxu0 0.0
      %876 = vmatpush1.msra.mxu0 %v849
      %877 = vmatprep.subr.mxu0 0.0
      %878 = vmatpush1.msra.mxu0 %v848
      %879 = vmatprep.subr.mxu0 0.0
      %880 = vmatpush1.msra.mxu0 %v847
      %881 = vmatprep.subr.mxu0 0.0
      %882 = vmatpush1.msra.mxu0 %v846
      %883 = vmatprep.subr.mxu0 0.0
      %884 = vmatpush1.msra.mxu0 %v845
      %885 = vmatprep.subr.mxu0 0.0
      %886 = vmatpush1.msra.mxu0 %v844
      %887 = vmatprep.subr.mxu0 0.0
      %888 = vmatpush1.msra.mxu0 %v843
      %889 = vmatprep.subr.mxu0 0.0
      %890 = vmatpush1.msra.mxu0 %v842
      %891 = vmatprep.subr.mxu0 0.0
      %892 = vmatpush1.msra.mxu0 %v841
      %893 = vmatprep.subr.mxu0 0.0
      %894 = vmatpush1.msra.mxu0 %v840
      %895 = vmatprep.subr.mxu0 0.0
      %896 = vmatpush2.msra.mxu0 0.0
      %897 = vmatprep.subr.mxu0 0.0
      %898 = vmatpush2.msra.mxu0 0.0
      %899 = vmatprep.subr.mxu0 0.0
      %900 = vmatpush2.msra.mxu0 0.0
      %901 = vmatprep.subr.mxu0 0.0
      %902 = vmatpush2.msra.mxu0 0.0
      %903 = vmatprep.subr.mxu0 0.0
      %904 = vmatpush2.msra.mxu0 0.0
      %905 = vmatprep.subr.mxu0 0.0
      %906 = vmatpush2.msra.mxu0 0.0
      %907 = vmatprep.subr.mxu0 0.0
      %908 = vmatpush2.msra.mxu0 0.0
      %909 = vmatprep.subr.mxu0 0.0
      %910 = vmatpush2.msra.mxu0 0.0
      %911 = vmatprep.subr.mxu0 0.0
      %912 = vmatpush2.msra.mxu0 0.0
      %913 = vmatprep.subr.mxu0 0.0
      %914 = vmatpush2.msra.mxu0 0.0
      %915 = vmatprep.subr.mxu0 0.0
      %916 = vmatpush2.msra.mxu0 0.0
      %917 = vmatprep.subr.mxu0 0.0
      %918 = vmatpush2.msra.mxu0 0.0
      %919 = vmatprep.subr.mxu0 0.0
      %920 = vmatpush2.msra.mxu0 0.0
      %921 = vmatprep.subr.mxu0 0.0
      %922 = vmatpush2.msra.mxu0 0.0
      %923 = vmatprep.subr.mxu0 0.0
      %924 = vmatpush2.msra.mxu0 0.0
      %925 = vmatprep.subr.mxu0 0.0
      %926 = vmatpush2.msra.mxu0 0.0
      %927 = vmatprep.mubr.f32.mxu0 0.0
      %928 = vmatmul.mubr.f32.gmra.mxu0 %v861
      %v929 = vpop.f32.mrf.mxu0
      %v930 = vadd.f32 %v857, %v929
      %v931 = vpop.f32.mrf.mxu0
      %932 = vdwg.mxu0
      %v933 = vmul.f32 %v930, 0.1
      %v934 = vmax.f32 %v930, %v933
      %v936 = vrot.slane %v934, 7
      %v938 = vsel %vm686, 0.0, %v936
      %vm939 = vcmask 1044480
      %v940 = vsel %vm939, %v938, 0.0
      %vm941 = vcmask 128000
      %942 = vst.msk [vmem:[#allocation4] sm:$0x3f] %vm941, %v940
      %v943 = vld [vmem:[#allocation4] sm:$0xf]
      %v944 = vld [vmem:[#allocation4 + $0x1] sm:$0xf]
      %v945 = vld [vmem:[#allocation4 + $0x2] sm:$0xf]
      %947 = vrot.lane.b32.xlu0 %v944, 16
      %v948 = vpop.permute.xlu0 %947
      %951 = vrot.lane.b32.xlu0 %v945, 32
      %v952 = vpop.permute.xlu0 %951
      %vm954 = vcmask 130048
      %v955 = vsel %vm954, %v943, %v948
      %v956 = vsel %vm821, %v955, %v952
      %v957 = vld [vmem:[%s5] sm:$0xff]
      %v958 = vld [vmem:[%s5 + $0x8] sm:$0xff]
      %v959 = vld [vmem:[%s5 + $0x10] sm:$0xff]
      %v960 = vld [vmem:[%s5 + $0x18] sm:$0xff]
      %v961 = vld [vmem:[%s5 + $0x20] sm:$0xff]
      %v962 = vld [vmem:[%s5 + $0x28] sm:$0xff]
      %v963 = vld [vmem:[%s6] sm:$0x1]
      %v965 = vlaneseq
      %v966 = vshrl.u32 %v965, 7
      %v967 = vsub.s32 0, %v966
      %v968 = vrot.slane %v963, %v967
      %vm970 = vcmask 392192
      %v972 = vsel %vm970, %v956, 0
      %974 = vmatprep.subr.mxu0 0.0
      %975 = vmatpush1.msra.mxu0 0.0
      %976 = vmatprep.subr.mxu0 0.0
      %977 = vmatpush1.msra.mxu0 0.0
      %978 = vmatprep.subr.mxu0 0.0
      %979 = vmatpush1.msra.mxu0 0.0
      %980 = vmatprep.subr.mxu0 0.0
      %981 = vmatpush1.msra.mxu0 0.0
      %982 = vmatprep.subr.mxu0 0.0
      %983 = vmatpush1.msra.mxu0 0.0
      %984 = vmatprep.subr.mxu0 0.0
      %985 = vmatpush1.msra.mxu0 0.0
      %986 = vmatprep.subr.mxu0 0.0
      %987 = vmatpush1.msra.mxu0 0.0
      %988 = vmatprep.subr.mxu0 0.0
      %989 = vmatpush1.msra.mxu0 0.0
      %990 = vmatprep.subr.mxu0 0.0
      %991 = vmatpush1.msra.mxu0 0.0
      %992 = vmatprep.subr.mxu0 0.0
      %993 = vmatpush1.msra.mxu0 0.0
      %994 = vmatprep.subr.mxu0 0.0
      %995 = vmatpush1.msra.mxu0 %v962
      %996 = vmatprep.subr.mxu0 0.0
      %997 = vmatpush1.msra.mxu0 %v961
      %998 = vmatprep.subr.mxu0 0.0
      %999 = vmatpush1.msra.mxu0 %v960
      %1000 = vmatprep.subr.mxu0 0.0
      %1001 = vmatpush1.msra.mxu0 %v959
      %1002 = vmatprep.subr.mxu0 0.0
      %1003 = vmatpush1.msra.mxu0 %v958
      %1004 = vmatprep.subr.mxu0 0.0
      %1005 = vmatpush1.msra.mxu0 %v957
      %1006 = vmatprep.subr.mxu0 0.0
      %1007 = vmatpush2.msra.mxu0 0.0
      %1008 = vmatprep.subr.mxu0 0.0
      %1009 = vmatpush2.msra.mxu0 0.0
      %1010 = vmatprep.subr.mxu0 0.0
      %1011 = vmatpush2.msra.mxu0 0.0
      %1012 = vmatprep.subr.mxu0 0.0
      %1013 = vmatpush2.msra.mxu0 0.0
      %1014 = vmatprep.subr.mxu0 0.0
      %1015 = vmatpush2.msra.mxu0 0.0
      %1016 = vmatprep.subr.mxu0 0.0
      %1017 = vmatpush2.msra.mxu0 0.0
      %1018 = vmatprep.subr.mxu0 0.0
      %1019 = vmatpush2.msra.mxu0 0.0
      %1020 = vmatprep.subr.mxu0 0.0
      %1021 = vmatpush2.msra.mxu0 0.0
      %1022 = vmatprep.subr.mxu0 0.0
      %1023 = vmatpush2.msra.mxu0 0.0
      %1024 = vmatprep.subr.mxu0 0.0
      %1025 = vmatpush2.msra.mxu0 0.0
      %1026 = vmatprep.subr.mxu0 0.0
      %1027 = vmatpush2.msra.mxu0 0.0
      %1028 = vmatprep.subr.mxu0 0.0
      %1029 = vmatpush2.msra.mxu0 0.0
      %1030 = vmatprep.subr.mxu0 0.0
      %1031 = vmatpush2.msra.mxu0 0.0
      %1032 = vmatprep.subr.mxu0 0.0
      %1033 = vmatpush2.msra.mxu0 0.0
      %1034 = vmatprep.subr.mxu0 0.0
      %1035 = vmatpush2.msra.mxu0 0.0
      %1036 = vmatprep.subr.mxu0 0.0
      %1037 = vmatpush2.msra.mxu0 0.0
      %1038 = vmatprep.mubr.f32.mxu0 0.0
      %1039 = vmatmul.mubr.f32.gmra.mxu0 %v972
      %v1040 = vpop.f32.mrf.mxu0
      %v1041 = vadd.f32 %v968, %v1040
      %v1042 = vpop.f32.mrf.mxu0
      %1043 = vdwg.mxu0
      %v1044 = vmul.f32 %v1041, 0.1
      %v1045 = vmax.f32 %v1041, %v1044
      %v1047 = vrot.slane %v1045, 7
      %v1049 = vsel %vm686, 0.0, %v1047
      %v1050 = vsel %vm939, %v1049, 0.0
      %1051 = vst.msk [vmem:[#allocation5] sm:$0x3f] %vm941, %v1050
      %v1052 = vld [vmem:[#allocation5] ss:$2 sm:$0x3]
      %s1053 = scalar_lea.vmem [#allocation5], 1
      %v1054 = vld [vmem:[%s1053] ss:$2 sm:$0x3]
      %s1055 = scalar_lea.vmem [#allocation5], 2
      %v1056 = vld [vmem:[%s1055] ss:$2 sm:$0x3]
      %1058 = vrot.lane.b32.xlu0 %v1054, 16
      %v1059 = vpop.permute.xlu0 %1058
      %1062 = vrot.lane.b32.xlu0 %v1056, 32
      %v1063 = vpop.permute.xlu0 %1062
      %v1065 = vsel %vm954, %v1052, %v1059
      %v1066 = vsel %vm821, %v1065, %v1063
      %v1067 = vld [vmem:[%s7] sm:$0xff]
      %v1068 = vld [vmem:[%s7 + $0x8] sm:$0xff]
      %v1069 = vld [vmem:[%s7 + $0x10] sm:$0xff]
      %v1070 = vld [vmem:[%s7 + $0x18] sm:$0xff]
      %v1071 = vld [vmem:[%s7 + $0x20] sm:$0xff]
      %v1072 = vld [vmem:[%s7 + $0x28] sm:$0xff]
      %v1073 = vld [vmem:[%s8] sm:$0x1]
      %v1075 = vlaneseq
      %v1076 = vshrl.u32 %v1075, 7
      %v1077 = vsub.s32 0, %v1076
      %v1078 = vrot.slane %v1073, %v1077
      %v1081 = vsel %vm970, %v1066, 0
      %1083 = vmatprep.subr.mxu0 0.0
      %1084 = vmatpush1.msra.mxu0 0.0
      %1085 = vmatprep.subr.mxu0 0.0
      %1086 = vmatpush1.msra.mxu0 0.0
      %1087 = vmatprep.subr.mxu0 0.0
      %1088 = vmatpush1.msra.mxu0 0.0
      %1089 = vmatprep.subr.mxu0 0.0
      %1090 = vmatpush1.msra.mxu0 0.0
      %1091 = vmatprep.subr.mxu0 0.0
      %1092 = vmatpush1.msra.mxu0 0.0
      %1093 = vmatprep.subr.mxu0 0.0
      %1094 = vmatpush1.msra.mxu0 0.0
      %1095 = vmatprep.subr.mxu0 0.0
      %1096 = vmatpush1.msra.mxu0 0.0
      %1097 = vmatprep.subr.mxu0 0.0
      %1098 = vmatpush1.msra.mxu0 0.0
      %1099 = vmatprep.subr.mxu0 0.0
      %1100 = vmatpush1.msra.mxu0 0.0
      %1101 = vmatprep.subr.mxu0 0.0
      %1102 = vmatpush1.msra.mxu0 0.0
      %1103 = vmatprep.subr.mxu0 0.0
      %1104 = vmatpush1.msra.mxu0 %v1072
      %1105 = vmatprep.subr.mxu0 0.0
      %1106 = vmatpush1.msra.mxu0 %v1071
      %1107 = vmatprep.subr.mxu0 0.0
      %1108 = vmatpush1.msra.mxu0 %v1070
      %1109 = vmatprep.subr.mxu0 0.0
      %1110 = vmatpush1.msra.mxu0 %v1069
      %1111 = vmatprep.subr.mxu0 0.0
      %1112 = vmatpush1.msra.mxu0 %v1068
      %1113 = vmatprep.subr.mxu0 0.0
      %1114 = vmatpush1.msra.mxu0 %v1067
      %1115 = vmatprep.subr.mxu0 0.0
      %1116 = vmatpush2.msra.mxu0 0.0
      %1117 = vmatprep.subr.mxu0 0.0
      %1118 = vmatpush2.msra.mxu0 0.0
      %1119 = vmatprep.subr.mxu0 0.0
      %1120 = vmatpush2.msra.mxu0 0.0
      %1121 = vmatprep.subr.mxu0 0.0
      %1122 = vmatpush2.msra.mxu0 0.0
      %1123 = vmatprep.subr.mxu0 0.0
      %1124 = vmatpush2.msra.mxu0 0.0
      %1125 = vmatprep.subr.mxu0 0.0
      %1126 = vmatpush2.msra.mxu0 0.0
      %1127 = vmatprep.subr.mxu0 0.0
      %1128 = vmatpush2.msra.mxu0 0.0
      %1129 = vmatprep.subr.mxu0 0.0
      %1130 = vmatpush2.msra.mxu0 0.0
      %1131 = vmatprep.subr.mxu0 0.0
      %1132 = vmatpush2.msra.mxu0 0.0
      %1133 = vmatprep.subr.mxu0 0.0
      %1134 = vmatpush2.msra.mxu0 0.0
      %1135 = vmatprep.subr.mxu0 0.0
      %1136 = vmatpush2.msra.mxu0 0.0
      %1137 = vmatprep.subr.mxu0 0.0
      %1138 = vmatpush2.msra.mxu0 0.0
      %1139 = vmatprep.subr.mxu0 0.0
      %1140 = vmatpush2.msra.mxu0 0.0
      %1141 = vmatprep.subr.mxu0 0.0
      %1142 = vmatpush2.msra.mxu0 0.0
      %1143 = vmatprep.subr.mxu0 0.0
      %1144 = vmatpush2.msra.mxu0 0.0
      %1145 = vmatprep.subr.mxu0 0.0
      %1146 = vmatpush2.msra.mxu0 0.0
      %1147 = vmatprep.mubr.f32.mxu0 0.0
      %1148 = vmatmul.mubr.f32.gmra.mxu0 %v1081
      %v1149 = vpop.f32.mrf.mxu0
      %v1150 = vadd.f32 %v1078, %v1149
      %v1151 = vpop.f32.mrf.mxu0
      %1152 = vdwg.mxu0
      %v1153 = vmul.f32 %v1150, 0.1
      %v1154 = vmax.f32 %v1150, %v1153
      %v1156 = vrot.slane %v1154, 7
      %v1158 = vsel %vm686, 0.0, %v1156
      %vm1159 = vcmask 1042432
      %v1160 = vsel %vm1159, %v1158, 0.0
      %vm1161 = vcmask 60416
      %1162 = vst.msk [vmem:[#allocation6] sm:$0xf] %vm1161, %v1160
      %v1163 = vld [vmem:[#allocation6] sm:$0x3]
      %v1164 = vld [vmem:[#allocation6 + $0x1] sm:$0x3]
      %v1165 = vld [vmem:[#allocation6 + $0x2] sm:$0x3]
      %1167 = vrot.lane.b32.xlu0 %v1164, 8
      %v1168 = vpop.permute.xlu0 %1167
      %1171 = vrot.lane.b32.xlu0 %v1165, 16
      %v1172 = vpop.permute.xlu0 %1171
      %vm1174 = vcmask 64512
      %v1175 = vsel %vm1174, %v1163, %v1168
      %v1176 = vsel %vm954, %v1175, %v1172
      %v1177 = vld [vmem:[%s9] sm:$0xff]
      %v1178 = vld [vmem:[%s9 + $0x8] sm:$0xff]
      %v1179 = vld [vmem:[%s9 + $0x10] sm:$0xff]
      %v1180 = vld [vmem:[%s10] sm:$0x1]
      %v1182 = vlaneseq
      %v1183 = vshrl.u32 %v1182, 7
      %v1184 = vsub.s32 0, %v1183
      %v1185 = vrot.slane %v1180, %v1184
      %vm1187 = vcmask 195584
      %v1189 = vsel %vm1187, %v1176, 0
      %1191 = vmatprep.subr.mxu0 0.0
      %1192 = vmatpush1.msra.mxu0 0.0
      %1193 = vmatprep.subr.mxu0 0.0
      %1194 = vmatpush1.msra.mxu0 0.0
      %1195 = vmatprep.subr.mxu0 0.0
      %1196 = vmatpush1.msra.mxu0 0.0
      %1197 = vmatprep.subr.mxu0 0.0
      %1198 = vmatpush1.msra.mxu0 0.0
      %1199 = vmatprep.subr.mxu0 0.0
      %1200 = vmatpush1.msra.mxu0 0.0
      %1201 = vmatprep.subr.mxu0 0.0
      %1202 = vmatpush1.msra.mxu0 0.0
      %1203 = vmatprep.subr.mxu0 0.0
      %1204 = vmatpush1.msra.mxu0 0.0
      %1205 = vmatprep.subr.mxu0 0.0
      %1206 = vmatpush1.msra.mxu0 0.0
      %1207 = vmatprep.subr.mxu0 0.0
      %1208 = vmatpush1.msra.mxu0 0.0
      %1209 = vmatprep.subr.mxu0 0.0
      %1210 = vmatpush1.msra.mxu0 0.0
      %1211 = vmatprep.subr.mxu0 0.0
      %1212 = vmatpush1.msra.mxu0 0.0
      %1213 = vmatprep.subr.mxu0 0.0
      %1214 = vmatpush1.msra.mxu0 0.0
      %1215 = vmatprep.subr.mxu0 0.0
      %1216 = vmatpush1.msra.mxu0 0.0
      %1217 = vmatprep.subr.mxu0 0.0
      %1218 = vmatpush1.msra.mxu0 %v1179
      %1219 = vmatprep.subr.mxu0 0.0
      %1220 = vmatpush1.msra.mxu0 %v1178
      %1221 = vmatprep.subr.mxu0 0.0
      %1222 = vmatpush1.msra.mxu0 %v1177
      %1223 = vmatprep.subr.mxu0 0.0
      %1224 = vmatpush2.msra.mxu0 0.0
      %1225 = vmatprep.subr.mxu0 0.0
      %1226 = vmatpush2.msra.mxu0 0.0
      %1227 = vmatprep.subr.mxu0 0.0
      %1228 = vmatpush2.msra.mxu0 0.0
      %1229 = vmatprep.subr.mxu0 0.0
      %1230 = vmatpush2.msra.mxu0 0.0
      %1231 = vmatprep.subr.mxu0 0.0
      %1232 = vmatpush2.msra.mxu0 0.0
      %1233 = vmatprep.subr.mxu0 0.0
      %1234 = vmatpush2.msra.mxu0 0.0
      %1235 = vmatprep.subr.mxu0 0.0
      %1236 = vmatpush2.msra.mxu0 0.0
      %1237 = vmatprep.subr.mxu0 0.0
      %1238 = vmatpush2.msra.mxu0 0.0
      %1239 = vmatprep.subr.mxu0 0.0
      %1240 = vmatpush2.msra.mxu0 0.0
      %1241 = vmatprep.subr.mxu0 0.0
      %1242 = vmatpush2.msra.mxu0 0.0
      %1243 = vmatprep.subr.mxu0 0.0
      %1244 = vmatpush2.msra.mxu0 0.0
      %1245 = vmatprep.subr.mxu0 0.0
      %1246 = vmatpush2.msra.mxu0 0.0
      %1247 = vmatprep.subr.mxu0 0.0
      %1248 = vmatpush2.msra.mxu0 0.0
      %1249 = vmatprep.subr.mxu0 0.0
      %1250 = vmatpush2.msra.mxu0 0.0
      %1251 = vmatprep.subr.mxu0 0.0
      %1252 = vmatpush2.msra.mxu0 0.0
      %1253 = vmatprep.subr.mxu0 0.0
      %1254 = vmatpush2.msra.mxu0 0.0
      %1255 = vmatprep.mubr.f32.mxu0 0.0
      %1256 = vmatmul.mubr.f32.gmra.mxu0 %v1189
      %v1257 = vpop.f32.mrf.mxu0
      %v1258 = vadd.f32 %v1185, %v1257
      %v1259 = vpop.f32.mrf.mxu0
      %1260 = vdwg.mxu0
      %v1261 = vmul.f32 %v1258, 0.1
      %v1262 = vmax.f32 %v1258, %v1261
      %v1264 = vrot.slane %v1262, 7
      %v1266 = vsel %vm686, 0.0, %v1264
      %v1267 = vsel %vm1159, %v1266, 0.0
      %1268 = vst.msk [vmem:[#allocation7] sm:$0xf] %vm1161, %v1267
      %v1269 = vld [vmem:[#allocation7] sm:$0x3]
      %v1270 = vld [vmem:[#allocation7 + $0x1] sm:$0x3]
      %v1271 = vld [vmem:[#allocation7 + $0x2] sm:$0x3]
      %1273 = vrot.lane.b32.xlu0 %v1270, 8
      %v1274 = vpop.permute.xlu0 %1273
      %v1276 = vsel %vm1174, %v1269, %v1274
      %v1277 = vld [vmem:[%s11] sm:$0xff]
      %v1278 = vld [vmem:[%s11 + $0x8] sm:$0xff]
      %v1280 = vsel %vm954, %v1276, 0
      %1282 = vmatprep.subr.mxu0 0.0
      %1283 = vmatpush1.msra.mxu0 0.0
      %1284 = vmatprep.subr.mxu0 0.0
      %1285 = vmatpush1.msra.mxu0 0.0
      %1286 = vmatprep.subr.mxu0 0.0
      %1287 = vmatpush1.msra.mxu0 0.0
      %1288 = vmatprep.subr.mxu0 0.0
      %1289 = vmatpush1.msra.mxu0 0.0
      %1290 = vmatprep.subr.mxu0 0.0
      %1291 = vmatpush1.msra.mxu0 0.0
      %1292 = vmatprep.subr.mxu0 0.0
      %1293 = vmatpush1.msra.mxu0 0.0
      %1294 = vmatprep.subr.mxu0 0.0
      %1295 = vmatpush1.msra.mxu0 0.0
      %1296 = vmatprep.subr.mxu0 0.0
      %1297 = vmatpush1.msra.mxu0 0.0
      %1298 = vmatprep.subr.mxu0 0.0
      %1299 = vmatpush1.msra.mxu0 0.0
      %1300 = vmatprep.subr.mxu0 0.0
      %1301 = vmatpush1.msra.mxu0 0.0
      %1302 = vmatprep.subr.mxu0 0.0
      %1303 = vmatpush1.msra.mxu0 0.0
      %1304 = vmatprep.subr.mxu0 0.0
      %1305 = vmatpush1.msra.mxu0 0.0
      %1306 = vmatprep.subr.mxu0 0.0
      %1307 = vmatpush1.msra.mxu0 0.0
      %1308 = vmatprep.subr.mxu0 0.0
      %1309 = vmatpush1.msra.mxu0 0.0
      %1310 = vmatprep.subr.mxu0 0.0
      %1311 = vmatpush1.msra.mxu0 %v1278
      %1312 = vmatprep.subr.mxu0 0.0
      %1313 = vmatpush1.msra.mxu0 %v1277
      %1314 = vmatprep.subr.mxu0 0.0
      %1315 = vmatpush2.msra.mxu0 0.0
      %1316 = vmatprep.subr.mxu0 0.0
      %1317 = vmatpush2.msra.mxu0 0.0
      %1318 = vmatprep.subr.mxu0 0.0
      %1319 = vmatpush2.msra.mxu0 0.0
      %1320 = vmatprep.subr.mxu0 0.0
      %1321 = vmatpush2.msra.mxu0 0.0
      %1322 = vmatprep.subr.mxu0 0.0
      %1323 = vmatpush2.msra.mxu0 0.0
      %1324 = vmatprep.subr.mxu0 0.0
      %1325 = vmatpush2.msra.mxu0 0.0
      %1326 = vmatprep.subr.mxu0 0.0
      %1327 = vmatpush2.msra.mxu0 0.0
      %1328 = vmatprep.subr.mxu0 0.0
      %1329 = vmatpush2.msra.mxu0 0.0
      %1330 = vmatprep.subr.mxu0 0.0
      %1331 = vmatpush2.msra.mxu0 0.0
      %1332 = vmatprep.subr.mxu0 0.0
      %1333 = vmatpush2.msra.mxu0 0.0
      %1334 = vmatprep.subr.mxu0 0.0
      %1335 = vmatpush2.msra.mxu0 0.0
      %1336 = vmatprep.subr.mxu0 0.0
      %1337 = vmatpush2.msra.mxu0 0.0
      %1338 = vmatprep.subr.mxu0 0.0
      %1339 = vmatpush2.msra.mxu0 0.0
      %1340 = vmatprep.subr.mxu0 0.0
      %1341 = vmatpush2.msra.mxu0 0.0
      %1342 = vmatprep.subr.mxu0 0.0
      %1343 = vmatpush2.msra.mxu0 0.0
      %1344 = vmatprep.subr.mxu0 0.0
      %1345 = vmatpush2.msra.mxu0 0.0
      %1346 = vmatprep.mubr.f32.mxu0 0.0
      %1347 = vmatmul.mubr.f32.gmra.mxu0 %v1280
      %v1348 = vpop.f32.mrf.mxu0
      %v1349 = vadd.f32 0.0, %v1348
      %v1350 = vpop.f32.mrf.mxu0
      %1351 = vdwg.mxu0
      %1353 = vrot.lane.b32.xlu0 %v1271, 8
      %v1354 = vpop.permute.xlu0 %1353
      %v1356 = vsel %vm1174, %v1270, %v1354
      %v1357 = vld [vmem:[%s12] sm:$0xff]
      %v1358 = vld [vmem:[%s12 + $0x8] sm:$0xff]
      %v1360 = vsel %vm954, %v1356, 0
      %1362 = vmatprep.subr.mxu0 0.0
      %1363 = vmatpush1.msra.mxu0 0.0
      %1364 = vmatprep.subr.mxu0 0.0
      %1365 = vmatpush1.msra.mxu0 0.0
      %1366 = vmatprep.subr.mxu0 0.0
      %1367 = vmatpush1.msra.mxu0 0.0
      %1368 = vmatprep.subr.mxu0 0.0
      %1369 = vmatpush1.msra.mxu0 0.0
      %1370 = vmatprep.subr.mxu0 0.0
      %1371 = vmatpush1.msra.mxu0 0.0
      %1372 = vmatprep.subr.mxu0 0.0
      %1373 = vmatpush1.msra.mxu0 0.0
      %1374 = vmatprep.subr.mxu0 0.0
      %1375 = vmatpush1.msra.mxu0 0.0
      %1376 = vmatprep.subr.mxu0 0.0
      %1377 = vmatpush1.msra.mxu0 0.0
      %1378 = vmatprep.subr.mxu0 0.0
      %1379 = vmatpush1.msra.mxu0 0.0
      %1380 = vmatprep.subr.mxu0 0.0
      %1381 = vmatpush1.msra.mxu0 0.0
      %1382 = vmatprep.subr.mxu0 0.0
      %1383 = vmatpush1.msra.mxu0 0.0
      %1384 = vmatprep.subr.mxu0 0.0
      %1385 = vmatpush1.msra.mxu0 0.0
      %1386 = vmatprep.subr.mxu0 0.0
      %1387 = vmatpush1.msra.mxu0 0.0
      %1388 = vmatprep.subr.mxu0 0.0
      %1389 = vmatpush1.msra.mxu0 0.0
      %1390 = vmatprep.subr.mxu0 0.0
      %1391 = vmatpush1.msra.mxu0 %v1358
      %1392 = vmatprep.subr.mxu0 0.0
      %1393 = vmatpush1.msra.mxu0 %v1357
      %1394 = vmatprep.subr.mxu0 0.0
      %1395 = vmatpush2.msra.mxu0 0.0
      %1396 = vmatprep.subr.mxu0 0.0
      %1397 = vmatpush2.msra.mxu0 0.0
      %1398 = vmatprep.subr.mxu0 0.0
      %1399 = vmatpush2.msra.mxu0 0.0
      %1400 = vmatprep.subr.mxu0 0.0
      %1401 = vmatpush2.msra.mxu0 0.0
      %1402 = vmatprep.subr.mxu0 0.0
      %1403 = vmatpush2.msra.mxu0 0.0
      %1404 = vmatprep.subr.mxu0 0.0
      %1405 = vmatpush2.msra.mxu0 0.0
      %1406 = vmatprep.subr.mxu0 0.0
      %1407 = vmatpush2.msra.mxu0 0.0
      %1408 = vmatprep.subr.mxu0 0.0
      %1409 = vmatpush2.msra.mxu0 0.0
      %1410 = vmatprep.subr.mxu0 0.0
      %1411 = vmatpush2.msra.mxu0 0.0
      %1412 = vmatprep.subr.mxu0 0.0
      %1413 = vmatpush2.msra.mxu0 0.0
      %1414 = vmatprep.subr.mxu0 0.0
      %1415 = vmatpush2.msra.mxu0 0.0
      %1416 = vmatprep.subr.mxu0 0.0
      %1417 = vmatpush2.msra.mxu0 0.0
      %1418 = vmatprep.subr.mxu0 0.0
      %1419 = vmatpush2.msra.mxu0 0.0
      %1420 = vmatprep.subr.mxu0 0.0
      %1421 = vmatpush2.msra.mxu0 0.0
      %1422 = vmatprep.subr.mxu0 0.0
      %1423 = vmatpush2.msra.mxu0 0.0
      %1424 = vmatprep.subr.mxu0 0.0
      %1425 = vmatpush2.msra.mxu0 0.0
      %1426 = vmatprep.mubr.f32.mxu0 0.0
      %1427 = vmatmul.mubr.f32.gmra.mxu0 %v1360
      %v1428 = vpop.f32.mrf.mxu0
      %v1429 = vadd.f32 0.0, %v1428
      %v1430 = vpop.f32.mrf.mxu0
      %1431 = vdwg.mxu0
      %v1434 = vunpack.c.l.s4 1966171168
      %v1435 = vunpack.c.0.s8 %v1434
      %v1436 = vlaneseq
      %v1437 = vshrl.u32 %v1436, 7
      %v1438 = vsub.s32 %v1435, %v1437
      %v1439 = vrot.slane %v1349, %v1438
      %v1440 = vcombine.high %v1439, %v1439
      %v1442 = vunpack.c.l.s4 1966171168
      %v1443 = vunpack.c.0.s8 %v1442
      %v1444 = vlaneseq
      %v1445 = vshrl.u32 %v1444, 7
      %v1446 = vsub.s32 %v1443, %v1445
      %v1447 = vrot.slane %v1439, %v1446
      %v1449 = vunpack.c.l.s4 1966171168
      %v1450 = vunpack.c.0.s8 %v1449
      %v1451 = vlaneseq
      %v1452 = vshrl.u32 %v1451, 7
      %v1453 = vsub.s32 %v1450, %v1452
      %v1454 = vrot.slane %v1440, %v1453
      %v1459 = vunpack.c.l.s4 1966171168
      %v1460 = vunpack.c.0.s8 %v1459
      %v1461 = vlaneseq
      %v1462 = vshrl.u32 %v1461, 7
      %v1463 = vsub.s32 %v1460, %v1462
      %v1464 = vrot.slane %v1429, %v1463
      %v1465 = vcombine.high %v1464, %v1464
      %v1467 = vunpack.c.l.s4 1966171168
      %v1468 = vunpack.c.0.s8 %v1467
      %v1469 = vlaneseq
      %v1470 = vshrl.u32 %v1469, 7
      %v1471 = vsub.s32 %v1468, %v1470
      %v1472 = vrot.slane %v1464, %v1471
      %v1474 = vunpack.c.l.s4 1966171168
      %v1475 = vunpack.c.0.s8 %v1474
      %v1476 = vlaneseq
      %v1477 = vshrl.u32 %v1476, 7
      %v1478 = vsub.s32 %v1475, %v1477
      %v1479 = vrot.slane %v1465, %v1478
      %v1480 = vlaneseq
      %v1481 = vshrl.u32 %v1480, 7
      %v1482 = vsub.s32 0, %v1481
      %v1483 = vrot.slane %v1472, %v1482
      %v1484 = vlaneseq
      %v1485 = vshrl.u32 %v1484, 7
      %v1486 = vsub.s32 0, %v1485
      %v1487 = vrot.slane %v1479, %v1486
      %v1490 = vsel %vm686, %v1447, %v1483
      %v1491 = vsel %vm686, %v1454, %v1487
      %v1492 = vld [vmem:[%s13] sm:$0x1]
      %v1494 = vlaneseq
      %v1495 = vshrl.u32 %v1494, 7
      %v1496 = vsub.s32 0, %v1495
      %v1497 = vrot.slane %v1492, %v1496
      %v1499 = vunpack.c.l.s4 1983009808
      %v1500 = vunpack.c.0.s8 %v1499
      %v1501 = vlaneseq
      %v1502 = vshrl.u32 %v1501, 7
      %v1503 = vsub.s32 %v1500, %v1502
      %v1504 = vrot.slane %v1497, %v1503
      %v1505 = vcombine.high %v1504, %v1504
      %v1508 = vadd.f32 %v1490, %v1504
      %v1509 = vadd.f32 %v1491, %v1505
      %v1510 = vmul.f32 %v1508, 0.1
      %v1511 = vmul.f32 %v1509, 0.1
      %v1512 = vmax.f32 %v1508, %v1510
      %v1513 = vmax.f32 %v1509, %v1511
      %v1516 = vcombine.low %v1512, %v1513
      %v1518 = vunpack.c.l.s4 1983009808
      %v1519 = vunpack.c.0.s8 %v1518
      %v1520 = vlaneseq
      %v1521 = vshrl.u32 %v1520, 7
      %v1522 = vsub.s32 %v1519, %v1521
      %v1523 = vrot.slane %v1516, %v1522
      %v1524 = vrot.slane %v1523, 7
      %v1526 = vsel %vm686, 0.0, %v1524
      %v1527 = vsel %vm939, %v1526, 0.0
      %1528 = vst.msk [vmem:[#allocation8] sm:$0x3f] %vm941, %v1527
      %v1529 = vld [vmem:[#allocation5] sm:$0xf]
      %v1530 = vld [vmem:[#allocation5 + $0x1] sm:$0xf]
      %v1531 = vld [vmem:[#allocation5 + $0x2] sm:$0xf]
      %v1532 = vld [vmem:[#allocation8] sm:$0xf]
      %v1533 = vld [vmem:[#allocation8 + $0x1] sm:$0xf]
      %v1534 = vld [vmem:[#allocation8 + $0x2] sm:$0xf]
      %1536 = vrot.lane.b32.xlu0 %v1530, 16
      %v1537 = vpop.permute.xlu0 %1536
      %1540 = vrot.lane.b32.xlu0 %v1532, 32
      %v1541 = vpop.permute.xlu0 %1540
      %1544 = vrot.lane.b32.xlu0 %v1533, 48
      %v1545 = vpop.permute.xlu0 %1544
      %v1547 = vsel %vm954, %v1529, %v1537
      %v1548 = vsel %vm821, %v1547, %v1541
      %v1549 = vsel %vm970, %v1548, %v1545
      %v1550 = vld [vmem:[%s14] sm:$0xff]
      %v1551 = vld [vmem:[%s14 + $0x8] sm:$0xff]
      %v1552 = vld [vmem:[%s14 + $0x10] sm:$0xff]
      %v1553 = vld [vmem:[%s14 + $0x18] sm:$0xff]
      %v1554 = vld [vmem:[%s14 + $0x20] sm:$0xff]
      %v1555 = vld [vmem:[%s14 + $0x28] sm:$0xff]
      %v1556 = vld [vmem:[%s14 + $0x30] sm:$0xff]
      %v1557 = vld [vmem:[%s14 + $0x38] sm:$0xff]
      %v1559 = vsel %vm695, %v1549, 0
      %1561 = vmatprep.subr.mxu0 0.0
      %1562 = vmatpush1.msra.mxu0 0.0
      %1563 = vmatprep.subr.mxu0 0.0
      %1564 = vmatpush1.msra.mxu0 0.0
      %1565 = vmatprep.subr.mxu0 0.0
      %1566 = vmatpush1.msra.mxu0 0.0
      %1567 = vmatprep.subr.mxu0 0.0
      %1568 = vmatpush1.msra.mxu0 0.0
      %1569 = vmatprep.subr.mxu0 0.0
      %1570 = vmatpush1.msra.mxu0 0.0
      %1571 = vmatprep.subr.mxu0 0.0
      %1572 = vmatpush1.msra.mxu0 0.0
      %1573 = vmatprep.subr.mxu0 0.0
      %1574 = vmatpush1.msra.mxu0 0.0
      %1575 = vmatprep.subr.mxu0 0.0
      %1576 = vmatpush1.msra.mxu0 0.0
      %1577 = vmatprep.subr.mxu0 0.0
      %1578 = vmatpush1.msra.mxu0 %v1557
      %1579 = vmatprep.subr.mxu0 0.0
      %1580 = vmatpush1.msra.mxu0 %v1556
      %1581 = vmatprep.subr.mxu0 0.0
      %1582 = vmatpush1.msra.mxu0 %v1555
      %1583 = vmatprep.subr.mxu0 0.0
      %1584 = vmatpush1.msra.mxu0 %v1554
      %1585 = vmatprep.subr.mxu0 0.0
      %1586 = vmatpush1.msra.mxu0 %v1553
      %1587 = vmatprep.subr.mxu0 0.0
      %1588 = vmatpush1.msra.mxu0 %v1552
      %1589 = vmatprep.subr.mxu0 0.0
      %1590 = vmatpush1.msra.mxu0 %v1551
      %1591 = vmatprep.subr.mxu0 0.0
      %1592 = vmatpush1.msra.mxu0 %v1550
      %1593 = vmatprep.subr.mxu0 0.0
      %1594 = vmatpush2.msra.mxu0 0.0
      %1595 = vmatprep.subr.mxu0 0.0
      %1596 = vmatpush2.msra.mxu0 0.0
      %1597 = vmatprep.subr.mxu0 0.0
      %1598 = vmatpush2.msra.mxu0 0.0
      %1599 = vmatprep.subr.mxu0 0.0
      %1600 = vmatpush2.msra.mxu0 0.0
      %1601 = vmatprep.subr.mxu0 0.0
      %1602 = vmatpush2.msra.mxu0 0.0
      %1603 = vmatprep.subr.mxu0 0.0
      %1604 = vmatpush2.msra.mxu0 0.0
      %1605 = vmatprep.subr.mxu0 0.0
      %1606 = vmatpush2.msra.mxu0 0.0
      %1607 = vmatprep.subr.mxu0 0.0
      %1608 = vmatpush2.msra.mxu0 0.0
      %1609 = vmatprep.subr.mxu0 0.0
      %1610 = vmatpush2.msra.mxu0 0.0
      %1611 = vmatprep.subr.mxu0 0.0
      %1612 = vmatpush2.msra.mxu0 0.0
      %1613 = vmatprep.subr.mxu0 0.0
      %1614 = vmatpush2.msra.mxu0 0.0
      %1615 = vmatprep.subr.mxu0 0.0
      %1616 = vmatpush2.msra.mxu0 0.0
      %1617 = vmatprep.subr.mxu0 0.0
      %1618 = vmatpush2.msra.mxu0 0.0
      %1619 = vmatprep.subr.mxu0 0.0
      %1620 = vmatpush2.msra.mxu0 0.0
      %1621 = vmatprep.subr.mxu0 0.0
      %1622 = vmatpush2.msra.mxu0 0.0
      %1623 = vmatprep.subr.mxu0 0.0
      %1624 = vmatpush2.msra.mxu0 0.0
      %1625 = vmatprep.mubr.f32.mxu0 0.0
      %1626 = vmatmul.mubr.f32.gmra.mxu0 %v1559
      %v1627 = vpop.f32.mrf.mxu0
      %v1628 = vadd.f32 0.0, %v1627
      %v1629 = vpop.f32.mrf.mxu0
      %1630 = vdwg.mxu0
      %1632 = vrot.lane.b32.xlu0 %v1531, 16
      %v1633 = vpop.permute.xlu0 %1632
      %1635 = vrot.lane.b32.xlu0 %v1533, 32
      %v1636 = vpop.permute.xlu0 %1635
      %1639 = vrot.lane.b32.xlu0 %v1534, 48
      %v1640 = vpop.permute.xlu0 %1639
      %v1642 = vsel %vm954, %v1530, %v1633
      %v1643 = vsel %vm821, %v1642, %v1636
      %v1644 = vsel %vm970, %v1643, %v1640
      %v1645 = vld [vmem:[%s15] sm:$0xff]
      %v1646 = vld [vmem:[%s15 + $0x8] sm:$0xff]
      %v1647 = vld [vmem:[%s15 + $0x10] sm:$0xff]
      %v1648 = vld [vmem:[%s15 + $0x18] sm:$0xff]
      %v1649 = vld [vmem:[%s15 + $0x20] sm:$0xff]
      %v1650 = vld [vmem:[%s15 + $0x28] sm:$0xff]
      %v1651 = vld [vmem:[%s15 + $0x30] sm:$0xff]
      %v1652 = vld [vmem:[%s15 + $0x38] sm:$0xff]
      %v1654 = vsel %vm695, %v1644, 0
      %1656 = vmatprep.subr.mxu0 0.0
      %1657 = vmatpush1.msra.mxu0 0.0
      %1658 = vmatprep.subr.mxu0 0.0
      %1659 = vmatpush1.msra.mxu0 0.0
      %1660 = vmatprep.subr.mxu0 0.0
      %1661 = vmatpush1.msra.mxu0 0.0
      %1662 = vmatprep.subr.mxu0 0.0
      %1663 = vmatpush1.msra.mxu0 0.0
      %1664 = vmatprep.subr.mxu0 0.0
      %1665 = vmatpush1.msra.mxu0 0.0
      %1666 = vmatprep.subr.mxu0 0.0
      %1667 = vmatpush1.msra.mxu0 0.0
      %1668 = vmatprep.subr.mxu0 0.0
      %1669 = vmatpush1.msra.mxu0 0.0
      %1670 = vmatprep.subr.mxu0 0.0
      %1671 = vmatpush1.msra.mxu0 0.0
      %1672 = vmatprep.subr.mxu0 0.0
      %1673 = vmatpush1.msra.mxu0 %v1652
      %1674 = vmatprep.subr.mxu0 0.0
      %1675 = vmatpush1.msra.mxu0 %v1651
      %1676 = vmatprep.subr.mxu0 0.0
      %1677 = vmatpush1.msra.mxu0 %v1650
      %1678 = vmatprep.subr.mxu0 0.0
      %1679 = vmatpush1.msra.mxu0 %v1649
      %1680 = vmatprep.subr.mxu0 0.0
      %1681 = vmatpush1.msra.mxu0 %v1648
      %1682 = vmatprep.subr.mxu0 0.0
      %1683 = vmatpush1.msra.mxu0 %v1647
      %1684 = vmatprep.subr.mxu0 0.0
      %1685 = vmatpush1.msra.mxu0 %v1646
      %1686 = vmatprep.subr.mxu0 0.0
      %1687 = vmatpush1.msra.mxu0 %v1645
      %1688 = vmatprep.subr.mxu0 0.0
      %1689 = vmatpush2.msra.mxu0 0.0
      %1690 = vmatprep.subr.mxu0 0.0
      %1691 = vmatpush2.msra.mxu0 0.0
      %1692 = vmatprep.subr.mxu0 0.0
      %1693 = vmatpush2.msra.mxu0 0.0
      %1694 = vmatprep.subr.mxu0 0.0
      %1695 = vmatpush2.msra.mxu0 0.0
      %1696 = vmatprep.subr.mxu0 0.0
      %1697 = vmatpush2.msra.mxu0 0.0
      %1698 = vmatprep.subr.mxu0 0.0
      %1699 = vmatpush2.msra.mxu0 0.0
      %1700 = vmatprep.subr.mxu0 0.0
      %1701 = vmatpush2.msra.mxu0 0.0
      %1702 = vmatprep.subr.mxu0 0.0
      %1703 = vmatpush2.msra.mxu0 0.0
      %1704 = vmatprep.subr.mxu0 0.0
      %1705 = vmatpush2.msra.mxu0 0.0
      %1706 = vmatprep.subr.mxu0 0.0
      %1707 = vmatpush2.msra.mxu0 0.0
      %1708 = vmatprep.subr.mxu0 0.0
      %1709 = vmatpush2.msra.mxu0 0.0
      %1710 = vmatprep.subr.mxu0 0.0
      %1711 = vmatpush2.msra.mxu0 0.0
      %1712 = vmatprep.subr.mxu0 0.0
      %1713 = vmatpush2.msra.mxu0 0.0
      %1714 = vmatprep.subr.mxu0 0.0
      %1715 = vmatpush2.msra.mxu0 0.0
      %1716 = vmatprep.subr.mxu0 0.0
      %1717 = vmatpush2.msra.mxu0 0.0
      %1718 = vmatprep.subr.mxu0 0.0
      %1719 = vmatpush2.msra.mxu0 0.0
      %1720 = vmatprep.mubr.f32.mxu0 0.0
      %1721 = vmatmul.mubr.f32.gmra.mxu0 %v1654
      %v1722 = vpop.f32.mrf.mxu0
      %v1723 = vadd.f32 0.0, %v1722
      %v1724 = vpop.f32.mrf.mxu0
      %1725 = vdwg.mxu0
      %v1728 = vunpack.c.l.s4 1966171168
      %v1729 = vunpack.c.0.s8 %v1728
      %v1730 = vlaneseq
      %v1731 = vshrl.u32 %v1730, 7
      %v1732 = vsub.s32 %v1729, %v1731
      %v1733 = vrot.slane %v1628, %v1732
      %v1734 = vcombine.high %v1733, %v1733
      %v1736 = vunpack.c.l.s4 1966171168
      %v1737 = vunpack.c.0.s8 %v1736
      %v1738 = vlaneseq
      %v1739 = vshrl.u32 %v1738, 7
      %v1740 = vsub.s32 %v1737, %v1739
      %v1741 = vrot.slane %v1733, %v1740
      %v1743 = vunpack.c.l.s4 1966171168
      %v1744 = vunpack.c.0.s8 %v1743
      %v1745 = vlaneseq
      %v1746 = vshrl.u32 %v1745, 7
      %v1747 = vsub.s32 %v1744, %v1746
      %v1748 = vrot.slane %v1734, %v1747
      %v1749 = vcombine.high %v1741, %v1741
      %v1750 = vcombine.high %v1748, %v1748
      %v1757 = vunpack.c.l.s4 1966171168
      %v1758 = vunpack.c.0.s8 %v1757
      %v1759 = vlaneseq
      %v1760 = vshrl.u32 %v1759, 7
      %v1761 = vsub.s32 %v1758, %v1760
      %v1762 = vrot.slane %v1723, %v1761
      %v1763 = vcombine.high %v1762, %v1762
      %v1765 = vunpack.c.l.s4 1966171168
      %v1766 = vunpack.c.0.s8 %v1765
      %v1767 = vlaneseq
      %v1768 = vshrl.u32 %v1767, 7
      %v1769 = vsub.s32 %v1766, %v1768
      %v1770 = vrot.slane %v1762, %v1769
      %v1772 = vunpack.c.l.s4 1966171168
      %v1773 = vunpack.c.0.s8 %v1772
      %v1774 = vlaneseq
      %v1775 = vshrl.u32 %v1774, 7
      %v1776 = vsub.s32 %v1773, %v1775
      %v1777 = vrot.slane %v1763, %v1776
      %v1778 = vcombine.high %v1770, %v1770
      %v1779 = vcombine.high %v1777, %v1777
      %v1780 = vlaneseq
      %v1781 = vshrl.u32 %v1780, 7
      %v1782 = vsub.s32 0, %v1781
      %v1783 = vrot.slane %v1770, %v1782
      %v1784 = vlaneseq
      %v1785 = vshrl.u32 %v1784, 7
      %v1786 = vsub.s32 0, %v1785
      %v1787 = vrot.slane %v1777, %v1786
      %v1788 = vlaneseq
      %v1789 = vshrl.u32 %v1788, 7
      %v1790 = vsub.s32 0, %v1789
      %v1791 = vrot.slane %v1778, %v1790
      %v1792 = vlaneseq
      %v1793 = vshrl.u32 %v1792, 7
      %v1794 = vsub.s32 0, %v1793
      %v1795 = vrot.slane %v1779, %v1794
      %v1800 = vsel %vm686, %v1741, %v1783
      %v1801 = vsel %vm686, %v1748, %v1787
      %v1802 = vsel %vm686, %v1749, %v1791
      %v1803 = vsel %vm686, %v1750, %v1795
      %v1804 = vld [vmem:[%s16] sm:$0x1]
      %v1806 = vlaneseq
      %v1807 = vshrl.u32 %v1806, 7
      %v1808 = vsub.s32 0, %v1807
      %v1809 = vrot.slane %v1804, %v1808
      %v1810 = vcombine.high %v1809, %v1809
      %v1812 = vunpack.c.l.s4 1983009808
      %v1813 = vunpack.c.0.s8 %v1812
      %v1814 = vlaneseq
      %v1815 = vshrl.u32 %v1814, 7
      %v1816 = vsub.s32 %v1813, %v1815
      %v1817 = vrot.slane %v1809, %v1816
      %v1819 = vunpack.c.l.s4 1983009808
      %v1820 = vunpack.c.0.s8 %v1819
      %v1821 = vlaneseq
      %v1822 = vshrl.u32 %v1821, 7
      %v1823 = vsub.s32 %v1820, %v1822
      %v1824 = vrot.slane %v1810, %v1823
      %v1825 = vcombine.high %v1817, %v1817
      %v1826 = vcombine.high %v1824, %v1824
      %v1831 = vadd.f32 %v1800, %v1817
      %v1832 = vadd.f32 %v1801, %v1825
      %v1833 = vadd.f32 %v1802, %v1824
      %v1834 = vadd.f32 %v1803, %v1826
      %v1835 = vmul.f32 %v1831, 0.1
      %v1836 = vmul.f32 %v1832, 0.1
      %v1837 = vmul.f32 %v1833, 0.1
      %v1838 = vmul.f32 %v1834, 0.1
      %v1839 = vmax.f32 %v1831, %v1835
      %v1840 = vmax.f32 %v1832, %v1836
      %v1841 = vmax.f32 %v1833, %v1837
      %v1842 = vmax.f32 %v1834, %v1838
      %v1847 = vcombine.low %v1839, %v1840
      %v1848 = vcombine.low %v1841, %v1842
      %v1850 = vunpack.c.l.s4 1983009808
      %v1851 = vunpack.c.0.s8 %v1850
      %v1852 = vlaneseq
      %v1853 = vshrl.u32 %v1852, 7
      %v1854 = vsub.s32 %v1851, %v1853
      %v1855 = vrot.slane %v1847, %v1854
      %v1857 = vunpack.c.l.s4 1983009808
      %v1858 = vunpack.c.0.s8 %v1857
      %v1859 = vlaneseq
      %v1860 = vshrl.u32 %v1859, 7
      %v1861 = vsub.s32 %v1858, %v1860
      %v1862 = vrot.slane %v1848, %v1861
      %v1863 = vcombine.low %v1855, %v1862
      %v1864 = vrot.slane %v1863, 7
      %v1866 = vsel %vm686, 0.0, %v1864
      %v1867 = vsel %vm686, %v1864, 0.0
      %1868 = vst.msk [vmem:[#allocation9] sm:$0xff] %vm821, %v1866
      %1869 = vst.msk [vmem:[#allocation9 + $0x8] sm:$0x3] %vm823, %v1867
      %v1870 = vld [vmem:[#allocation3] sm:$0xff]
      %v1871 = vld [vmem:[#allocation3 + $0x1] sm:$0xff]
      %v1872 = vld [vmem:[#allocation3 + $0x2] sm:$0xff]
      %v1873 = vld [vmem:[#allocation9] sm:$0xff]
      %v1874 = vld [vmem:[#allocation9 + $0x1] sm:$0xff]
      %v1875 = vld [vmem:[#allocation9 + $0x2] sm:$0xff]
      %1877 = vrot.lane.b32.xlu0 %v1871, 32
      %v1878 = vpop.permute.xlu0 %1877
      %1881 = vrot.lane.b32.xlu0 %v1873, 64
      %v1882 = vpop.permute.xlu0 %1881
      %1885 = vrot.lane.b32.xlu0 %v1874, 96
      %v1886 = vpop.permute.xlu0 %1885
      %v1888 = vsel %vm821, %v1870, %v1878
      %v1889 = vsel %vm695, %v1888, %v1882
      %v1890 = vsel %vm859, %v1889, %v1886
      %v1891 = vld [vmem:[%s17] sm:$0xff]
      %v1892 = vld [vmem:[%s17 + $0x8] sm:$0xff]
      %v1893 = vld [vmem:[%s17 + $0x10] sm:$0xff]
      %v1894 = vld [vmem:[%s17 + $0x18] sm:$0xff]
      %v1895 = vld [vmem:[%s17 + $0x20] sm:$0xff]
      %v1896 = vld [vmem:[%s17 + $0x28] sm:$0xff]
      %v1897 = vld [vmem:[%s17 + $0x30] sm:$0xff]
      %v1898 = vld [vmem:[%s17 + $0x38] sm:$0xff]
      %v1899 = vld [vmem:[%s17 + $0x40] sm:$0xff]
      %v1900 = vld [vmem:[%s17 + $0x48] sm:$0xff]
      %v1901 = vld [vmem:[%s17 + $0x50] sm:$0xff]
      %v1902 = vld [vmem:[%s17 + $0x58] sm:$0xff]
      %v1903 = vld [vmem:[%s17 + $0x60] sm:$0xff]
      %v1904 = vld [vmem:[%s17 + $0x68] sm:$0xff]
      %v1905 = vld [vmem:[%s17 + $0x70] sm:$0xff]
      %v1906 = vld [vmem:[%s17 + $0x78] sm:$0xff]
      %1907 = vmatprep.subr.mxu0 0.0
      %1908 = vmatpush1.msra.mxu0 %v1906
      %1909 = vmatprep.subr.mxu0 0.0
      %1910 = vmatpush1.msra.mxu0 %v1905
      %1911 = vmatprep.subr.mxu0 0.0
      %1912 = vmatpush1.msra.mxu0 %v1904
      %1913 = vmatprep.subr.mxu0 0.0
      %1914 = vmatpush1.msra.mxu0 %v1903
      %1915 = vmatprep.subr.mxu0 0.0
      %1916 = vmatpush1.msra.mxu0 %v1902
      %1917 = vmatprep.subr.mxu0 0.0
      %1918 = vmatpush1.msra.mxu0 %v1901
      %1919 = vmatprep.subr.mxu0 0.0
      %1920 = vmatpush1.msra.mxu0 %v1900
      %1921 = vmatprep.subr.mxu0 0.0
      %1922 = vmatpush1.msra.mxu0 %v1899
      %1923 = vmatprep.subr.mxu0 0.0
      %1924 = vmatpush1.msra.mxu0 %v1898
      %1925 = vmatprep.subr.mxu0 0.0
      %1926 = vmatpush1.msra.mxu0 %v1897
      %1927 = vmatprep.subr.mxu0 0.0
      %1928 = vmatpush1.msra.mxu0 %v1896
      %1929 = vmatprep.subr.mxu0 0.0
      %1930 = vmatpush1.msra.mxu0 %v1895
      %1931 = vmatprep.subr.mxu0 0.0
      %1932 = vmatpush1.msra.mxu0 %v1894
      %1933 = vmatprep.subr.mxu0 0.0
      %1934 = vmatpush1.msra.mxu0 %v1893
      %1935 = vmatprep.subr.mxu0 0.0
      %1936 = vmatpush1.msra.mxu0 %v1892
      %1937 = vmatprep.subr.mxu0 0.0
      %1938 = vmatpush1.msra.mxu0 %v1891
      %1939 = vmatprep.subr.mxu0 0.0
      %1940 = vmatpush2.msra.mxu0 0.0
      %1941 = vmatprep.subr.mxu0 0.0
      %1942 = vmatpush2.msra.mxu0 0.0
      %1943 = vmatprep.subr.mxu0 0.0
      %1944 = vmatpush2.msra.mxu0 0.0
      %1945 = vmatprep.subr.mxu0 0.0
      %1946 = vmatpush2.msra.mxu0 0.0
      %1947 = vmatprep.subr.mxu0 0.0
      %1948 = vmatpush2.msra.mxu0 0.0
      %1949 = vmatprep.subr.mxu0 0.0
      %1950 = vmatpush2.msra.mxu0 0.0
      %1951 = vmatprep.subr.mxu0 0.0
      %1952 = vmatpush2.msra.mxu0 0.0
      %1953 = vmatprep.subr.mxu0 0.0
      %1954 = vmatpush2.msra.mxu0 0.0
      %1955 = vmatprep.subr.mxu0 0.0
      %1956 = vmatpush2.msra.mxu0 0.0
      %1957 = vmatprep.subr.mxu0 0.0
      %1958 = vmatpush2.msra.mxu0 0.0
      %1959 = vmatprep.subr.mxu0 0.0
      %1960 = vmatpush2.msra.mxu0 0.0
      %1961 = vmatprep.subr.mxu0 0.0
      %1962 = vmatpush2.msra.mxu0 0.0
      %1963 = vmatprep.subr.mxu0 0.0
      %1964 = vmatpush2.msra.mxu0 0.0
      %1965 = vmatprep.subr.mxu0 0.0
      %1966 = vmatpush2.msra.mxu0 0.0
      %1967 = vmatprep.subr.mxu0 0.0
      %1968 = vmatpush2.msra.mxu0 0.0
      %1969 = vmatprep.subr.mxu0 0.0
      %1970 = vmatpush2.msra.mxu0 0.0
      %1971 = vmatprep.mubr.f32.mxu0 0.0
      %1972 = vmatmul.mubr.f32.gmra.mxu0 %v1890
      %v1973 = vpop.f32.mrf.mxu0
      %v1974 = vadd.f32 0.0, %v1973
      %v1975 = vpop.f32.mrf.mxu0
      %1976 = vdwg.mxu0
      %1978 = vrot.lane.b32.xlu0 %v1872, 32
      %v1979 = vpop.permute.xlu0 %1978
      %1981 = vrot.lane.b32.xlu0 %v1874, 64
      %v1982 = vpop.permute.xlu0 %1981
      %1985 = vrot.lane.b32.xlu0 %v1875, 96
      %v1986 = vpop.permute.xlu0 %1985
      %v1988 = vsel %vm821, %v1871, %v1979
      %v1989 = vsel %vm695, %v1988, %v1982
      %v1990 = vsel %vm859, %v1989, %v1986
      %v1991 = vld [vmem:[%s18] sm:$0xff]
      %v1992 = vld [vmem:[%s18 + $0x8] sm:$0xff]
      %v1993 = vld [vmem:[%s18 + $0x10] sm:$0xff]
      %v1994 = vld [vmem:[%s18 + $0x18] sm:$0xff]
      %v1995 = vld [vmem:[%s18 + $0x20] sm:$0xff]
      %v1996 = vld [vmem:[%s18 + $0x28] sm:$0xff]
      %v1997 = vld [vmem:[%s18 + $0x30] sm:$0xff]
      %v1998 = vld [vmem:[%s18 + $0x38] sm:$0xff]
      %v1999 = vld [vmem:[%s18 + $0x40] sm:$0xff]
      %v2000 = vld [vmem:[%s18 + $0x48] sm:$0xff]
      %v2001 = vld [vmem:[%s18 + $0x50] sm:$0xff]
      %v2002 = vld [vmem:[%s18 + $0x58] sm:$0xff]
      %v2003 = vld [vmem:[%s18 + $0x60] sm:$0xff]
      %v2004 = vld [vmem:[%s18 + $0x68] sm:$0xff]
      %v2005 = vld [vmem:[%s18 + $0x70] sm:$0xff]
      %v2006 = vld [vmem:[%s18 + $0x78] sm:$0xff]
      %2007 = vmatprep.subr.mxu0 0.0
      %2008 = vmatpush1.msra.mxu0 %v2006
      %2009 = vmatprep.subr.mxu0 0.0
      %2010 = vmatpush1.msra.mxu0 %v2005
      %2011 = vmatprep.subr.mxu0 0.0
      %2012 = vmatpush1.msra.mxu0 %v2004
      %2013 = vmatprep.subr.mxu0 0.0
      %2014 = vmatpush1.msra.mxu0 %v2003
      %2015 = vmatprep.subr.mxu0 0.0
      %2016 = vmatpush1.msra.mxu0 %v2002
      %2017 = vmatprep.subr.mxu0 0.0
      %2018 = vmatpush1.msra.mxu0 %v2001
      %2019 = vmatprep.subr.mxu0 0.0
      %2020 = vmatpush1.msra.mxu0 %v2000
      %2021 = vmatprep.subr.mxu0 0.0
      %2022 = vmatpush1.msra.mxu0 %v1999
      %2023 = vmatprep.subr.mxu0 0.0
      %2024 = vmatpush1.msra.mxu0 %v1998
      %2025 = vmatprep.subr.mxu0 0.0
      %2026 = vmatpush1.msra.mxu0 %v1997
      %2027 = vmatprep.subr.mxu0 0.0
      %2028 = vmatpush1.msra.mxu0 %v1996
      %2029 = vmatprep.subr.mxu0 0.0
      %2030 = vmatpush1.msra.mxu0 %v1995
      %2031 = vmatprep.subr.mxu0 0.0
      %2032 = vmatpush1.msra.mxu0 %v1994
      %2033 = vmatprep.subr.mxu0 0.0
      %2034 = vmatpush1.msra.mxu0 %v1993
      %2035 = vmatprep.subr.mxu0 0.0
      %2036 = vmatpush1.msra.mxu0 %v1992
      %2037 = vmatprep.subr.mxu0 0.0
      %2038 = vmatpush1.msra.mxu0 %v1991
      %2039 = vmatprep.subr.mxu0 0.0
      %2040 = vmatpush2.msra.mxu0 0.0
      %2041 = vmatprep.subr.mxu0 0.0
      %2042 = vmatpush2.msra.mxu0 0.0
      %2043 = vmatprep.subr.mxu0 0.0
      %2044 = vmatpush2.msra.mxu0 0.0
      %2045 = vmatprep.subr.mxu0 0.0
      %2046 = vmatpush2.msra.mxu0 0.0
      %2047 = vmatprep.subr.mxu0 0.0
      %2048 = vmatpush2.msra.mxu0 0.0
      %2049 = vmatprep.subr.mxu0 0.0
      %2050 = vmatpush2.msra.mxu0 0.0
      %2051 = vmatprep.subr.mxu0 0.0
      %2052 = vmatpush2.msra.mxu0 0.0
      %2053 = vmatprep.subr.mxu0 0.0
      %2054 = vmatpush2.msra.mxu0 0.0
      %2055 = vmatprep.subr.mxu0 0.0
      %2056 = vmatpush2.msra.mxu0 0.0
      %2057 = vmatprep.subr.mxu0 0.0
      %2058 = vmatpush2.msra.mxu0 0.0
      %2059 = vmatprep.subr.mxu0 0.0
      %2060 = vmatpush2.msra.mxu0 0.0
      %2061 = vmatprep.subr.mxu0 0.0
      %2062 = vmatpush2.msra.mxu0 0.0
      %2063 = vmatprep.subr.mxu0 0.0
      %2064 = vmatpush2.msra.mxu0 0.0
      %2065 = vmatprep.subr.mxu0 0.0
      %2066 = vmatpush2.msra.mxu0 0.0
      %2067 = vmatprep.subr.mxu0 0.0
      %2068 = vmatpush2.msra.mxu0 0.0
      %2069 = vmatprep.subr.mxu0 0.0
      %2070 = vmatpush2.msra.mxu0 0.0
      %2071 = vmatprep.mubr.f32.mxu0 0.0
      %2072 = vmatmul.mubr.f32.gmra.mxu0 %v1990
      %v2073 = vpop.f32.mrf.mxu0
      %v2074 = vadd.f32 0.0, %v2073
      %v2075 = vpop.f32.mrf.mxu0
      %2076 = vdwg.mxu0
      %v2078 = vcombine.high %v1974, %v1974
      %v2080 = vunpack.c.l.s4 1966171168
      %v2081 = vunpack.c.0.s8 %v2080
      %v2082 = vlaneseq
      %v2083 = vshrl.u32 %v2082, 7
      %v2084 = vsub.s32 %v2081, %v2083
      %v2085 = vrot.slane %v1974, %v2084
      %v2087 = vunpack.c.l.s4 1966171168
      %v2088 = vunpack.c.0.s8 %v2087
      %v2089 = vlaneseq
      %v2090 = vshrl.u32 %v2089, 7
      %v2091 = vsub.s32 %v2088, %v2090
      %v2092 = vrot.slane %v2078, %v2091
      %v2093 = vcombine.high %v2085, %v2085
      %v2094 = vcombine.high %v2092, %v2092
      %v2096 = vunpack.c.l.s4 1966171168
      %v2097 = vunpack.c.0.s8 %v2096
      %v2098 = vlaneseq
      %v2099 = vshrl.u32 %v2098, 7
      %v2100 = vsub.s32 %v2097, %v2099
      %v2101 = vrot.slane %v2085, %v2100
      %v2103 = vunpack.c.l.s4 1966171168
      %v2104 = vunpack.c.0.s8 %v2103
      %v2105 = vlaneseq
      %v2106 = vshrl.u32 %v2105, 7
      %v2107 = vsub.s32 %v2104, %v2106
      %v2108 = vrot.slane %v2092, %v2107
      %v2110 = vunpack.c.l.s4 1966171168
      %v2111 = vunpack.c.0.s8 %v2110
      %v2112 = vlaneseq
      %v2113 = vshrl.u32 %v2112, 7
      %v2114 = vsub.s32 %v2111, %v2113
      %v2115 = vrot.slane %v2093, %v2114
      %v2117 = vunpack.c.l.s4 1966171168
      %v2118 = vunpack.c.0.s8 %v2117
      %v2119 = vlaneseq
      %v2120 = vshrl.u32 %v2119, 7
      %v2121 = vsub.s32 %v2118, %v2120
      %v2122 = vrot.slane %v2094, %v2121
      %v2123 = vcombine.high %v2101, %v2101
      %v2124 = vcombine.high %v2108, %v2108
      %v2125 = vcombine.high %v2115, %v2115
      %v2126 = vcombine.high %v2122, %v2122
      %v2136 = vcombine.high %v2074, %v2074
      %v2138 = vunpack.c.l.s4 1966171168
      %v2139 = vunpack.c.0.s8 %v2138
      %v2140 = vlaneseq
      %v2141 = vshrl.u32 %v2140, 7
      %v2142 = vsub.s32 %v2139, %v2141
      %v2143 = vrot.slane %v2074, %v2142
      %v2145 = vunpack.c.l.s4 1966171168
      %v2146 = vunpack.c.0.s8 %v2145
      %v2147 = vlaneseq
      %v2148 = vshrl.u32 %v2147, 7
      %v2149 = vsub.s32 %v2146, %v2148
      %v2150 = vrot.slane %v2136, %v2149
      %v2151 = vcombine.high %v2143, %v2143
      %v2152 = vcombine.high %v2150, %v2150
      %v2154 = vunpack.c.l.s4 1966171168
      %v2155 = vunpack.c.0.s8 %v2154
      %v2156 = vlaneseq
      %v2157 = vshrl.u32 %v2156, 7
      %v2158 = vsub.s32 %v2155, %v2157
      %v2159 = vrot.slane %v2143, %v2158
      %v2161 = vunpack.c.l.s4 1966171168
      %v2162 = vunpack.c.0.s8 %v2161
      %v2163 = vlaneseq
      %v2164 = vshrl.u32 %v2163, 7
      %v2165 = vsub.s32 %v2162, %v2164
      %v2166 = vrot.slane %v2150, %v2165
      %v2168 = vunpack.c.l.s4 1966171168
      %v2169 = vunpack.c.0.s8 %v2168
      %v2170 = vlaneseq
      %v2171 = vshrl.u32 %v2170, 7
      %v2172 = vsub.s32 %v2169, %v2171
      %v2173 = vrot.slane %v2151, %v2172
      %v2175 = vunpack.c.l.s4 1966171168
      %v2176 = vunpack.c.0.s8 %v2175
      %v2177 = vlaneseq
      %v2178 = vshrl.u32 %v2177, 7
      %v2179 = vsub.s32 %v2176, %v2178
      %v2180 = vrot.slane %v2152, %v2179
      %v2181 = vcombine.high %v2159, %v2159
      %v2182 = vcombine.high %v2166, %v2166
      %v2183 = vcombine.high %v2173, %v2173
      %v2184 = vcombine.high %v2180, %v2180
      %v2185 = vlaneseq
      %v2186 = vshrl.u32 %v2185, 7
      %v2187 = vsub.s32 0, %v2186
      %v2188 = vrot.slane %v2159, %v2187
      %v2189 = vlaneseq
      %v2190 = vshrl.u32 %v2189, 7
      %v2191 = vsub.s32 0, %v2190
      %v2192 = vrot.slane %v2173, %v2191
      %v2193 = vlaneseq
      %v2194 = vshrl.u32 %v2193, 7
      %v2195 = vsub.s32 0, %v2194
      %v2196 = vrot.slane %v2181, %v2195
      %v2197 = vlaneseq
      %v2198 = vshrl.u32 %v2197, 7
      %v2199 = vsub.s32 0, %v2198
      %v2200 = vrot.slane %v2183, %v2199
      %v2201 = vlaneseq
      %v2202 = vshrl.u32 %v2201, 7
      %v2203 = vsub.s32 0, %v2202
      %v2204 = vrot.slane %v2166, %v2203
      %v2205 = vlaneseq
      %v2206 = vshrl.u32 %v2205, 7
      %v2207 = vsub.s32 0, %v2206
      %v2208 = vrot.slane %v2180, %v2207
      %v2209 = vlaneseq
      %v2210 = vshrl.u32 %v2209, 7
      %v2211 = vsub.s32 0, %v2210
      %v2212 = vrot.slane %v2182, %v2211
      %v2213 = vlaneseq
      %v2214 = vshrl.u32 %v2213, 7
      %v2215 = vsub.s32 0, %v2214
      %v2216 = vrot.slane %v2184, %v2215
      %v2225 = vsel %vm686, %v2101, %v2188
      %v2226 = vsel %vm686, %v2115, %v2192
      %v2227 = vsel %vm686, %v2123, %v2196
      %v2228 = vsel %vm686, %v2125, %v2200
      %v2229 = vsel %vm686, %v2108, %v2204
      %v2230 = vsel %vm686, %v2122, %v2208
      %v2231 = vsel %vm686, %v2124, %v2212
      %v2232 = vsel %vm686, %v2126, %v2216
      %v2233 = vld [vmem:[%s19] sm:$0x1]
      %v2235 = vlaneseq
      %v2236 = vshrl.u32 %v2235, 7
      %v2237 = vsub.s32 0, %v2236
      %v2238 = vrot.slane %v2233, %v2237
      %v2239 = vcombine.high %v2238, %v2238
      %v2241 = vunpack.c.l.s4 1983009808
      %v2242 = vunpack.c.0.s8 %v2241
      %v2243 = vlaneseq
      %v2244 = vshrl.u32 %v2243, 7
      %v2245 = vsub.s32 %v2242, %v2244
      %v2246 = vrot.slane %v2238, %v2245
      %v2248 = vunpack.c.l.s4 1983009808
      %v2249 = vunpack.c.0.s8 %v2248
      %v2250 = vlaneseq
      %v2251 = vshrl.u32 %v2250, 7
      %v2252 = vsub.s32 %v2249, %v2251
      %v2253 = vrot.slane %v2239, %v2252
      %v2254 = vcombine.high %v2246, %v2246
      %v2255 = vcombine.high %v2253, %v2253
      %v2260 = vadd.f32 %v2225, %v2246
      %v2261 = vadd.f32 %v2226, %v2254
      %v2262 = vadd.f32 %v2227, %v2253
      %v2263 = vadd.f32 %v2228, %v2255
      %v2264 = vadd.f32 %v2229, %v2246
      %v2265 = vadd.f32 %v2230, %v2254
      %v2266 = vadd.f32 %v2231, %v2253
      %v2267 = vadd.f32 %v2232, %v2255
      %v2268 = vmul.f32 %v2260, 0.1
      %v2269 = vmul.f32 %v2261, 0.1
      %v2270 = vmul.f32 %v2262, 0.1
      %v2271 = vmul.f32 %v2263, 0.1
      %v2272 = vmul.f32 %v2264, 0.1
      %v2273 = vmul.f32 %v2265, 0.1
      %v2274 = vmul.f32 %v2266, 0.1
      %v2275 = vmul.f32 %v2267, 0.1
      %v2276 = vmax.f32 %v2260, %v2268
      %v2277 = vmax.f32 %v2261, %v2269
      %v2278 = vmax.f32 %v2262, %v2270
      %v2279 = vmax.f32 %v2263, %v2271
      %v2280 = vmax.f32 %v2264, %v2272
      %v2281 = vmax.f32 %v2265, %v2273
      %v2282 = vmax.f32 %v2266, %v2274
      %v2283 = vmax.f32 %v2267, %v2275
      %v2292 = vcombine.low %v2276, %v2277
      %v2293 = vcombine.low %v2278, %v2279
      %v2295 = vunpack.c.l.s4 1983009808
      %v2296 = vunpack.c.0.s8 %v2295
      %v2297 = vlaneseq
      %v2298 = vshrl.u32 %v2297, 7
      %v2299 = vsub.s32 %v2296, %v2298
      %v2300 = vrot.slane %v2292, %v2299
      %v2302 = vunpack.c.l.s4 1983009808
      %v2303 = vunpack.c.0.s8 %v2302
      %v2304 = vlaneseq
      %v2305 = vshrl.u32 %v2304, 7
      %v2306 = vsub.s32 %v2303, %v2305
      %v2307 = vrot.slane %v2293, %v2306
      %v2308 = vcombine.low %v2300, %v2307
      %v2309 = vcombine.low %v2280, %v2281
      %v2310 = vcombine.low %v2282, %v2283
      %v2312 = vunpack.c.l.s4 1983009808
      %v2313 = vunpack.c.0.s8 %v2312
      %v2314 = vlaneseq
      %v2315 = vshrl.u32 %v2314, 7
      %v2316 = vsub.s32 %v2313, %v2315
      %v2317 = vrot.slane %v2309, %v2316
      %v2319 = vunpack.c.l.s4 1983009808
      %v2320 = vunpack.c.0.s8 %v2319
      %v2321 = vlaneseq
      %v2322 = vshrl.u32 %v2321, 7
      %v2323 = vsub.s32 %v2320, %v2322
      %v2324 = vrot.slane %v2310, %v2323
      %v2325 = vcombine.low %v2317, %v2324
      %v2326 = vrot.slane %v2308, 7
      %v2327 = vrot.slane %v2325, 7
      %v2328 = vsel %vm686, %v2326, %v2327
      %v2332 = vsel %vm686, 0.0, %v2326
      %v2333 = vsel %vm686, %v2327, 0.0
      %2334 = vst.msk [vmem:[#allocation10] sm:$0xff] %vm695, %v2332
      %2335 = vst.msk [vmem:[#allocation10 + $0x8] sm:$0xff] %vm695, %v2328
      %2336 = vst.msk [vmem:[#allocation10 + $0x10] sm:$0x3] %vm698, %v2333
      %v2337 = vld [vmem:[#allocation2] ss:$2 sm:$0xff]
      %v2338 = vld [vmem:[%s701] ss:$2 sm:$0xff]
      %v2339 = vld [vmem:[%s703] ss:$2 sm:$0xff]
      %s2340 = scalar_lea.vmem [#allocation2], 3
      %v2341 = vld [vmem:[%s2340] ss:$2 sm:$0xff]
      %v2342 = vld [vmem:[#allocation10] ss:$2 sm:$0xff]
      %s2343 = scalar_lea.vmem [#allocation10], 1
      %v2344 = vld [vmem:[%s2343] ss:$2 sm:$0xff]
      %s2345 = scalar_lea.vmem [#allocation10], 2
      %v2346 = vld [vmem:[%s2345] ss:$2 sm:$0xff]
      %s2347 = scalar_lea.vmem [#allocation10], 3
      %v2348 = vld [vmem:[%s2347] ss:$2 sm:$0xff]
      %2350 = vrot.lane.b32.xlu0 %v2338, 64
      %v2351 = vpop.permute.xlu0 %2350
      %2354 = vrot.lane.b32.xlu0 %v2341, 64
      %v2355 = vpop.permute.xlu0 %2354
      %2358 = vrot.lane.b32.xlu0 %v2344, 64
      %v2359 = vpop.permute.xlu0 %2358
      %2362 = vrot.lane.b32.xlu0 %v2348, 64
      %v2363 = vpop.permute.xlu0 %2362
      %v2365 = vsel %vm695, %v2337, %v2351
      %v2366 = vsel %vm695, %v2339, %v2355
      %v2367 = vsel %vm695, %v2342, %v2359
      %v2368 = vsel %vm695, %v2346, %v2363
      %v2369 = vld [vmem:[%s20] sm:$0xff]
      %v2370 = vld [vmem:[%s20 + $0x8] sm:$0xff]
      %v2371 = vld [vmem:[%s20 + $0x10] sm:$0xff]
      %v2372 = vld [vmem:[%s20 + $0x18] sm:$0xff]
      %v2373 = vld [vmem:[%s20 + $0x20] sm:$0xff]
      %v2374 = vld [vmem:[%s20 + $0x28] sm:$0xff]
      %v2375 = vld [vmem:[%s20 + $0x30] sm:$0xff]
      %v2376 = vld [vmem:[%s20 + $0x38] sm:$0xff]
      %v2377 = vld [vmem:[%s20 + $0x40] sm:$0xff]
      %v2378 = vld [vmem:[%s20 + $0x48] sm:$0xff]
      %v2379 = vld [vmem:[%s20 + $0x50] sm:$0xff]
      %v2380 = vld [vmem:[%s20 + $0x58] sm:$0xff]
      %v2381 = vld [vmem:[%s20 + $0x60] sm:$0xff]
      %v2382 = vld [vmem:[%s20 + $0x68] sm:$0xff]
      %v2383 = vld [vmem:[%s20 + $0x70] sm:$0xff]
      %v2384 = vld [vmem:[%s20 + $0x78] sm:$0xff]
      %v2385 = vld [vmem:[%s20 + $0x80] sm:$0xff]
      %v2386 = vld [vmem:[%s20 + $0x88] sm:$0xff]
      %v2387 = vld [vmem:[%s20 + $0x90] sm:$0xff]
      %v2388 = vld [vmem:[%s20 + $0x98] sm:$0xff]
      %v2389 = vld [vmem:[%s20 + $0xa0] sm:$0xff]
      %v2390 = vld [vmem:[%s20 + $0xa8] sm:$0xff]
      %v2391 = vld [vmem:[%s20 + $0xb0] sm:$0xff]
      %v2392 = vld [vmem:[%s20 + $0xb8] sm:$0xff]
      %v2393 = vld [vmem:[%s20 + $0xc0] sm:$0xff]
      %v2394 = vld [vmem:[%s20 + $0xc8] sm:$0xff]
      %v2395 = vld [vmem:[%s20 + $0xd0] sm:$0xff]
      %v2396 = vld [vmem:[%s20 + $0xd8] sm:$0xff]
      %v2397 = vld [vmem:[%s20 + $0xe0] sm:$0xff]
      %v2398 = vld [vmem:[%s20 + $0xe8] sm:$0xff]
      %v2399 = vld [vmem:[%s20 + $0xf0] sm:$0xff]
      %v2400 = vld [vmem:[%s20 + $0xf8] sm:$0xff]
      %v2401 = vld [vmem:[%s20 + $0x100] sm:$0xff]
      %v2402 = vld [vmem:[%s20 + $0x108] sm:$0xff]
      %v2403 = vld [vmem:[%s20 + $0x110] sm:$0xff]
      %v2404 = vld [vmem:[%s20 + $0x118] sm:$0xff]
      %v2405 = vld [vmem:[%s20 + $0x120] sm:$0xff]
      %v2406 = vld [vmem:[%s20 + $0x128] sm:$0xff]
      %v2407 = vld [vmem:[%s20 + $0x130] sm:$0xff]
      %v2408 = vld [vmem:[%s20 + $0x138] sm:$0xff]
      %v2409 = vld [vmem:[%s20 + $0x140] sm:$0xff]
      %v2410 = vld [vmem:[%s20 + $0x148] sm:$0xff]
      %v2411 = vld [vmem:[%s20 + $0x150] sm:$0xff]
      %v2412 = vld [vmem:[%s20 + $0x158] sm:$0xff]
      %v2413 = vld [vmem:[%s20 + $0x160] sm:$0xff]
      %v2414 = vld [vmem:[%s20 + $0x168] sm:$0xff]
      %v2415 = vld [vmem:[%s20 + $0x170] sm:$0xff]
      %v2416 = vld [vmem:[%s20 + $0x178] sm:$0xff]
      %v2417 = vld [vmem:[%s20 + $0x180] sm:$0xff]
      %v2418 = vld [vmem:[%s20 + $0x188] sm:$0xff]
      %v2419 = vld [vmem:[%s20 + $0x190] sm:$0xff]
      %v2420 = vld [vmem:[%s20 + $0x198] sm:$0xff]
      %v2421 = vld [vmem:[%s20 + $0x1a0] sm:$0xff]
      %v2422 = vld [vmem:[%s20 + $0x1a8] sm:$0xff]
      %v2423 = vld [vmem:[%s20 + $0x1b0] sm:$0xff]
      %v2424 = vld [vmem:[%s20 + $0x1b8] sm:$0xff]
      %v2425 = vld [vmem:[%s20 + $0x1c0] sm:$0xff]
      %v2426 = vld [vmem:[%s20 + $0x1c8] sm:$0xff]
      %v2427 = vld [vmem:[%s20 + $0x1d0] sm:$0xff]
      %v2428 = vld [vmem:[%s20 + $0x1d8] sm:$0xff]
      %v2429 = vld [vmem:[%s20 + $0x1e0] sm:$0xff]
      %v2430 = vld [vmem:[%s20 + $0x1e8] sm:$0xff]
      %v2431 = vld [vmem:[%s20 + $0x1f0] sm:$0xff]
      %v2432 = vld [vmem:[%s20 + $0x1f8] sm:$0xff]
      %v2433 = vld [vmem:[%s21] sm:$0x1]
      %v2435 = vlaneseq
      %v2436 = vshrl.u32 %v2435, 7
      %v2437 = vsub.s32 0, %v2436
      %v2438 = vrot.slane %v2433, %v2437
      %2440 = vmatprep.subr.mxu0 0.0
      %2441 = vmatpush1.msra.mxu0 %v2384
      %2442 = vmatprep.subr.mxu0 0.0
      %2443 = vmatpush1.msra.mxu0 %v2383
      %2444 = vmatprep.subr.mxu0 0.0
      %2445 = vmatpush1.msra.mxu0 %v2382
      %2446 = vmatprep.subr.mxu0 0.0
      %2447 = vmatpush1.msra.mxu0 %v2381
      %2448 = vmatprep.subr.mxu0 0.0
      %2449 = vmatpush1.msra.mxu0 %v2380
      %2450 = vmatprep.subr.mxu0 0.0
      %2451 = vmatpush1.msra.mxu0 %v2379
      %2452 = vmatprep.subr.mxu0 0.0
      %2453 = vmatpush1.msra.mxu0 %v2378
      %2454 = vmatprep.subr.mxu0 0.0
      %2455 = vmatpush1.msra.mxu0 %v2377
      %2456 = vmatprep.subr.mxu0 0.0
      %2457 = vmatpush1.msra.mxu0 %v2376
      %2458 = vmatprep.subr.mxu0 0.0
      %2459 = vmatpush1.msra.mxu0 %v2375
      %2460 = vmatprep.subr.mxu0 0.0
      %2461 = vmatpush1.msra.mxu0 %v2374
      %2462 = vmatprep.subr.mxu0 0.0
      %2463 = vmatpush1.msra.mxu0 %v2373
      %2464 = vmatprep.subr.mxu0 0.0
      %2465 = vmatpush1.msra.mxu0 %v2372
      %2466 = vmatprep.subr.mxu0 0.0
      %2467 = vmatpush1.msra.mxu0 %v2371
      %2468 = vmatprep.subr.mxu0 0.0
      %2469 = vmatpush1.msra.mxu0 %v2370
      %2470 = vmatprep.subr.mxu0 0.0
      %2471 = vmatpush1.msra.mxu0 %v2369
      %2472 = vmatprep.subr.mxu0 0.0
      %2473 = vmatpush2.msra.mxu0 %v2400
      %2474 = vmatprep.subr.mxu0 0.0
      %2475 = vmatpush2.msra.mxu0 %v2399
      %2476 = vmatprep.subr.mxu0 0.0
      %2477 = vmatpush2.msra.mxu0 %v2398
      %2478 = vmatprep.subr.mxu0 0.0
      %2479 = vmatpush2.msra.mxu0 %v2397
      %2480 = vmatprep.subr.mxu0 0.0
      %2481 = vmatpush2.msra.mxu0 %v2396
      %2482 = vmatprep.subr.mxu0 0.0
      %2483 = vmatpush2.msra.mxu0 %v2395
      %2484 = vmatprep.subr.mxu0 0.0
      %2485 = vmatpush2.msra.mxu0 %v2394
      %2486 = vmatprep.subr.mxu0 0.0
      %2487 = vmatpush2.msra.mxu0 %v2393
      %2488 = vmatprep.subr.mxu0 0.0
      %2489 = vmatpush2.msra.mxu0 %v2392
      %2490 = vmatprep.subr.mxu0 0.0
      %2491 = vmatpush2.msra.mxu0 %v2391
      %2492 = vmatprep.subr.mxu0 0.0
      %2493 = vmatpush2.msra.mxu0 %v2390
      %2494 = vmatprep.subr.mxu0 0.0
      %2495 = vmatpush2.msra.mxu0 %v2389
      %2496 = vmatprep.subr.mxu0 0.0
      %2497 = vmatpush2.msra.mxu0 %v2388
      %2498 = vmatprep.subr.mxu0 0.0
      %2499 = vmatpush2.msra.mxu0 %v2387
      %2500 = vmatprep.subr.mxu0 0.0
      %2501 = vmatpush2.msra.mxu0 %v2386
      %2502 = vmatprep.subr.mxu0 0.0
      %2503 = vmatpush2.msra.mxu0 %v2385
      %2504 = vmatprep.mubr.f32.mxu0 %v2366
      %2505 = vmatmul.mubr.f32.gmra.mxu0 %v2365
      %v2506 = vpop.f32.mrf.mxu0
      %v2507 = vadd.f32 %v2438, %v2506
      %v2508 = vpop.f32.mrf.mxu0
      %2509 = vdwg.mxu0
      %2510 = vmatprep.subr.mxu0 0.0
      %2511 = vmatpush1.msra.mxu0 %v2416
      %2512 = vmatprep.subr.mxu0 0.0
      %2513 = vmatpush1.msra.mxu0 %v2415
      %2514 = vmatprep.subr.mxu0 0.0
      %2515 = vmatpush1.msra.mxu0 %v2414
      %2516 = vmatprep.subr.mxu0 0.0
      %2517 = vmatpush1.msra.mxu0 %v2413
      %2518 = vmatprep.subr.mxu0 0.0
      %2519 = vmatpush1.msra.mxu0 %v2412
      %2520 = vmatprep.subr.mxu0 0.0
      %2521 = vmatpush1.msra.mxu0 %v2411
      %2522 = vmatprep.subr.mxu0 0.0
      %2523 = vmatpush1.msra.mxu0 %v2410
      %2524 = vmatprep.subr.mxu0 0.0
      %2525 = vmatpush1.msra.mxu0 %v2409
      %2526 = vmatprep.subr.mxu0 0.0
      %2527 = vmatpush1.msra.mxu0 %v2408
      %2528 = vmatprep.subr.mxu0 0.0
      %2529 = vmatpush1.msra.mxu0 %v2407
      %2530 = vmatprep.subr.mxu0 0.0
      %2531 = vmatpush1.msra.mxu0 %v2406
      %2532 = vmatprep.subr.mxu0 0.0
      %2533 = vmatpush1.msra.mxu0 %v2405
      %2534 = vmatprep.subr.mxu0 0.0
      %2535 = vmatpush1.msra.mxu0 %v2404
      %2536 = vmatprep.subr.mxu0 0.0
      %2537 = vmatpush1.msra.mxu0 %v2403
      %2538 = vmatprep.subr.mxu0 0.0
      %2539 = vmatpush1.msra.mxu0 %v2402
      %2540 = vmatprep.subr.mxu0 0.0
      %2541 = vmatpush1.msra.mxu0 %v2401
      %2542 = vmatprep.subr.mxu0 0.0
      %2543 = vmatpush2.msra.mxu0 %v2432
      %2544 = vmatprep.subr.mxu0 0.0
      %2545 = vmatpush2.msra.mxu0 %v2431
      %2546 = vmatprep.subr.mxu0 0.0
      %2547 = vmatpush2.msra.mxu0 %v2430
      %2548 = vmatprep.subr.mxu0 0.0
      %2549 = vmatpush2.msra.mxu0 %v2429
      %2550 = vmatprep.subr.mxu0 0.0
      %2551 = vmatpush2.msra.mxu0 %v2428
      %2552 = vmatprep.subr.mxu0 0.0
      %2553 = vmatpush2.msra.mxu0 %v2427
      %2554 = vmatprep.subr.mxu0 0.0
      %2555 = vmatpush2.msra.mxu0 %v2426
      %2556 = vmatprep.subr.mxu0 0.0
      %2557 = vmatpush2.msra.mxu0 %v2425
      %2558 = vmatprep.subr.mxu0 0.0
      %2559 = vmatpush2.msra.mxu0 %v2424
      %2560 = vmatprep.subr.mxu0 0.0
      %2561 = vmatpush2.msra.mxu0 %v2423
      %2562 = vmatprep.subr.mxu0 0.0
      %2563 = vmatpush2.msra.mxu0 %v2422
      %2564 = vmatprep.subr.mxu0 0.0
      %2565 = vmatpush2.msra.mxu0 %v2421
      %2566 = vmatprep.subr.mxu0 0.0
      %2567 = vmatpush2.msra.mxu0 %v2420
      %2568 = vmatprep.subr.mxu0 0.0
      %2569 = vmatpush2.msra.mxu0 %v2419
      %2570 = vmatprep.subr.mxu0 0.0
      %2571 = vmatpush2.msra.mxu0 %v2418
      %2572 = vmatprep.subr.mxu0 0.0
      %2573 = vmatpush2.msra.mxu0 %v2417
      %2574 = vmatprep.mubr.f32.mxu0 %v2368
      %2575 = vmatmul.mubr.f32.gmra.mxu0 %v2367
      %v2576 = vpop.f32.mrf.mxu0
      %v2577 = vadd.f32 %v2507, %v2576
      %v2578 = vpop.f32.mrf.mxu0
      %2579 = vdwg.mxu0
      %2580 = vst [vmem:[%s681] sm:$0xff] %v2577
      %p2581 = scmp.lt.s32.totalorder %s33, 1
      %s2582 = scalar_select %p2581, %s33, 1
      %s2583 = smul.addr %s2582, 8
      %s2584 = scalar_lea.vmem %s22, %s2583
      // Predicated region
      $region109: #{u_net_forward.1} parent=107 // pred_check
        %p2585 = pneg %p518
      $region110: #{u_net_forward.1} parent=107 // pred_check_branch
        %2587 = sbr.rel (%p2585) target = $region112
      $region111: #{u_net_forward.1} parent=107 // pred_region
        _
      $region112: #{u_net_forward.1} parent=107 // pred_fallthru
        _
    $region108: #{u_net_forward.1} parent=5 // pred_fallthru
      _
    %p2588 = scmp.le.s32.totalorder 2, %s28
    // Predicated region
    $region113: #{u_net_forward.1} parent=5 // pred_check
      %p2589 = pneg %p2588
    $region114: #{u_net_forward.1} parent=5 // pred_check_branch
      %2591 = sbr.rel (%p2589) target = $region116
    $region115: #{u_net_forward.1} parent=5 // pred_region
      %s2592 = ssub.s32 %s28, 2
      // Predicated region
      $region117: #{u_net_forward.1} parent=115 // pred_check
        %p2593 = pneg %p524
      $region118: #{u_net_forward.1} parent=115 // pred_check_branch
        %2595 = sbr.rel (%p2593) target = $region120
      $region119: #{u_net_forward.1} parent=115 // pred_region
        %p2596 = scmp.lt.s32.totalorder %s34, 1
        %s2597 = scalar_select %p2596, %s34, 1
        %s2598 = smul.addr %s2597, 8
        %s2599 = scalar_lea.vmem %s22, %s2598
      $region120: #{u_net_forward.1} parent=115 // pred_fallthru
        _
    $region116: #{u_net_forward.1} parent=5 // pred_fallthru
      _
  $region6: #{u_net_forward.1} parent=0 // loop_footer
    %s32 = sadd.s32 1, %s28
  $region7: #{u_net_forward.1} parent=0 // loop_footer_branch
    %27 = sbr.rel target = $region3
  $region8: #{u_net_forward.1} parent=0 // loop_exit
    _

</llo_original>
